<compile_context>
chip_gen: v5e
topology: v5e:2x2
jax: 0.10.0
libtpu: 0.0.40
codegen_flags: <defaults>
</compile_context>

<pallas_src>
import functools

import jax
import jax.numpy as jnp
from jax import lax
from jax.experimental import pallas as pl
from jax.experimental.pallas import tpu as pltpu


# -----------------------------------------------------------------------------
# Kernel 1: MS_MSA core — q/k/v projections, spectral (channel-wise) attention
#           with L2-normalized Q/K and per-head rescale, output projection.
#           Also emits v_inp, which feeds the depthwise-conv positional branch.
# -----------------------------------------------------------------------------
def _msa_kernel(rescale_ref, x_ref, wq_ref, wk_ref, wv_ref, wp_ref, bp_ref,
                outc_ref, vinp_ref, *, heads):
    x = x_ref[...].astype(jnp.float32)                       # (N, C) tokens x channels
    N, C = x.shape
    dh = C // heads

    q = jnp.dot(x, wq_ref[...], preferred_element_type=jnp.float32)
    k = jnp.dot(x, wk_ref[...], preferred_element_type=jnp.float32)
    v = jnp.dot(x, wv_ref[...], preferred_element_type=jnp.float32)
    vinp_ref[...] = v.astype(vinp_ref.dtype)

    head_outs = []
    for h in range(heads):                                   # small static unroll
        qh = q[:, h * dh:(h + 1) * dh]                       # (N, dh)
        kh = k[:, h * dh:(h + 1) * dh]
        vh = v[:, h * dh:(h + 1) * dh]
        # F.normalize along the token axis (spectral attention attends over tokens)
        qn = qh / jnp.maximum(jnp.sqrt(jnp.sum(qh * qh, axis=0, keepdims=True)), 1e-12)
        kn = kh / jnp.maximum(jnp.sqrt(jnp.sum(kh * kh, axis=0, keepdims=True)), 1e-12)
        # attn[i, j] = sum_n kn[n, i] * qn[n, j]  ->  (dh, dh)   (MXU, "TN" matmul)
        attn = lax.dot_general(kn, qn, (((0,), (0,)), ((), ())),
                               preferred_element_type=jnp.float32)
        attn = attn * rescale_ref[h]                          # per-head scalar from SMEM
        attn = attn - jnp.max(attn, axis=-1, keepdims=True)
        attn = jnp.exp(attn)
        attn = attn / jnp.sum(attn, axis=-1, keepdims=True)
        # out_h[n, i] = sum_j vh[n, j] * attn[i, j]  ->  (N, dh)  (MXU, "NT" matmul)
        head_outs.append(lax.dot_general(vh, attn, (((1,), (1,)), ((), ())),
                                         preferred_element_type=jnp.float32))

    o = jnp.concatenate(head_outs, axis=1)                    # (N, C)
    outc_ref[...] = (jnp.dot(o, wp_ref[...], preferred_element_type=jnp.float32)
                     + bp_ref[...]).astype(outc_ref.dtype)


# -----------------------------------------------------------------------------
# Kernel 2: depthwise 3x3 conv (channels-last, channels on lanes), optional GELU.
#           Shifts only along the outer (H) and sublane (W) axes; lanes untouched.
# -----------------------------------------------------------------------------
def _dwconv_kernel(xp_ref, w_ref, o_ref, *, gelu_out):
    H, W, Cc = o_ref.shape
    xp = xp_ref[...].astype(jnp.float32)                      # (H+2, W+2, Cc)
    wmat = w_ref[...]                                         # (9, Cc), loaded once
    acc = jnp.zeros((H, W, Cc), jnp.float32)
    for kh in range(3):
        for kw in range(3):
            acc = acc + xp[kh:kh + H, kw:kw + W, :] * wmat[kh * 3 + kw]
    if gelu_out:
        acc = jax.nn.gelu(acc, approximate=True)
    o_ref[...] = acc.astype(o_ref.dtype)


def depthwise_conv3x3(x, w, *, gelu_out=False):
    """x: (B, H, W, Cc); w: (3, 3, Cc). Padding handled on the spatial axes only."""
    B, H, W, Cc = x.shape
    xp = jnp.pad(x, ((0, 0), (1, 1), (1, 1), (0, 0)))
    w2 = w.reshape(9, Cc)
    return pl.pallas_call(
        functools.partial(_dwconv_kernel, gelu_out=gelu_out),
        out_shape=jax.ShapeDtypeStruct((B, H, W, Cc), x.dtype),
        grid_spec=pltpu.PrefetchScalarGridSpec(
            num_scalar_prefetch=0,
            grid=(B,),
            in_specs=[
                pl.BlockSpec((None, H + 2, W + 2, Cc), lambda b: (b, 0, 0, 0)),
                pl.BlockSpec((9, Cc), lambda b: (0, 0)),
            ],
            out_specs=pl.BlockSpec((None, H, W, Cc), lambda b: (b, 0, 0, 0)),
        ),
        compiler_params=pltpu.CompilerParams(dimension_semantics=("parallel",)),
    )(xp, w2)


# -----------------------------------------------------------------------------
# Kernel 3: norm1(x + attn_out) fused with the FFN input projection (1x1 conv).
# -----------------------------------------------------------------------------
def _norm1_ffnin_kernel(x_ref, outc_ref, outp_ref, g_ref, b_ref, win_ref,
                        x1_ref, h_ref):
    s = (x_ref[...] + outc_ref[...] + outp_ref[...]).astype(jnp.float32)  # (N, C)
    mu = jnp.mean(s, axis=-1, keepdims=True)
    var = jnp.mean((s - mu) * (s - mu), axis=-1, keepdims=True)
    x1 = (s - mu) * lax.rsqrt(var + 1e-5) * g_ref[...] + b_ref[...]
    x1_ref[...] = x1.astype(x1_ref.dtype)
    h_ref[...] = jnp.dot(x1, win_ref[...],
                         preferred_element_type=jnp.float32).astype(h_ref.dtype)


# -----------------------------------------------------------------------------
# Kernel 4: FFN gating + output projection + residual + norm2.
# -----------------------------------------------------------------------------
def _ffnout_norm2_kernel(hd_ref, x1_ref, wout_ref, g_ref, b_ref, o_ref, *, hidden):
    hd = hd_ref[...].astype(jnp.float32)                      # (N, 2*hidden)
    h1 = hd[:, :hidden]                                       # lane-tile aligned splits
    h2 = hd[:, hidden:]
    u = jax.nn.gelu(h1, approximate=True) * h2                # (N, hidden)
    f = jnp.dot(u, wout_ref[...], preferred_element_type=jnp.float32)     # (N, C)
    s = x1_ref[...].astype(jnp.float32) + f
    mu = jnp.mean(s, axis=-1, keepdims=True)
    var = jnp.mean((s - mu) * (s - mu), axis=-1, keepdims=True)
    o_ref[...] = ((s - mu) * lax.rsqrt(var + 1e-5) * g_ref[...]
                  + b_ref[...]).astype(o_ref.dtype)


# -----------------------------------------------------------------------------
# Wrapper: full TransformerBlock forward.
# -----------------------------------------------------------------------------
def transformer_block_pallas(x, params, *, heads):
    B, H, W, C = x.shape
    N = H * W
    hidden2 = params["w_in"].shape[1]
    hidden = hidden2 // 2

    x_t = x.reshape(B, N, C)

    # ---- MS_MSA: projections + spectral attention + output projection ----
    out_c, v_inp = pl.pallas_call(
        functools.partial(_msa_kernel, heads=heads),
        out_shape=(jax.ShapeDtypeStruct((B, N, C), jnp.float32),
                   jax.ShapeDtypeStruct((B, N, C), jnp.float32)),
        grid_spec=pltpu.PrefetchScalarGridSpec(
            num_scalar_prefetch=0,
            grid=(B,),
            in_specs=[
                pl.BlockSpec(memory_space=pltpu.MemorySpace.SMEM),      # rescale (heads,)
                pl.BlockSpec((None, N, C), lambda b: (b, 0, 0)),        # x tokens
                pl.BlockSpec((C, C), lambda b: (0, 0)),                 # Wq
                pl.BlockSpec((C, C), lambda b: (0, 0)),                 # Wk
                pl.BlockSpec((C, C), lambda b: (0, 0)),                 # Wv
                pl.BlockSpec((C, C), lambda b: (0, 0)),                 # Wproj
                pl.BlockSpec((1, C), lambda b: (0, 0)),                 # bproj
            ],
            out_specs=[pl.BlockSpec((None, N, C), lambda b: (b, 0, 0)),
                       pl.BlockSpec((None, N, C), lambda b: (b, 0, 0))],
        ),
        compiler_params=pltpu.CompilerParams(dimension_semantics=("parallel",)),
    )(params["rescale"], x_t, params["wq"], params["wk"], params["wv"],
      params["wproj"], params["bproj"])

    # ---- positional branch: depthwise conv -> GELU -> depthwise conv on v ----
    v_sp = v_inp.reshape(B, H, W, C)
    t1 = depthwise_conv3x3(v_sp, params["w_pe1"], gelu_out=True)
    out_p = depthwise_conv3x3(t1, params["w_pe2"], gelu_out=False)

    # ---- norm1(attn + x) fused with FFN project_in ----
    x1, h = pl.pallas_call(
        _norm1_ffnin_kernel,
        out_shape=(jax.ShapeDtypeStruct((B, N, C), jnp.float32),
                   jax.ShapeDtypeStruct((B, N, hidden2), jnp.float32)),
        grid_spec=pltpu.PrefetchScalarGridSpec(
            num_scalar_prefetch=0,
            grid=(B,),
            in_specs=[
                pl.BlockSpec((None, N, C), lambda b: (b, 0, 0)),        # x
                pl.BlockSpec((None, N, C), lambda b: (b, 0, 0)),        # out_c
                pl.BlockSpec((None, N, C), lambda b: (b, 0, 0)),        # out_p
                pl.BlockSpec((1, C), lambda b: (0, 0)),                 # LN1 gamma
                pl.BlockSpec((1, C), lambda b: (0, 0)),                 # LN1 beta
                pl.BlockSpec((C, hidden2), lambda b: (0, 0)),           # W_in
            ],
            out_specs=[pl.BlockSpec((None, N, C), lambda b: (b, 0, 0)),
                       pl.BlockSpec((None, N, hidden2), lambda b: (b, 0, 0))],
        ),
        compiler_params=pltpu.CompilerParams(dimension_semantics=("parallel",)),
    )(x_t, out_c, out_p.reshape(B, N, C), params["g1"], params["b1"], params["w_in"])

    # ---- FFN depthwise 3x3 conv over the expanded hidden channels ----
    hd = depthwise_conv3x3(h.reshape(B, H, W, hidden2), params["w_dw"], gelu_out=False)

    # ---- gate + project_out + residual + norm2 ----
    out = pl.pallas_call(
        functools.partial(_ffnout_norm2_kernel, hidden=hidden),
        out_shape=jax.ShapeDtypeStruct((B, N, C), x.dtype),
        grid_spec=pltpu.PrefetchScalarGridSpec(
            num_scalar_prefetch=0,
            grid=(B,),
            in_specs=[
                pl.BlockSpec((None, N, hidden2), lambda b: (b, 0, 0)),  # dwconv(FFN hidden)
                pl.BlockSpec((None, N, C), lambda b: (b, 0, 0)),        # residual y = x1
                pl.BlockSpec((hidden, C), lambda b: (0, 0)),            # W_out
                pl.BlockSpec((1, C), lambda b: (0, 0)),                 # LN2 gamma
                pl.BlockSpec((1, C), lambda b: (0, 0)),                 # LN2 beta
            ],
            out_specs=pl.BlockSpec((None, N, C), lambda b: (b, 0, 0)),
        ),
        compiler_params=pltpu.CompilerParams(dimension_semantics=("parallel",)),
    )(hd.reshape(B, N, hidden2), x1, params["w_out"], params["g2"], params["b2"])

    return out.reshape(B, H, W, C)


# -----------------------------------------------------------------------------
# Pure-JAX reference mirroring the PyTorch forward.
# -----------------------------------------------------------------------------
def transformer_block_reference(x, params, *, heads):
    B, H, W, C = x.shape
    N = H * W
    dh = C // heads
    hidden2 = params["w_in"].shape[1]
    hidden = hidden2 // 2

    def layer_norm(t, g, b):
        mu = jnp.mean(t, axis=-1, keepdims=True)
        var = jnp.mean((t - mu) ** 2, axis=-1, keepdims=True)
        return (t - mu) / jnp.sqrt(var + 1e-5) * g + b

    def dwconv(t, w):                                          # t (B,H,W,Cc), w (3,3,Cc)
        return lax.conv_general_dilated(
            t, w[:, :, None, :], window_strides=(1, 1), padding=((1, 1), (1, 1)),
            dimension_numbers=("NHWC", "HWIO", "NHWC"),
            feature_group_count=t.shape[-1])

    gelu = lambda t: jax.nn.gelu(t, approximate=True)

    xt = x.reshape(B, N, C)
    q = xt @ params["wq"]
    k = xt @ params["wk"]
    v = xt @ params["wv"]

    def split_heads(t):                                        # (B,N,C) -> (B,heads,dh,N)
        return t.reshape(B, N, heads, dh).transpose(0, 2, 3, 1)

    qh, kh, vh = split_heads(q), split_heads(k), split_heads(v)
    qn = qh / jnp.maximum(jnp.linalg.norm(qh, axis=-1, keepdims=True), 1e-12)
    kn = kh / jnp.maximum(jnp.linalg.norm(kh, axis=-1, keepdims=True), 1e-12)
    attn = kn @ jnp.swapaxes(qn, -2, -1)                       # (B, heads, dh, dh)
    attn = attn * params["rescale"][None, :, None, None]
    attn = jax.nn.softmax(attn, axis=-1)
    o = attn @ vh                                              # (B, heads, dh, N)
    o = o.transpose(0, 3, 1, 2).reshape(B, N, C)
    out_c = o @ params["wproj"] + params["bproj"]

    v_sp = v.reshape(B, H, W, C)
    out_p = dwconv(gelu(dwconv(v_sp, params["w_pe1"])), params["w_pe2"])
    attn_out = out_c.reshape(B, H, W, C) + out_p

    x1 = layer_norm(attn_out + x, params["g1"], params["b1"])

    hcur = x1.reshape(B, N, C) @ params["w_in"]
    hd = dwconv(hcur.reshape(B, H, W, hidden2), params["w_dw"])
    h1, h2 = hd[..., :hidden], hd[..., hidden:]
    f = (gelu(h1) * h2).reshape(B, N, hidden) @ params["w_out"]
    out = layer_norm(x1 + f.reshape(B, H, W, C), params["g2"], params["b2"])
    return out


if __name__ == "__main__":
    key = jax.random.PRNGKey(0)
    B, H, W = 2, 16, 16
    dim, heads, dim_heads = 64, 4, 16          # heads * dim_heads == dim
    ffn_expansion_factor = 2.0
    C = dim
    hidden = int(dim * ffn_expansion_factor)   # 128
    hidden2 = 2 * hidden                       # 256

    keys = jax.random.split(key, 16)
    nrm = lambda k, shape, s: jax.random.normal(k, shape, jnp.float32) * s
    params = dict(
        wq=nrm(keys[0], (C, C), 0.15),
        wk=nrm(keys[1], (C, C), 0.15),
        wv=nrm(keys[2], (C, C), 0.15),
        rescale=1.0 + 0.1 * jax.random.normal(keys[3], (heads,), jnp.float32),
        wproj=nrm(keys[4], (C, C), 0.15),
        bproj=nrm(keys[5], (1, C), 0.1),
        w_pe1=nrm(keys[6], (3, 3, C), 0.2),
        w_pe2=nrm(keys[7], (3, 3, C), 0.2),
        g1=1.0 + 0.1 * jax.random.normal(keys[8], (1, C), jnp.float32),
        b1=nrm(keys[9], (1, C), 0.1),
        w_in=nrm(keys[10], (C, hidden2), 0.12),
        w_dw=nrm(keys[11], (3, 3, hidden2), 0.2),
        w_out=nrm(keys[12], (hidden, C), 0.12),
        g2=1.0 + 0.1 * jax.random.normal(keys[13], (1, C), jnp.float32),
        b2=nrm(keys[14], (1, C), 0.1),
    )
    x = jax.random.normal(keys[15], (B, H, W, C), jnp.float32)

    out = transformer_block_pallas(x, params, heads=heads)
    out = jax.block_until_ready(out)

    ref = transformer_block_reference(x, params, heads=heads)
    assert out.shape == x.shape and out.dtype == x.dtype
    max_err = float(jnp.max(jnp.abs(out - ref)))
    assert jnp.allclose(out, ref, rtol=2e-3, atol=2e-3), f"mismatch vs reference, max |err| = {max_err}"

    print("KERNEL_OK")
</pallas_src>

<mosaic_0001>
module attributes {stable_mosaic.version = 11 : i64} {
  func.func @_msa_kernel(%arg0: i32, %arg1: memref<4xf32, #tpu.memory_space<smem>>, %arg2: memref<1x256x64xf32, #tpu.memory_space<vmem>>, %arg3: memref<64x64xf32, #tpu.memory_space<vmem>>, %arg4: memref<64x64xf32, #tpu.memory_space<vmem>>, %arg5: memref<64x64xf32, #tpu.memory_space<vmem>>, %arg6: memref<64x64xf32, #tpu.memory_space<vmem>>, %arg7: memref<1x64xf32, #tpu.memory_space<vmem>>, %arg8: memref<1x256x64xf32, #tpu.memory_space<vmem>>, %arg9: memref<1x256x64xf32, #tpu.memory_space<vmem>>) attributes {dimension_semantics = [#tpu.dimension_semantics<parallel>], iteration_bounds = array<i64: 2>, scalar_prefetch = 0 : i64, scratch_operands = 0 : i64, tpu.core_type = #tpu.core_type<tc>, window_params = [{transform_indices = @transform_0, window_bounds = array<i64: 4>}, {transform_indices = @transform_1, window_bounds = array<i64: 1, 256, 64>}, {pipeline_mode = #tpu.pipeline_mode<synchronous>, transform_indices = @transform_2, window_bounds = array<i64: 64, 64>}, {pipeline_mode = #tpu.pipeline_mode<synchronous>, transform_indices = @transform_3, window_bounds = array<i64: 64, 64>}, {pipeline_mode = #tpu.pipeline_mode<synchronous>, transform_indices = @transform_4, window_bounds = array<i64: 64, 64>}, {pipeline_mode = #tpu.pipeline_mode<synchronous>, transform_indices = @transform_5, window_bounds = array<i64: 64, 64>}, {pipeline_mode = #tpu.pipeline_mode<synchronous>, transform_indices = @transform_6, window_bounds = array<i64: 1, 64>}, {transform_indices = @transform_7, window_bounds = array<i64: 1, 256, 64>}, {transform_indices = @transform_8, window_bounds = array<i64: 1, 256, 64>}]} {
    %c0 = arith.constant 0 : index
    %c0_0 = arith.constant 0 : index
    %c0_1 = arith.constant 0 : index
    %0 = vector.load %arg2[%c0, %c0_0, %c0_1] : memref<1x256x64xf32, #tpu.memory_space<vmem>>, vector<1x256x64xf32>
    %1 = vector.shape_cast %0 : vector<1x256x64xf32> to vector<256x64xf32>
    %c0_2 = arith.constant 0 : index
    %c0_3 = arith.constant 0 : index
    %2 = vector.load %arg3[%c0_2, %c0_3] : memref<64x64xf32, #tpu.memory_space<vmem>>, vector<64x64xf32>
    %cst = arith.constant dense<0.000000e+00> : vector<256x64xf32>
    %3 = tpu.matmul %1, %2, %cst {dimension_numbers = #tpu.dot_dimension_numbers<[1], [0], [0], [1], [0, 0, 1, 1], [], []>} : vector<256x64xf32>, vector<64x64xf32>, vector<256x64xf32> -> vector<256x64xf32>
    %c0_4 = arith.constant 0 : index
    %c0_5 = arith.constant 0 : index
    %4 = vector.load %arg4[%c0_4, %c0_5] : memref<64x64xf32, #tpu.memory_space<vmem>>, vector<64x64xf32>
    %cst_6 = arith.constant dense<0.000000e+00> : vector<256x64xf32>
    %5 = tpu.matmul %1, %4, %cst_6 {dimension_numbers = #tpu.dot_dimension_numbers<[1], [0], [0], [1], [0, 0, 1, 1], [], []>} : vector<256x64xf32>, vector<64x64xf32>, vector<256x64xf32> -> vector<256x64xf32>
    %c0_7 = arith.constant 0 : index
    %c0_8 = arith.constant 0 : index
    %6 = vector.load %arg5[%c0_7, %c0_8] : memref<64x64xf32, #tpu.memory_space<vmem>>, vector<64x64xf32>
    %cst_9 = arith.constant dense<0.000000e+00> : vector<256x64xf32>
    %7 = tpu.matmul %1, %6, %cst_9 {dimension_numbers = #tpu.dot_dimension_numbers<[1], [0], [0], [1], [0, 0, 1, 1], [], []>} : vector<256x64xf32>, vector<64x64xf32>, vector<256x64xf32> -> vector<256x64xf32>
    %c0_10 = arith.constant 0 : index
    %c0_11 = arith.constant 0 : index
    %c0_12 = arith.constant 0 : index
    %8 = vector.load %arg9[%c0_10, %c0_11, %c0_12] : memref<1x256x64xf32, #tpu.memory_space<vmem>>, vector<1x256x64xf32>
    %9 = vector.shape_cast %8 : vector<1x256x64xf32> to vector<256x64xf32>
    %10 = vector.shape_cast %7 : vector<256x64xf32> to vector<1x256x64xf32>
    tpu.vector_store %arg9[%c0_10, %c0_11, %c0_12], %10 {strides = array<i32>} : memref<1x256x64xf32, #tpu.memory_space<vmem>>, vector<1x256x64xf32>,
    %11 = vector.extract_strided_slice %3 {offsets = [0, 0], sizes = [256, 16], strides = [1, 1]} : vector<256x64xf32> to vector<256x16xf32>
    %12 = vector.extract_strided_slice %5 {offsets = [0, 0], sizes = [256, 16], strides = [1, 1]} : vector<256x64xf32> to vector<256x16xf32>
    %13 = vector.extract_strided_slice %7 {offsets = [0, 0], sizes = [256, 16], strides = [1, 1]} : vector<256x64xf32> to vector<256x16xf32>
    %14 = arith.mulf %11, %11 : vector<256x16xf32>
    %cst_13 = arith.constant dense<0.000000e+00> : vector<16xf32>
    %15 = vector.multi_reduction <add>, %14, %cst_13 [0] : vector<256x16xf32> to vector<16xf32>
    %16 = vector.shape_cast %15 : vector<16xf32> to vector<1x16xf32>
    %17 = math.sqrt %16 : vector<1x16xf32>
    %cst_14 = arith.constant 9.99999996E-13 : f32
    %18 = vector.broadcast %cst_14 : f32 to vector<1x16xf32>
    %19 = arith.maximumf %17, %18 : vector<1x16xf32>
    %20 = vector.broadcast %19 : vector<1x16xf32> to vector<256x16xf32>
    %21 = arith.divf %11, %20 : vector<256x16xf32>
    %22 = arith.mulf %12, %12 : vector<256x16xf32>
    %cst_15 = arith.constant dense<0.000000e+00> : vector<16xf32>
    %23 = vector.multi_reduction <add>, %22, %cst_15 [0] : vector<256x16xf32> to vector<16xf32>
    %24 = vector.shape_cast %23 : vector<16xf32> to vector<1x16xf32>
    %25 = math.sqrt %24 : vector<1x16xf32>
    %cst_16 = arith.constant 9.99999996E-13 : f32
    %26 = vector.broadcast %cst_16 : f32 to vector<1x16xf32>
    %27 = arith.maximumf %25, %26 : vector<1x16xf32>
    %28 = vector.broadcast %27 : vector<1x16xf32> to vector<256x16xf32>
    %29 = arith.divf %12, %28 : vector<256x16xf32>
    %cst_17 = arith.constant dense<0.000000e+00> : vector<16x16xf32>
    %30 = tpu.matmul %29, %21, %cst_17 {dimension_numbers = #tpu.dot_dimension_numbers<[0], [0], [1], [1], [0, 1, 1, 1], [], []>} : vector<256x16xf32>, vector<256x16xf32>, vector<16x16xf32> -> vector<16x16xf32>
    %c0_18 = arith.constant 0 : index
    %31 = memref.load %arg1[%c0_18] : memref<4xf32, #tpu.memory_space<smem>>
    %32 = vector.broadcast %31 : f32 to vector<16x16xf32>
    %33 = arith.mulf %30, %32 : vector<16x16xf32>
    %cst_19 = arith.constant dense<0xFF800000> : vector<16xf32>
    %34 = vector.multi_reduction <maximumf>, %33, %cst_19 [1] : vector<16x16xf32> to vector<16xf32>
    %35 = vector.shape_cast %34 : vector<16xf32> to vector<16x1xf32>
    %36 = vector.broadcast %35 : vector<16x1xf32> to vector<16x16xf32>
    %37 = arith.subf %33, %36 : vector<16x16xf32>
    %38 = math.exp %37 : vector<16x16xf32>
    %cst_20 = arith.constant dense<0.000000e+00> : vector<16xf32>
    %39 = vector.multi_reduction <add>, %38, %cst_20 [1] : vector<16x16xf32> to vector<16xf32>
    %40 = vector.shape_cast %39 : vector<16xf32> to vector<16x1xf32>
    %41 = vector.broadcast %40 : vector<16x1xf32> to vector<16x16xf32>
    %42 = arith.divf %38, %41 : vector<16x16xf32>
    %cst_21 = arith.constant dense<0.000000e+00> : vector<256x16xf32>
    %43 = tpu.matmul %13, %42, %cst_21 {dimension_numbers = #tpu.dot_dimension_numbers<[1], [1], [0], [0], [0, 0, 1, 0], [], []>} : vector<256x16xf32>, vector<16x16xf32>, vector<256x16xf32> -> vector<256x16xf32>
    %44 = vector.extract_strided_slice %3 {offsets = [0, 16], sizes = [256, 16], strides = [1, 1]} : vector<256x64xf32> to vector<256x16xf32>
    %45 = vector.extract_strided_slice %5 {offsets = [0, 16], sizes = [256, 16], strides = [1, 1]} : vector<256x64xf32> to vector<256x16xf32>
    %46 = vector.extract_strided_slice %7 {offsets = [0, 16], sizes = [256, 16], strides = [1, 1]} : vector<256x64xf32> to vector<256x16xf32>
    %47 = arith.mulf %44, %44 : vector<256x16xf32>
    %cst_22 = arith.constant dense<0.000000e+00> : vector<16xf32>
    %48 = vector.multi_reduction <add>, %47, %cst_22 [0] : vector<256x16xf32> to vector<16xf32>
    %49 = vector.shape_cast %48 : vector<16xf32> to vector<1x16xf32>
    %50 = math.sqrt %49 : vector<1x16xf32>
    %cst_23 = arith.constant 9.99999996E-13 : f32
    %51 = vector.broadcast %cst_23 : f32 to vector<1x16xf32>
    %52 = arith.maximumf %50, %51 : vector<1x16xf32>
    %53 = vector.broadcast %52 : vector<1x16xf32> to vector<256x16xf32>
    %54 = arith.divf %44, %53 : vector<256x16xf32>
    %55 = arith.mulf %45, %45 : vector<256x16xf32>
    %cst_24 = arith.constant dense<0.000000e+00> : vector<16xf32>
    %56 = vector.multi_reduction <add>, %55, %cst_24 [0] : vector<256x16xf32> to vector<16xf32>
    %57 = vector.shape_cast %56 : vector<16xf32> to vector<1x16xf32>
    %58 = math.sqrt %57 : vector<1x16xf32>
    %cst_25 = arith.constant 9.99999996E-13 : f32
    %59 = vector.broadcast %cst_25 : f32 to vector<1x16xf32>
    %60 = arith.maximumf %58, %59 : vector<1x16xf32>
    %61 = vector.broadcast %60 : vector<1x16xf32> to vector<256x16xf32>
    %62 = arith.divf %45, %61 : vector<256x16xf32>
    %cst_26 = arith.constant dense<0.000000e+00> : vector<16x16xf32>
    %63 = tpu.matmul %62, %54, %cst_26 {dimension_numbers = #tpu.dot_dimension_numbers<[0], [0], [1], [1], [0, 1, 1, 1], [], []>} : vector<256x16xf32>, vector<256x16xf32>, vector<16x16xf32> -> vector<16x16xf32>
    %c1 = arith.constant 1 : index
    %64 = memref.load %arg1[%c1] : memref<4xf32, #tpu.memory_space<smem>>
    %65 = vector.broadcast %64 : f32 to vector<16x16xf32>
    %66 = arith.mulf %63, %65 : vector<16x16xf32>
    %cst_27 = arith.constant dense<0xFF800000> : vector<16xf32>
    %67 = vector.multi_reduction <maximumf>, %66, %cst_27 [1] : vector<16x16xf32> to vector<16xf32>
    %68 = vector.shape_cast %67 : vector<16xf32> to vector<16x1xf32>
    %69 = vector.broadcast %68 : vector<16x1xf32> to vector<16x16xf32>
    %70 = arith.subf %66, %69 : vector<16x16xf32>
    %71 = math.exp %70 : vector<16x16xf32>
    %cst_28 = arith.constant dense<0.000000e+00> : vector<16xf32>
    %72 = vector.multi_reduction <add>, %71, %cst_28 [1] : vector<16x16xf32> to vector<16xf32>
    %73 = vector.shape_cast %72 : vector<16xf32> to vector<16x1xf32>
    %74 = vector.broadcast %73 : vector<16x1xf32> to vector<16x16xf32>
    %75 = arith.divf %71, %74 : vector<16x16xf32>
    %cst_29 = arith.constant dense<0.000000e+00> : vector<256x16xf32>
    %76 = tpu.matmul %46, %75, %cst_29 {dimension_numbers = #tpu.dot_dimension_numbers<[1], [1], [0], [0], [0, 0, 1, 0], [], []>} : vector<256x16xf32>, vector<16x16xf32>, vector<256x16xf32> -> vector<256x16xf32>
    %77 = vector.extract_strided_slice %3 {offsets = [0, 32], sizes = [256, 16], strides = [1, 1]} : vector<256x64xf32> to vector<256x16xf32>
    %78 = vector.extract_strided_slice %5 {offsets = [0, 32], sizes = [256, 16], strides = [1, 1]} : vector<256x64xf32> to vector<256x16xf32>
    %79 = vector.extract_strided_slice %7 {offsets = [0, 32], sizes = [256, 16], strides = [1, 1]} : vector<256x64xf32> to vector<256x16xf32>
    %80 = arith.mulf %77, %77 : vector<256x16xf32>
    %cst_30 = arith.constant dense<0.000000e+00> : vector<16xf32>
    %81 = vector.multi_reduction <add>, %80, %cst_30 [0] : vector<256x16xf32> to vector<16xf32>
    %82 = vector.shape_cast %81 : vector<16xf32> to vector<1x16xf32>
    %83 = math.sqrt %82 : vector<1x16xf32>
    %cst_31 = arith.constant 9.99999996E-13 : f32
    %84 = vector.broadcast %cst_31 : f32 to vector<1x16xf32>
    %85 = arith.maximumf %83, %84 : vector<1x16xf32>
    %86 = vector.broadcast %85 : vector<1x16xf32> to vector<256x16xf32>
    %87 = arith.divf %77, %86 : vector<256x16xf32>
    %88 = arith.mulf %78, %78 : vector<256x16xf32>
    %cst_32 = arith.constant dense<0.000000e+00> : vector<16xf32>
    %89 = vector.multi_reduction <add>, %88, %cst_32 [0] : vector<256x16xf32> to vector<16xf32>
    %90 = vector.shape_cast %89 : vector<16xf32> to vector<1x16xf32>
    %91 = math.sqrt %90 : vector<1x16xf32>
    %cst_33 = arith.constant 9.99999996E-13 : f32
    %92 = vector.broadcast %cst_33 : f32 to vector<1x16xf32>
    %93 = arith.maximumf %91, %92 : vector<1x16xf32>
    %94 = vector.broadcast %93 : vector<1x16xf32> to vector<256x16xf32>
    %95 = arith.divf %78, %94 : vector<256x16xf32>
    %cst_34 = arith.constant dense<0.000000e+00> : vector<16x16xf32>
    %96 = tpu.matmul %95, %87, %cst_34 {dimension_numbers = #tpu.dot_dimension_numbers<[0], [0], [1], [1], [0, 1, 1, 1], [], []>} : vector<256x16xf32>, vector<256x16xf32>, vector<16x16xf32> -> vector<16x16xf32>
    %c2 = arith.constant 2 : index
    %97 = memref.load %arg1[%c2] : memref<4xf32, #tpu.memory_space<smem>>
    %98 = vector.broadcast %97 : f32 to vector<16x16xf32>
    %99 = arith.mulf %96, %98 : vector<16x16xf32>
    %cst_35 = arith.constant dense<0xFF800000> : vector<16xf32>
    %100 = vector.multi_reduction <maximumf>, %99, %cst_35 [1] : vector<16x16xf32> to vector<16xf32>
    %101 = vector.shape_cast %100 : vector<16xf32> to vector<16x1xf32>
    %102 = vector.broadcast %101 : vector<16x1xf32> to vector<16x16xf32>
    %103 = arith.subf %99, %102 : vector<16x16xf32>
    %104 = math.exp %103 : vector<16x16xf32>
    %cst_36 = arith.constant dense<0.000000e+00> : vector<16xf32>
    %105 = vector.multi_reduction <add>, %104, %cst_36 [1] : vector<16x16xf32> to vector<16xf32>
    %106 = vector.shape_cast %105 : vector<16xf32> to vector<16x1xf32>
    %107 = vector.broadcast %106 : vector<16x1xf32> to vector<16x16xf32>
    %108 = arith.divf %104, %107 : vector<16x16xf32>
    %cst_37 = arith.constant dense<0.000000e+00> : vector<256x16xf32>
    %109 = tpu.matmul %79, %108, %cst_37 {dimension_numbers = #tpu.dot_dimension_numbers<[1], [1], [0], [0], [0, 0, 1, 0], [], []>} : vector<256x16xf32>, vector<16x16xf32>, vector<256x16xf32> -> vector<256x16xf32>
    %110 = vector.extract_strided_slice %3 {offsets = [0, 48], sizes = [256, 16], strides = [1, 1]} : vector<256x64xf32> to vector<256x16xf32>
    %111 = vector.extract_strided_slice %5 {offsets = [0, 48], sizes = [256, 16], strides = [1, 1]} : vector<256x64xf32> to vector<256x16xf32>
    %112 = vector.extract_strided_slice %7 {offsets = [0, 48], sizes = [256, 16], strides = [1, 1]} : vector<256x64xf32> to vector<256x16xf32>
    %113 = arith.mulf %110, %110 : vector<256x16xf32>
    %cst_38 = arith.constant dense<0.000000e+00> : vector<16xf32>
    %114 = vector.multi_reduction <add>, %113, %cst_38 [0] : vector<256x16xf32> to vector<16xf32>
    %115 = vector.shape_cast %114 : vector<16xf32> to vector<1x16xf32>
    %116 = math.sqrt %115 : vector<1x16xf32>
    %cst_39 = arith.constant 9.99999996E-13 : f32
    %117 = vector.broadcast %cst_39 : f32 to vector<1x16xf32>
    %118 = arith.maximumf %116, %117 : vector<1x16xf32>
    %119 = vector.broadcast %118 : vector<1x16xf32> to vector<256x16xf32>
    %120 = arith.divf %110, %119 : vector<256x16xf32>
    %121 = arith.mulf %111, %111 : vector<256x16xf32>
    %cst_40 = arith.constant dense<0.000000e+00> : vector<16xf32>
    %122 = vector.multi_reduction <add>, %121, %cst_40 [0] : vector<256x16xf32> to vector<16xf32>
    %123 = vector.shape_cast %122 : vector<16xf32> to vector<1x16xf32>
    %124 = math.sqrt %123 : vector<1x16xf32>
    %cst_41 = arith.constant 9.99999996E-13 : f32
    %125 = vector.broadcast %cst_41 : f32 to vector<1x16xf32>
    %126 = arith.maximumf %124, %125 : vector<1x16xf32>
    %127 = vector.broadcast %126 : vector<1x16xf32> to vector<256x16xf32>
    %128 = arith.divf %111, %127 : vector<256x16xf32>
    %cst_42 = arith.constant dense<0.000000e+00> : vector<16x16xf32>
    %129 = tpu.matmul %128, %120, %cst_42 {dimension_numbers = #tpu.dot_dimension_numbers<[0], [0], [1], [1], [0, 1, 1, 1], [], []>} : vector<256x16xf32>, vector<256x16xf32>, vector<16x16xf32> -> vector<16x16xf32>
    %c3 = arith.constant 3 : index
    %130 = memref.load %arg1[%c3] : memref<4xf32, #tpu.memory_space<smem>>
    %131 = vector.broadcast %130 : f32 to vector<16x16xf32>
    %132 = arith.mulf %129, %131 : vector<16x16xf32>
    %cst_43 = arith.constant dense<0xFF800000> : vector<16xf32>
    %133 = vector.multi_reduction <maximumf>, %132, %cst_43 [1] : vector<16x16xf32> to vector<16xf32>
    %134 = vector.shape_cast %133 : vector<16xf32> to vector<16x1xf32>
    %135 = vector.broadcast %134 : vector<16x1xf32> to vector<16x16xf32>
    %136 = arith.subf %132, %135 : vector<16x16xf32>
    %137 = math.exp %136 : vector<16x16xf32>
    %cst_44 = arith.constant dense<0.000000e+00> : vector<16xf32>
    %138 = vector.multi_reduction <add>, %137, %cst_44 [1] : vector<16x16xf32> to vector<16xf32>
    %139 = vector.shape_cast %138 : vector<16xf32> to vector<16x1xf32>
    %140 = vector.broadcast %139 : vector<16x1xf32> to vector<16x16xf32>
    %141 = arith.divf %137, %140 : vector<16x16xf32>
    %cst_45 = arith.constant dense<0.000000e+00> : vector<256x16xf32>
    %142 = tpu.matmul %112, %141, %cst_45 {dimension_numbers = #tpu.dot_dimension_numbers<[1], [1], [0], [0], [0, 0, 1, 0], [], []>} : vector<256x16xf32>, vector<16x16xf32>, vector<256x16xf32> -> vector<256x16xf32>
    %143 = tpu.concatenate %43, %76, %109, %142 in 1 : vector<256x16xf32>, vector<256x16xf32>, vector<256x16xf32>, vector<256x16xf32> -> vector<256x64xf32>
    %c0_46 = arith.constant 0 : index
    %c0_47 = arith.constant 0 : index
    %144 = vector.load %arg6[%c0_46, %c0_47] : memref<64x64xf32, #tpu.memory_space<vmem>>, vector<64x64xf32>
    %cst_48 = arith.constant dense<0.000000e+00> : vector<256x64xf32>
    %145 = tpu.matmul %143, %144, %cst_48 {dimension_numbers = #tpu.dot_dimension_numbers<[1], [0], [0], [1], [0, 0, 1, 1], [], []>} : vector<256x64xf32>, vector<64x64xf32>, vector<256x64xf32> -> vector<256x64xf32>
    %c0_49 = arith.constant 0 : index
    %c0_50 = arith.constant 0 : index
    %146 = vector.load %arg7[%c0_49, %c0_50] : memref<1x64xf32, #tpu.memory_space<vmem>>, vector<1x64xf32>
    %147 = vector.broadcast %146 : vector<1x64xf32> to vector<256x64xf32>
    %148 = arith.addf %145, %147 : vector<256x64xf32>
    %c0_51 = arith.constant 0 : index
    %c0_52 = arith.constant 0 : index
    %c0_53 = arith.constant 0 : index
    %149 = vector.load %arg8[%c0_51, %c0_52, %c0_53] : memref<1x256x64xf32, #tpu.memory_space<vmem>>, vector<1x256x64xf32>
    %150 = vector.shape_cast %149 : vector<1x256x64xf32> to vector<256x64xf32>
    %151 = vector.shape_cast %148 : vector<256x64xf32> to vector<1x256x64xf32>
    tpu.vector_store %arg8[%c0_51, %c0_52, %c0_53], %151 {strides = array<i32>} : memref<1x256x64xf32, #tpu.memory_space<vmem>>, vector<1x256x64xf32>,
    return
  }
  func.func @transform_0(%arg0: i32) -> i32 {
    %c0_i32 = arith.constant 0 : i32
    %c0_i32_0 = arith.constant 0 : i32
    return %c0_i32 : i32
  }
  func.func @transform_1(%arg0: i32) -> (i32, i32, i32) {
    %c0_i32 = arith.constant 0 : i32
    %c0_i32_0 = arith.constant 0 : i32
    %c0_i32_1 = arith.constant 0 : i32
    return %arg0, %c0_i32, %c0_i32_0 : i32, i32, i32
  }
  func.func @transform_2(%arg0: i32) -> (i32, i32) {
    %c0_i32 = arith.constant 0 : i32
    %c0_i32_0 = arith.constant 0 : i32
    %c0_i32_1 = arith.constant 0 : i32
    return %c0_i32, %c0_i32_0 : i32, i32
  }
  func.func @transform_3(%arg0: i32) -> (i32, i32) {
    %c0_i32 = arith.constant 0 : i32
    %c0_i32_0 = arith.constant 0 : i32
    %c0_i32_1 = arith.constant 0 : i32
    return %c0_i32, %c0_i32_0 : i32, i32
  }
  func.func @transform_4(%arg0: i32) -> (i32, i32) {
    %c0_i32 = arith.constant 0 : i32
    %c0_i32_0 = arith.constant 0 : i32
    %c0_i32_1 = arith.constant 0 : i32
    return %c0_i32, %c0_i32_0 : i32, i32
  }
  func.func @transform_5(%arg0: i32) -> (i32, i32) {
    %c0_i32 = arith.constant 0 : i32
    %c0_i32_0 = arith.constant 0 : i32
    %c0_i32_1 = arith.constant 0 : i32
    return %c0_i32, %c0_i32_0 : i32, i32
  }
  func.func @transform_6(%arg0: i32) -> (i32, i32) {
    %c0_i32 = arith.constant 0 : i32
    %c0_i32_0 = arith.constant 0 : i32
    %c0_i32_1 = arith.constant 0 : i32
    return %c0_i32, %c0_i32_0 : i32, i32
  }
  func.func @transform_7(%arg0: i32) -> (i32, i32, i32) {
    %c0_i32 = arith.constant 0 : i32
    %c0_i32_0 = arith.constant 0 : i32
    %c0_i32_1 = arith.constant 0 : i32
    return %arg0, %c0_i32, %c0_i32_0 : i32, i32, i32
  }
  func.func @transform_8(%arg0: i32) -> (i32, i32, i32) {
    %c0_i32 = arith.constant 0 : i32
    %c0_i32_0 = arith.constant 0 : i32
    %c0_i32_1 = arith.constant 0 : i32
    return %arg0, %c0_i32, %c0_i32_0 : i32, i32, i32
  }
}

</mosaic_0001>

<llo_original>
// kernel: tpu_custom_call.1
$region0: #{tpu_custom_call.1}
  #allocation0 [shape = 'u32[]', space=smem, size = 0x4, offset = 0x4, fixed_abs, tag = 'smem constant byte address 0x4 - core index']
  #allocation1 [shape = 'u32[72,128]{1,0:T(1,128)}', space=vmem, size = 0x9000, scoped, tag = 'internal scratch']
  %s0 = inlined_call_operand.vmem [shape: f32[4], index: 0, kind: input, shape index: {}]
  %s1 = inlined_call_operand.vmem [shape: f32[2,256,64], index: 1, kind: input, shape index: {}]
  %s2 = inlined_call_operand.vmem [shape: f32[64,64], index: 2, kind: input, shape index: {}]
  %s3 = inlined_call_operand.vmem [shape: f32[64,64], index: 3, kind: input, shape index: {}]
  %s4 = inlined_call_operand.vmem [shape: f32[64,64], index: 4, kind: input, shape index: {}]
  %s5 = inlined_call_operand.vmem [shape: f32[64,64], index: 5, kind: input, shape index: {}]
  %s6 = inlined_call_operand.vmem [shape: f32[1,64], index: 6, kind: input, shape index: {}]
  %s7 = inlined_call_operand.vmem [shape: f32[2,256,64], index: 7, kind: output, shape index: {0}]
  %s8 = inlined_call_operand.vmem [shape: f32[2,256,64], index: 8, kind: output, shape index: {1}]
  %9 = xla_tuple %s7, %s8
  %s10 = sld [smem:[#allocation0]]
  $region73: #{tpu_custom_call.1} parent=0
    _
  %s12 = ssub.s32 1, %s10
  %s13 = scalar_select 0, %s12, %s10
  $region1: #{tpu_custom_call.1} parent=0
    #allocation2 [shape = 'u8[512]{0}', space=smem, size = 0x200, scoped, tag = 'input window, operand 0, single buffered']
    #allocation3 [shape = 's32[2]{0}', space=sflag, size = 0x8, scoped, tag = 'scoped memory for tpu_custom_call.1']
    %14 = vsyncpa [#allocation3], 0
    loop: start=0, step=1, limit=4
    $region2: #{tpu_custom_call.1} parent=1 // loop_pre_header
      _
    $region3: #{tpu_custom_call.1} parent=1 // loop_header
      %s16 = sphi 0, %s20
      %p17 = scmp.ge.s32.totalorder %s16, 4
      %s24 = sphi 0, %s24
      %s26 = sphi 0, %s24
      %s27 = sphi 0, %s26
      %s41 = sphi 0, %s27
      %s47 = sphi 0, %s49
      %s50 = sphi 0, %s47
      %s51 = sphi 0, %s50
      %s67 = sphi 0, %s51
      %s71 = sphi 0, %s71
      %s73 = sphi 0, %s71
      %s74 = sphi 0, %s73
      %s88 = sphi 0, %s74
      %s92 = sphi 0, %s92
      %s94 = sphi 0, %s92
      %s95 = sphi 0, %s94
      %s109 = sphi 0, %s95
      %s113 = sphi 0, %s113
      %s115 = sphi 0, %s113
      %s116 = sphi 0, %s115
      %s130 = sphi 0, %s116
      %s134 = sphi 0, %s134
      %s136 = sphi 0, %s134
      %s137 = sphi 0, %s136
      %s151 = sphi 0, %s137
      %s155 = sphi 0, %s155
      %s157 = sphi 0, %s155
      %s158 = sphi 0, %s157
      %s172 = sphi 0, %s158
      %s178 = sphi 0, %s180
      %s181 = sphi 0, %s178
      %s182 = sphi 0, %s181
      %s198 = sphi 0, %s182
      %s204 = sphi 0, %s206
      %s207 = sphi 0, %s204
      %s208 = sphi 0, %s207
      %s224 = sphi 0, %s208
    $region4: #{tpu_custom_call.1} parent=1 // loop_header_branch
      %19 = sbr.rel (%p17) target = $region8
    $region5: #{tpu_custom_call.1} parent=1 // loop_body
      %s21 = ssub.s32 %s16, 1
      %s22 = ssub.s32 %s16, 2
      %s23 = sadd.s32 %s16, 1
      %s25 = sadd.s32 %s24, 1
      %p28 = scmp.eq.s32.totalorder %s16, 1
      %p29 = scmp.ne.s32.totalorder %s24, %s26
      %p30 = scmp.eq.s32.totalorder %s16, 0
      %p31 = por %p29, %p30
      %p32 = scmp.ne.s32.totalorder %s24, %s26
      %p33 = scmp.eq.s32.totalorder %s21, 1
      %p34 = por %p32, %p33
      %p35 = scmp.ne.s32.totalorder %s26, %s27
      %p36 = scmp.eq.s32.totalorder %s21, 0
      %p37 = por %p35, %p36
      %p38 = scmp.ne.s32.totalorder %s26, %s27
      %p39 = scmp.eq.s32.totalorder %s22, 1
      %p40 = por %p38, %p39
      %p42 = scmp.ne.s32.totalorder %s27, %s41
      %p43 = scmp.eq.s32.totalorder %s22, 0
      %p44 = por %p42, %p43
      %s45 = ssub.s32 %s16, %s23
      %p46 = scmp.eq.s32.totalorder %s45, 0
      %s48 = sadd.s32 %s47, 1
      %s49 = scalar_select %p46, %s47, %s48
      %p52 = pneg %p46
      %p53 = scmp.eq.s32.totalorder %s16, 1
      %p54 = por %p52, %p53
      %p55 = scmp.ne.s32.totalorder %s47, %s50
      %p56 = scmp.eq.s32.totalorder %s16, 0
      %p57 = por %p55, %p56
      %p58 = scmp.ne.s32.totalorder %s47, %s50
      %p59 = scmp.eq.s32.totalorder %s21, 1
      %p60 = por %p58, %p59
      %p61 = scmp.ne.s32.totalorder %s50, %s51
      %p62 = scmp.eq.s32.totalorder %s21, 0
      %p63 = por %p61, %p62
      %p64 = scmp.ne.s32.totalorder %s50, %s51
      %p65 = scmp.eq.s32.totalorder %s22, 1
      %p66 = por %p64, %p65
      %p68 = scmp.ne.s32.totalorder %s51, %s67
      %p69 = scmp.eq.s32.totalorder %s22, 0
      %p70 = por %p68, %p69
      %s72 = sadd.s32 %s71, 1
      %p75 = scmp.eq.s32.totalorder %s16, 1
      %p76 = scmp.ne.s32.totalorder %s71, %s73
      %p77 = scmp.eq.s32.totalorder %s16, 0
      %p78 = por %p76, %p77
      %p79 = scmp.ne.s32.totalorder %s71, %s73
      %p80 = scmp.eq.s32.totalorder %s21, 1
      %p81 = por %p79, %p80
      %p82 = scmp.ne.s32.totalorder %s73, %s74
      %p83 = scmp.eq.s32.totalorder %s21, 0
      %p84 = por %p82, %p83
      %p85 = scmp.ne.s32.totalorder %s73, %s74
      %p86 = scmp.eq.s32.totalorder %s22, 1
      %p87 = por %p85, %p86
      %p89 = scmp.ne.s32.totalorder %s74, %s88
      %p90 = scmp.eq.s32.totalorder %s22, 0
      %p91 = por %p89, %p90
      %s93 = sadd.s32 %s92, 1
      %p96 = scmp.eq.s32.totalorder %s16, 1
      %p97 = scmp.ne.s32.totalorder %s92, %s94
      %p98 = scmp.eq.s32.totalorder %s16, 0
      %p99 = por %p97, %p98
      %p100 = scmp.ne.s32.totalorder %s92, %s94
      %p101 = scmp.eq.s32.totalorder %s21, 1
      %p102 = por %p100, %p101
      %p103 = scmp.ne.s32.totalorder %s94, %s95
      %p104 = scmp.eq.s32.totalorder %s21, 0
      %p105 = por %p103, %p104
      %p106 = scmp.ne.s32.totalorder %s94, %s95
      %p107 = scmp.eq.s32.totalorder %s22, 1
      %p108 = por %p106, %p107
      %p110 = scmp.ne.s32.totalorder %s95, %s109
      %p111 = scmp.eq.s32.totalorder %s22, 0
      %p112 = por %p110, %p111
      %s114 = sadd.s32 %s113, 1
      %p117 = scmp.eq.s32.totalorder %s16, 1
      %p118 = scmp.ne.s32.totalorder %s113, %s115
      %p119 = scmp.eq.s32.totalorder %s16, 0
      %p120 = por %p118, %p119
      %p121 = scmp.ne.s32.totalorder %s113, %s115
      %p122 = scmp.eq.s32.totalorder %s21, 1
      %p123 = por %p121, %p122
      %p124 = scmp.ne.s32.totalorder %s115, %s116
      %p125 = scmp.eq.s32.totalorder %s21, 0
      %p126 = por %p124, %p125
      %p127 = scmp.ne.s32.totalorder %s115, %s116
      %p128 = scmp.eq.s32.totalorder %s22, 1
      %p129 = por %p127, %p128
      %p131 = scmp.ne.s32.totalorder %s116, %s130
      %p132 = scmp.eq.s32.totalorder %s22, 0
      %p133 = por %p131, %p132
      %s135 = sadd.s32 %s134, 1
      %p138 = scmp.eq.s32.totalorder %s16, 1
      %p139 = scmp.ne.s32.totalorder %s134, %s136
      %p140 = scmp.eq.s32.totalorder %s16, 0
      %p141 = por %p139, %p140
      %p142 = scmp.ne.s32.totalorder %s134, %s136
      %p143 = scmp.eq.s32.totalorder %s21, 1
      %p144 = por %p142, %p143
      %p145 = scmp.ne.s32.totalorder %s136, %s137
      %p146 = scmp.eq.s32.totalorder %s21, 0
      %p147 = por %p145, %p146
      %p148 = scmp.ne.s32.totalorder %s136, %s137
      %p149 = scmp.eq.s32.totalorder %s22, 1
      %p150 = por %p148, %p149
      %p152 = scmp.ne.s32.totalorder %s137, %s151
      %p153 = scmp.eq.s32.totalorder %s22, 0
      %p154 = por %p152, %p153
      %s156 = sadd.s32 %s155, 1
      %p159 = scmp.eq.s32.totalorder %s16, 1
      %p160 = scmp.ne.s32.totalorder %s155, %s157
      %p161 = scmp.eq.s32.totalorder %s16, 0
      %p162 = por %p160, %p161
      %p163 = scmp.ne.s32.totalorder %s155, %s157
      %p164 = scmp.eq.s32.totalorder %s21, 1
      %p165 = por %p163, %p164
      %p166 = scmp.ne.s32.totalorder %s157, %s158
      %p167 = scmp.eq.s32.totalorder %s21, 0
      %p168 = por %p166, %p167
      %p169 = scmp.ne.s32.totalorder %s157, %s158
      %p170 = scmp.eq.s32.totalorder %s22, 1
      %p171 = por %p169, %p170
      %p173 = scmp.ne.s32.totalorder %s158, %s172
      %p174 = scmp.eq.s32.totalorder %s22, 0
      %p175 = por %p173, %p174
      %s176 = ssub.s32 %s16, %s23
      %p177 = scmp.eq.s32.totalorder %s176, 0
      %s179 = sadd.s32 %s178, 1
      %s180 = scalar_select %p177, %s178, %s179
      %p183 = pneg %p177
      %p184 = scmp.eq.s32.totalorder %s16, 1
      %p185 = por %p183, %p184
      %p186 = scmp.ne.s32.totalorder %s178, %s181
      %p187 = scmp.eq.s32.totalorder %s16, 0
      %p188 = por %p186, %p187
      %p189 = scmp.ne.s32.totalorder %s178, %s181
      %p190 = scmp.eq.s32.totalorder %s21, 1
      %p191 = por %p189, %p190
      %p192 = scmp.ne.s32.totalorder %s181, %s182
      %p193 = scmp.eq.s32.totalorder %s21, 0
      %p194 = por %p192, %p193
      %p195 = scmp.ne.s32.totalorder %s181, %s182
      %p196 = scmp.eq.s32.totalorder %s22, 1
      %p197 = por %p195, %p196
      %p199 = scmp.ne.s32.totalorder %s182, %s198
      %p200 = scmp.eq.s32.totalorder %s22, 0
      %p201 = por %p199, %p200
      %s202 = ssub.s32 %s16, %s23
      %p203 = scmp.eq.s32.totalorder %s202, 0
      %s205 = sadd.s32 %s204, 1
      %s206 = scalar_select %p203, %s204, %s205
      %p209 = pneg %p203
      %p210 = scmp.eq.s32.totalorder %s16, 1
      %p211 = por %p209, %p210
      %p212 = scmp.ne.s32.totalorder %s204, %s207
      %p213 = scmp.eq.s32.totalorder %s16, 0
      %p214 = por %p212, %p213
      %p215 = scmp.ne.s32.totalorder %s204, %s207
      %p216 = scmp.eq.s32.totalorder %s21, 1
      %p217 = por %p215, %p216
      %p218 = scmp.ne.s32.totalorder %s207, %s208
      %p219 = scmp.eq.s32.totalorder %s21, 0
      %p220 = por %p218, %p219
      %p221 = scmp.ne.s32.totalorder %s207, %s208
      %p222 = scmp.eq.s32.totalorder %s22, 1
      %p223 = por %p221, %p222
      %p225 = scmp.ne.s32.totalorder %s208, %s224
      %p226 = scmp.eq.s32.totalorder %s22, 0
      %p227 = por %p225, %p226
      %p228 = scmp.le.s32.totalorder 1, %s16
      %p229 = scmp.lt.s32.totalorder %s16, 3
      %p230 = pnand %p228, %p229
      %p231 = pneg %p230
      // Predicated region
      $region9: #{tpu_custom_call.1} parent=5 // pred_check
        _
      $region10: #{tpu_custom_call.1} parent=5 // pred_check_branch
        %233 = sbr.rel (%p230) target = $region12
      $region11: #{tpu_custom_call.1} parent=5 // pred_region
        %s234 = ssub.s32 %s16, 1
        // Predicated region
        $region13: #{tpu_custom_call.1} parent=11 // pred_check
          %p235 = pneg %p37
        $region14: #{tpu_custom_call.1} parent=11 // pred_check_branch
          %237 = sbr.rel (%p235) target = $region16
        $region15: #{tpu_custom_call.1} parent=11 // pred_region
          %239 = vsyncadd [#allocation3], 0
          %s241 = sshll.u32 %s0, 4
          %s242 = int_to_ptr.vmem [resolvable:$true] %s241
          %244 = dma.vmem_to_smem %s242, 16, [#allocation2], [#allocation3]
        $region16: #{tpu_custom_call.1} parent=11 // pred_fallthru
          _
        // Predicated region
        $region17: #{tpu_custom_call.1} parent=11 // pred_check
          %p245 = pneg %p84
        $region18: #{tpu_custom_call.1} parent=11 // pred_check_branch
          %247 = sbr.rel (%p245) target = $region20
        $region19: #{tpu_custom_call.1} parent=11 // pred_region
          _
        $region20: #{tpu_custom_call.1} parent=11 // pred_fallthru
          _
        // Predicated region
        $region21: #{tpu_custom_call.1} parent=11 // pred_check
          %p248 = pneg %p105
        $region22: #{tpu_custom_call.1} parent=11 // pred_check_branch
          %250 = sbr.rel (%p248) target = $region24
        $region23: #{tpu_custom_call.1} parent=11 // pred_region
          _
        $region24: #{tpu_custom_call.1} parent=11 // pred_fallthru
          _
        // Predicated region
        $region25: #{tpu_custom_call.1} parent=11 // pred_check
          %p251 = pneg %p126
        $region26: #{tpu_custom_call.1} parent=11 // pred_check_branch
          %253 = sbr.rel (%p251) target = $region28
        $region27: #{tpu_custom_call.1} parent=11 // pred_region
          _
        $region28: #{tpu_custom_call.1} parent=11 // pred_fallthru
          _
        // Predicated region
        $region29: #{tpu_custom_call.1} parent=11 // pred_check
          %p254 = pneg %p147
        $region30: #{tpu_custom_call.1} parent=11 // pred_check_branch
          %256 = sbr.rel (%p254) target = $region32
        $region31: #{tpu_custom_call.1} parent=11 // pred_region
          _
        $region32: #{tpu_custom_call.1} parent=11 // pred_fallthru
          _
        // Predicated region
        $region33: #{tpu_custom_call.1} parent=11 // pred_check
          %p257 = pneg %p168
        $region34: #{tpu_custom_call.1} parent=11 // pred_check_branch
          %259 = sbr.rel (%p257) target = $region36
        $region35: #{tpu_custom_call.1} parent=11 // pred_region
          _
        $region36: #{tpu_custom_call.1} parent=11 // pred_fallthru
          _
      $region12: #{tpu_custom_call.1} parent=5 // pred_fallthru
        _
      %p260 = scmp.lt.s32.totalorder %s16, 2
      // Predicated region
      $region37: #{tpu_custom_call.1} parent=5 // pred_check
        %p261 = pneg %p260
      $region38: #{tpu_custom_call.1} parent=5 // pred_check_branch
        %263 = sbr.rel (%p261) target = $region40
      $region39: #{tpu_custom_call.1} parent=5 // pred_region
        // Predicated region
        $region41: #{tpu_custom_call.1} parent=39 // pred_check
          %p264 = pneg %p57
        $region42: #{tpu_custom_call.1} parent=39 // pred_check_branch
          %266 = sbr.rel (%p264) target = $region44
        $region43: #{tpu_custom_call.1} parent=39 // pred_region
          %p267 = scmp.lt.s32.totalorder %s16, 1
          %s268 = scalar_select %p267, %s16, 1
          %s269 = smul.addr %s268, 32
          %s270 = smul.addr %s269, 8
          %s271 = scalar_lea.vmem %s1, %s270
        $region44: #{tpu_custom_call.1} parent=39 // pred_fallthru
          _
      $region40: #{tpu_custom_call.1} parent=5 // pred_fallthru
        _
      %p272 = scmp.le.s32.totalorder 1, %s16
      %p273 = scmp.lt.s32.totalorder %s16, 3
      %p274 = pnand %p272, %p273
      %p275 = pneg %p274
      // Predicated region
      $region45: #{tpu_custom_call.1} parent=5 // pred_check
        _
      $region46: #{tpu_custom_call.1} parent=5 // pred_check_branch
        %277 = sbr.rel (%p274) target = $region48
      $region47: #{tpu_custom_call.1} parent=5 // pred_region
        %s278 = ssub.s32 %s16, 1
        // Predicated region
        $region49: #{tpu_custom_call.1} parent=47 // pred_check
          %p279 = pneg %p37
        $region50: #{tpu_custom_call.1} parent=47 // pred_check_branch
          %281 = sbr.rel (%p279) target = $region52
        $region51: #{tpu_custom_call.1} parent=47 // pred_region
          %283 = dma.done [#allocation3], 16
        $region52: #{tpu_custom_call.1} parent=47 // pred_fallthru
          _
        %284 = sfence
        %p285 = pneg %p37
        %p286 = pneg %p34
        %p287 = scmp.lt.s32.totalorder %s21, 1
        %s288 = scalar_select %p287, %s21, 1
        %s289 = smul.addr %s288, 32
        %s290 = smul.addr %s289, 8
        %s291 = scalar_lea.vmem %s1, %s290
        %p292 = pneg %p63
        %p293 = pneg %p60
        %p294 = pneg %p84
        %p295 = pneg %p81
        %p296 = pneg %p105
        %p297 = pneg %p102
        %p298 = pneg %p126
        %p299 = pneg %p123
        %p300 = pneg %p147
        %p301 = pneg %p144
        %p302 = pneg %p168
        %p303 = pneg %p165
        %p304 = pneg %p194
        %p305 = pneg %p191
        %p306 = scmp.lt.s32.totalorder %s21, 1
        %s307 = scalar_select %p306, %s21, 1
        %s308 = smul.addr %s307, 32
        %s309 = smul.addr %s308, 8
        %s310 = scalar_lea.vmem %s7, %s309
        %p311 = pneg %p220
        %p312 = pneg %p217
        %p313 = scmp.lt.s32.totalorder %s21, 1
        %s314 = scalar_select %p313, %s21, 1
        %s315 = smul.addr %s314, 32
        %s316 = smul.addr %s315, 8
        %s317 = scalar_lea.vmem %s8, %s316
        %p318 = scmp.lt.s32.totalorder %s21, 1
        %s319 = scalar_select %p318, %s21, 1
        %s320 = smul.addr %s319, 32
        %s321 = smul.addr %s320, 8
        %s322 = scalar_lea.vmem %s1, %s321
        %p323 = scmp.lt.s32.totalorder %s21, 1
        %s324 = scalar_select %p323, %s21, 1
        %s325 = smul.addr %s324, 32
        %s326 = smul.addr %s325, 8
        %s327 = scalar_lea.vmem %s7, %s326
        %p328 = scmp.lt.s32.totalorder %s21, 1
        %s329 = scalar_select %p328, %s21, 1
        %s330 = smul.addr %s329, 32
        %s331 = smul.addr %s330, 8
        %s332 = scalar_lea.vmem %s8, %s331
        %v333 = vld [vmem:[%s322] sm:$0xff]
        %v334 = vld [vmem:[%s322 + $0x8] sm:$0xff]
        %v335 = vld [vmem:[%s322 + $0x10] sm:$0xff]
        %v336 = vld [vmem:[%s322 + $0x18] sm:$0xff]
        %v337 = vld [vmem:[%s322 + $0x20] sm:$0xff]
        %v338 = vld [vmem:[%s322 + $0x28] sm:$0xff]
        %v339 = vld [vmem:[%s322 + $0x30] sm:$0xff]
        %v340 = vld [vmem:[%s322 + $0x38] sm:$0xff]
        %v341 = vld [vmem:[%s322 + $0x40] sm:$0xff]
        %v342 = vld [vmem:[%s322 + $0x48] sm:$0xff]
        %v343 = vld [vmem:[%s322 + $0x50] sm:$0xff]
        %v344 = vld [vmem:[%s322 + $0x58] sm:$0xff]
        %v345 = vld [vmem:[%s322 + $0x60] sm:$0xff]
        %v346 = vld [vmem:[%s322 + $0x68] sm:$0xff]
        %v347 = vld [vmem:[%s322 + $0x70] sm:$0xff]
        %v348 = vld [vmem:[%s322 + $0x78] sm:$0xff]
        %v349 = vld [vmem:[%s322 + $0x80] sm:$0xff]
        %v350 = vld [vmem:[%s322 + $0x88] sm:$0xff]
        %v351 = vld [vmem:[%s322 + $0x90] sm:$0xff]
        %v352 = vld [vmem:[%s322 + $0x98] sm:$0xff]
        %v353 = vld [vmem:[%s322 + $0xa0] sm:$0xff]
        %v354 = vld [vmem:[%s322 + $0xa8] sm:$0xff]
        %v355 = vld [vmem:[%s322 + $0xb0] sm:$0xff]
        %v356 = vld [vmem:[%s322 + $0xb8] sm:$0xff]
        %v357 = vld [vmem:[%s322 + $0xc0] sm:$0xff]
        %v358 = vld [vmem:[%s322 + $0xc8] sm:$0xff]
        %v359 = vld [vmem:[%s322 + $0xd0] sm:$0xff]
        %v360 = vld [vmem:[%s322 + $0xd8] sm:$0xff]
        %v361 = vld [vmem:[%s322 + $0xe0] sm:$0xff]
        %v362 = vld [vmem:[%s322 + $0xe8] sm:$0xff]
        %v363 = vld [vmem:[%s322 + $0xf0] sm:$0xff]
        %v364 = vld [vmem:[%s322 + $0xf8] sm:$0xff]
        %v365 = vld [vmem:[%s2] sm:$0xff]
        %v366 = vld [vmem:[%s2 + $0x8] sm:$0xff]
        %v367 = vld [vmem:[%s2 + $0x10] sm:$0xff]
        %v368 = vld [vmem:[%s2 + $0x18] sm:$0xff]
        %v369 = vld [vmem:[%s2 + $0x20] sm:$0xff]
        %v370 = vld [vmem:[%s2 + $0x28] sm:$0xff]
        %v371 = vld [vmem:[%s2 + $0x30] sm:$0xff]
        %v372 = vld [vmem:[%s2 + $0x38] sm:$0xff]
        %vm373 = vcmask 523264
        %v375 = vsel %vm373, %v333, 0
        %v378 = vsel %vm373, %v334, 0
        %v381 = vsel %vm373, %v335, 0
        %v384 = vsel %vm373, %v336, 0
        %v387 = vsel %vm373, %v337, 0
        %v390 = vsel %vm373, %v338, 0
        %v393 = vsel %vm373, %v339, 0
        %v396 = vsel %vm373, %v340, 0
        %v399 = vsel %vm373, %v341, 0
        %v402 = vsel %vm373, %v342, 0
        %v405 = vsel %vm373, %v343, 0
        %v408 = vsel %vm373, %v344, 0
        %v411 = vsel %vm373, %v345, 0
        %v414 = vsel %vm373, %v346, 0
        %v417 = vsel %vm373, %v347, 0
        %v420 = vsel %vm373, %v348, 0
        %v423 = vsel %vm373, %v349, 0
        %v426 = vsel %vm373, %v350, 0
        %v429 = vsel %vm373, %v351, 0
        %v432 = vsel %vm373, %v352, 0
        %v435 = vsel %vm373, %v353, 0
        %v438 = vsel %vm373, %v354, 0
        %v441 = vsel %vm373, %v355, 0
        %v444 = vsel %vm373, %v356, 0
        %v447 = vsel %vm373, %v357, 0
        %v450 = vsel %vm373, %v358, 0
        %v453 = vsel %vm373, %v359, 0
        %v456 = vsel %vm373, %v360, 0
        %v459 = vsel %vm373, %v361, 0
        %v462 = vsel %vm373, %v362, 0
        %v465 = vsel %vm373, %v363, 0
        %v468 = vsel %vm373, %v364, 0
        %470 = vmatpush.msra.mxu0 0.0
        %471 = vmatpush.msra.mxu0 0.0
        %472 = vmatpush.msra.mxu0 0.0
        %473 = vmatpush.msra.mxu0 0.0
        %474 = vmatpush.msra.mxu0 0.0
        %475 = vmatpush.msra.mxu0 0.0
        %476 = vmatpush.msra.mxu0 0.0
        %477 = vmatpush.msra.mxu0 0.0
        %478 = vmatpush.msra.mxu0 %v372
        %479 = vmatpush.msra.mxu0 %v371
        %480 = vmatpush.msra.mxu0 %v370
        %481 = vmatpush.msra.mxu0 %v369
        %482 = vmatpush.msra.mxu0 %v368
        %483 = vmatpush.msra.mxu0 %v367
        %484 = vmatpush.msra.mxu0 %v366
        %485 = vmatpush.msra.mxu0 %v365
        %486 = vmatmul.f32.gmra.mxu0 %v375
        %v487 = vpop.f32.mrf.mxu0
        %v488 = vadd.f32 0.0, %v487
        %489 = vmatmul.f32.gmra.mxu0 %v378
        %v490 = vpop.f32.mrf.mxu0
        %v491 = vadd.f32 0.0, %v490
        %492 = vmatmul.f32.gmra.mxu0 %v381
        %v493 = vpop.f32.mrf.mxu0
        %v494 = vadd.f32 0.0, %v493
        %495 = vmatmul.f32.gmra.mxu0 %v384
        %v496 = vpop.f32.mrf.mxu0
        %v497 = vadd.f32 0.0, %v496
        %498 = vmatmul.f32.gmra.mxu0 %v387
        %v499 = vpop.f32.mrf.mxu0
        %v500 = vadd.f32 0.0, %v499
        %501 = vmatmul.f32.gmra.mxu0 %v390
        %v502 = vpop.f32.mrf.mxu0
        %v503 = vadd.f32 0.0, %v502
        %504 = vmatmul.f32.gmra.mxu0 %v393
        %v505 = vpop.f32.mrf.mxu0
        %v506 = vadd.f32 0.0, %v505
        %507 = vmatmul.f32.gmra.mxu0 %v396
        %v508 = vpop.f32.mrf.mxu0
        %v509 = vadd.f32 0.0, %v508
        %510 = vmatmul.f32.gmra.mxu0 %v399
        %v511 = vpop.f32.mrf.mxu0
        %v512 = vadd.f32 0.0, %v511
        %513 = vmatmul.f32.gmra.mxu0 %v402
        %v514 = vpop.f32.mrf.mxu0
        %v515 = vadd.f32 0.0, %v514
        %516 = vmatmul.f32.gmra.mxu0 %v405
        %v517 = vpop.f32.mrf.mxu0
        %v518 = vadd.f32 0.0, %v517
        %519 = vmatmul.f32.gmra.mxu0 %v408
        %v520 = vpop.f32.mrf.mxu0
        %v521 = vadd.f32 0.0, %v520
        %522 = vmatmul.f32.gmra.mxu0 %v411
        %v523 = vpop.f32.mrf.mxu0
        %v524 = vadd.f32 0.0, %v523
        %525 = vmatmul.f32.gmra.mxu0 %v414
        %v526 = vpop.f32.mrf.mxu0
        %v527 = vadd.f32 0.0, %v526
        %528 = vmatmul.f32.gmra.mxu0 %v417
        %v529 = vpop.f32.mrf.mxu0
        %v530 = vadd.f32 0.0, %v529
        %531 = vmatmul.f32.gmra.mxu0 %v420
        %v532 = vpop.f32.mrf.mxu0
        %v533 = vadd.f32 0.0, %v532
        %534 = vmatmul.f32.gmra.mxu0 %v423
        %v535 = vpop.f32.mrf.mxu0
        %v536 = vadd.f32 0.0, %v535
        %537 = vmatmul.f32.gmra.mxu0 %v426
        %v538 = vpop.f32.mrf.mxu0
        %v539 = vadd.f32 0.0, %v538
        %540 = vmatmul.f32.gmra.mxu0 %v429
        %v541 = vpop.f32.mrf.mxu0
        %v542 = vadd.f32 0.0, %v541
        %543 = vmatmul.f32.gmra.mxu0 %v432
        %v544 = vpop.f32.mrf.mxu0
        %v545 = vadd.f32 0.0, %v544
        %546 = vmatmul.f32.gmra.mxu0 %v435
        %v547 = vpop.f32.mrf.mxu0
        %v548 = vadd.f32 0.0, %v547
        %549 = vmatmul.f32.gmra.mxu0 %v438
        %v550 = vpop.f32.mrf.mxu0
        %v551 = vadd.f32 0.0, %v550
        %552 = vmatmul.f32.gmra.mxu0 %v441
        %v553 = vpop.f32.mrf.mxu0
        %v554 = vadd.f32 0.0, %v553
        %555 = vmatmul.f32.gmra.mxu0 %v444
        %v556 = vpop.f32.mrf.mxu0
        %v557 = vadd.f32 0.0, %v556
        %558 = vmatmul.f32.gmra.mxu0 %v447
        %v559 = vpop.f32.mrf.mxu0
        %v560 = vadd.f32 0.0, %v559
        %561 = vmatmul.f32.gmra.mxu0 %v450
        %v562 = vpop.f32.mrf.mxu0
        %v563 = vadd.f32 0.0, %v562
        %564 = vmatmul.f32.gmra.mxu0 %v453
        %v565 = vpop.f32.mrf.mxu0
        %v566 = vadd.f32 0.0, %v565
        %567 = vmatmul.f32.gmra.mxu0 %v456
        %v568 = vpop.f32.mrf.mxu0
        %v569 = vadd.f32 0.0, %v568
        %570 = vmatmul.f32.gmra.mxu0 %v459
        %v571 = vpop.f32.mrf.mxu0
        %v572 = vadd.f32 0.0, %v571
        %573 = vmatmul.f32.gmra.mxu0 %v462
        %v574 = vpop.f32.mrf.mxu0
        %v575 = vadd.f32 0.0, %v574
        %576 = vmatmul.f32.gmra.mxu0 %v465
        %v577 = vpop.f32.mrf.mxu0
        %v578 = vadd.f32 0.0, %v577
        %579 = vmatmul.f32.gmra.mxu0 %v468
        %v580 = vpop.f32.mrf.mxu0
        %v581 = vadd.f32 0.0, %v580
        %582 = vdwg.mxu0
        %v583 = vld [vmem:[%s3] sm:$0xff]
        %v584 = vld [vmem:[%s3 + $0x8] sm:$0xff]
        %v585 = vld [vmem:[%s3 + $0x10] sm:$0xff]
        %v586 = vld [vmem:[%s3 + $0x18] sm:$0xff]
        %v587 = vld [vmem:[%s3 + $0x20] sm:$0xff]
        %v588 = vld [vmem:[%s3 + $0x28] sm:$0xff]
        %v589 = vld [vmem:[%s3 + $0x30] sm:$0xff]
        %v590 = vld [vmem:[%s3 + $0x38] sm:$0xff]
        %591 = vmatpush.msra.mxu0 0.0
        %592 = vmatpush.msra.mxu0 0.0
        %593 = vmatpush.msra.mxu0 0.0
        %594 = vmatpush.msra.mxu0 0.0
        %595 = vmatpush.msra.mxu0 0.0
        %596 = vmatpush.msra.mxu0 0.0
        %597 = vmatpush.msra.mxu0 0.0
        %598 = vmatpush.msra.mxu0 0.0
        %599 = vmatpush.msra.mxu0 %v590
        %600 = vmatpush.msra.mxu0 %v589
        %601 = vmatpush.msra.mxu0 %v588
        %602 = vmatpush.msra.mxu0 %v587
        %603 = vmatpush.msra.mxu0 %v586
        %604 = vmatpush.msra.mxu0 %v585
        %605 = vmatpush.msra.mxu0 %v584
        %606 = vmatpush.msra.mxu0 %v583
        %607 = vmatmul.f32.gmra.mxu0 %v375
        %v608 = vpop.f32.mrf.mxu0
        %v609 = vadd.f32 0.0, %v608
        %610 = vmatmul.f32.gmra.mxu0 %v378
        %v611 = vpop.f32.mrf.mxu0
        %v612 = vadd.f32 0.0, %v611
        %613 = vmatmul.f32.gmra.mxu0 %v381
        %v614 = vpop.f32.mrf.mxu0
        %v615 = vadd.f32 0.0, %v614
        %616 = vmatmul.f32.gmra.mxu0 %v384
        %v617 = vpop.f32.mrf.mxu0
        %v618 = vadd.f32 0.0, %v617
        %619 = vmatmul.f32.gmra.mxu0 %v387
        %v620 = vpop.f32.mrf.mxu0
        %v621 = vadd.f32 0.0, %v620
        %622 = vmatmul.f32.gmra.mxu0 %v390
        %v623 = vpop.f32.mrf.mxu0
        %v624 = vadd.f32 0.0, %v623
        %625 = vmatmul.f32.gmra.mxu0 %v393
        %v626 = vpop.f32.mrf.mxu0
        %v627 = vadd.f32 0.0, %v626
        %628 = vmatmul.f32.gmra.mxu0 %v396
        %v629 = vpop.f32.mrf.mxu0
        %v630 = vadd.f32 0.0, %v629
        %631 = vmatmul.f32.gmra.mxu0 %v399
        %v632 = vpop.f32.mrf.mxu0
        %v633 = vadd.f32 0.0, %v632
        %634 = vmatmul.f32.gmra.mxu0 %v402
        %v635 = vpop.f32.mrf.mxu0
        %v636 = vadd.f32 0.0, %v635
        %637 = vmatmul.f32.gmra.mxu0 %v405
        %v638 = vpop.f32.mrf.mxu0
        %v639 = vadd.f32 0.0, %v638
        %640 = vmatmul.f32.gmra.mxu0 %v408
        %v641 = vpop.f32.mrf.mxu0
        %v642 = vadd.f32 0.0, %v641
        %643 = vmatmul.f32.gmra.mxu0 %v411
        %v644 = vpop.f32.mrf.mxu0
        %v645 = vadd.f32 0.0, %v644
        %646 = vmatmul.f32.gmra.mxu0 %v414
        %v647 = vpop.f32.mrf.mxu0
        %v648 = vadd.f32 0.0, %v647
        %649 = vmatmul.f32.gmra.mxu0 %v417
        %v650 = vpop.f32.mrf.mxu0
        %v651 = vadd.f32 0.0, %v650
        %652 = vmatmul.f32.gmra.mxu0 %v420
        %v653 = vpop.f32.mrf.mxu0
        %v654 = vadd.f32 0.0, %v653
        %655 = vmatmul.f32.gmra.mxu0 %v423
        %v656 = vpop.f32.mrf.mxu0
        %v657 = vadd.f32 0.0, %v656
        %658 = vmatmul.f32.gmra.mxu0 %v426
        %v659 = vpop.f32.mrf.mxu0
        %v660 = vadd.f32 0.0, %v659
        %661 = vmatmul.f32.gmra.mxu0 %v429
        %v662 = vpop.f32.mrf.mxu0
        %v663 = vadd.f32 0.0, %v662
        %664 = vmatmul.f32.gmra.mxu0 %v432
        %v665 = vpop.f32.mrf.mxu0
        %v666 = vadd.f32 0.0, %v665
        %667 = vmatmul.f32.gmra.mxu0 %v435
        %v668 = vpop.f32.mrf.mxu0
        %v669 = vadd.f32 0.0, %v668
        %670 = vmatmul.f32.gmra.mxu0 %v438
        %v671 = vpop.f32.mrf.mxu0
        %v672 = vadd.f32 0.0, %v671
        %673 = vmatmul.f32.gmra.mxu0 %v441
        %v674 = vpop.f32.mrf.mxu0
        %v675 = vadd.f32 0.0, %v674
        %676 = vmatmul.f32.gmra.mxu0 %v444
        %v677 = vpop.f32.mrf.mxu0
        %v678 = vadd.f32 0.0, %v677
        %679 = vmatmul.f32.gmra.mxu0 %v447
        %v680 = vpop.f32.mrf.mxu0
        %v681 = vadd.f32 0.0, %v680
        %682 = vmatmul.f32.gmra.mxu0 %v450
        %v683 = vpop.f32.mrf.mxu0
        %v684 = vadd.f32 0.0, %v683
        %685 = vmatmul.f32.gmra.mxu0 %v453
        %v686 = vpop.f32.mrf.mxu0
        %v687 = vadd.f32 0.0, %v686
        %688 = vmatmul.f32.gmra.mxu0 %v456
        %v689 = vpop.f32.mrf.mxu0
        %v690 = vadd.f32 0.0, %v689
        %691 = vmatmul.f32.gmra.mxu0 %v459
        %v692 = vpop.f32.mrf.mxu0
        %v693 = vadd.f32 0.0, %v692
        %694 = vmatmul.f32.gmra.mxu0 %v462
        %v695 = vpop.f32.mrf.mxu0
        %v696 = vadd.f32 0.0, %v695
        %697 = vmatmul.f32.gmra.mxu0 %v465
        %v698 = vpop.f32.mrf.mxu0
        %v699 = vadd.f32 0.0, %v698
        %700 = vmatmul.f32.gmra.mxu0 %v468
        %v701 = vpop.f32.mrf.mxu0
        %v702 = vadd.f32 0.0, %v701
        %703 = vdwg.mxu0
        %v704 = vld [vmem:[%s4] sm:$0xff]
        %v705 = vld [vmem:[%s4 + $0x8] sm:$0xff]
        %v706 = vld [vmem:[%s4 + $0x10] sm:$0xff]
        %v707 = vld [vmem:[%s4 + $0x18] sm:$0xff]
        %v708 = vld [vmem:[%s4 + $0x20] sm:$0xff]
        %v709 = vld [vmem:[%s4 + $0x28] sm:$0xff]
        %v710 = vld [vmem:[%s4 + $0x30] sm:$0xff]
        %v711 = vld [vmem:[%s4 + $0x38] sm:$0xff]
        %712 = vmatpush.msra.mxu0 0.0
        %713 = vmatpush.msra.mxu0 0.0
        %714 = vmatpush.msra.mxu0 0.0
        %715 = vmatpush.msra.mxu0 0.0
        %716 = vmatpush.msra.mxu0 0.0
        %717 = vmatpush.msra.mxu0 0.0
        %718 = vmatpush.msra.mxu0 0.0
        %719 = vmatpush.msra.mxu0 0.0
        %720 = vmatpush.msra.mxu0 %v711
        %721 = vmatpush.msra.mxu0 %v710
        %722 = vmatpush.msra.mxu0 %v709
        %723 = vmatpush.msra.mxu0 %v708
        %724 = vmatpush.msra.mxu0 %v707
        %725 = vmatpush.msra.mxu0 %v706
        %726 = vmatpush.msra.mxu0 %v705
        %727 = vmatpush.msra.mxu0 %v704
        %728 = vmatmul.f32.gmra.mxu0 %v375
        %v729 = vpop.f32.mrf.mxu0
        %v730 = vadd.f32 0.0, %v729
        %731 = vmatmul.f32.gmra.mxu0 %v378
        %v732 = vpop.f32.mrf.mxu0
        %v733 = vadd.f32 0.0, %v732
        %734 = vmatmul.f32.gmra.mxu0 %v381
        %v735 = vpop.f32.mrf.mxu0
        %v736 = vadd.f32 0.0, %v735
        %737 = vmatmul.f32.gmra.mxu0 %v384
        %v738 = vpop.f32.mrf.mxu0
        %v739 = vadd.f32 0.0, %v738
        %740 = vmatmul.f32.gmra.mxu0 %v387
        %v741 = vpop.f32.mrf.mxu0
        %v742 = vadd.f32 0.0, %v741
        %743 = vmatmul.f32.gmra.mxu0 %v390
        %v744 = vpop.f32.mrf.mxu0
        %v745 = vadd.f32 0.0, %v744
        %746 = vmatmul.f32.gmra.mxu0 %v393
        %v747 = vpop.f32.mrf.mxu0
        %v748 = vadd.f32 0.0, %v747
        %749 = vmatmul.f32.gmra.mxu0 %v396
        %v750 = vpop.f32.mrf.mxu0
        %v751 = vadd.f32 0.0, %v750
        %752 = vmatmul.f32.gmra.mxu0 %v399
        %v753 = vpop.f32.mrf.mxu0
        %v754 = vadd.f32 0.0, %v753
        %755 = vmatmul.f32.gmra.mxu0 %v402
        %v756 = vpop.f32.mrf.mxu0
        %v757 = vadd.f32 0.0, %v756
        %758 = vmatmul.f32.gmra.mxu0 %v405
        %v759 = vpop.f32.mrf.mxu0
        %v760 = vadd.f32 0.0, %v759
        %761 = vmatmul.f32.gmra.mxu0 %v408
        %v762 = vpop.f32.mrf.mxu0
        %v763 = vadd.f32 0.0, %v762
        %764 = vmatmul.f32.gmra.mxu0 %v411
        %v765 = vpop.f32.mrf.mxu0
        %v766 = vadd.f32 0.0, %v765
        %767 = vmatmul.f32.gmra.mxu0 %v414
        %v768 = vpop.f32.mrf.mxu0
        %v769 = vadd.f32 0.0, %v768
        %770 = vmatmul.f32.gmra.mxu0 %v417
        %v771 = vpop.f32.mrf.mxu0
        %v772 = vadd.f32 0.0, %v771
        %773 = vmatmul.f32.gmra.mxu0 %v420
        %v774 = vpop.f32.mrf.mxu0
        %v775 = vadd.f32 0.0, %v774
        %776 = vmatmul.f32.gmra.mxu0 %v423
        %v777 = vpop.f32.mrf.mxu0
        %v778 = vadd.f32 0.0, %v777
        %779 = vmatmul.f32.gmra.mxu0 %v426
        %v780 = vpop.f32.mrf.mxu0
        %v781 = vadd.f32 0.0, %v780
        %782 = vmatmul.f32.gmra.mxu0 %v429
        %v783 = vpop.f32.mrf.mxu0
        %v784 = vadd.f32 0.0, %v783
        %785 = vmatmul.f32.gmra.mxu0 %v432
        %v786 = vpop.f32.mrf.mxu0
        %v787 = vadd.f32 0.0, %v786
        %788 = vmatmul.f32.gmra.mxu0 %v435
        %v789 = vpop.f32.mrf.mxu0
        %v790 = vadd.f32 0.0, %v789
        %791 = vmatmul.f32.gmra.mxu0 %v438
        %v792 = vpop.f32.mrf.mxu0
        %v793 = vadd.f32 0.0, %v792
        %794 = vmatmul.f32.gmra.mxu0 %v441
        %v795 = vpop.f32.mrf.mxu0
        %v796 = vadd.f32 0.0, %v795
        %797 = vmatmul.f32.gmra.mxu0 %v444
        %v798 = vpop.f32.mrf.mxu0
        %v799 = vadd.f32 0.0, %v798
        %800 = vmatmul.f32.gmra.mxu0 %v447
        %v801 = vpop.f32.mrf.mxu0
        %v802 = vadd.f32 0.0, %v801
        %803 = vmatmul.f32.gmra.mxu0 %v450
        %v804 = vpop.f32.mrf.mxu0
        %v805 = vadd.f32 0.0, %v804
        %806 = vmatmul.f32.gmra.mxu0 %v453
        %v807 = vpop.f32.mrf.mxu0
        %v808 = vadd.f32 0.0, %v807
        %809 = vmatmul.f32.gmra.mxu0 %v456
        %v810 = vpop.f32.mrf.mxu0
        %v811 = vadd.f32 0.0, %v810
        %812 = vmatmul.f32.gmra.mxu0 %v459
        %v813 = vpop.f32.mrf.mxu0
        %v814 = vadd.f32 0.0, %v813
        %815 = vmatmul.f32.gmra.mxu0 %v462
        %v816 = vpop.f32.mrf.mxu0
        %v817 = vadd.f32 0.0, %v816
        %818 = vmatmul.f32.gmra.mxu0 %v465
        %v819 = vpop.f32.mrf.mxu0
        %v820 = vadd.f32 0.0, %v819
        %821 = vmatmul.f32.gmra.mxu0 %v468
        %v822 = vpop.f32.mrf.mxu0
        %v823 = vadd.f32 0.0, %v822
        %824 = vdwg.mxu0
        %825 = vst.msk [vmem:[%s332] sm:$0xff] %vm373, %v730
        %826 = vst.msk [vmem:[%s332 + $0x8] sm:$0xff] %vm373, %v733
        %827 = vst.msk [vmem:[%s332 + $0x10] sm:$0xff] %vm373, %v736
        %828 = vst.msk [vmem:[%s332 + $0x18] sm:$0xff] %vm373, %v739
        %829 = vst.msk [vmem:[%s332 + $0x20] sm:$0xff] %vm373, %v742
        %830 = vst.msk [vmem:[%s332 + $0x28] sm:$0xff] %vm373, %v745
        %831 = vst.msk [vmem:[%s332 + $0x30] sm:$0xff] %vm373, %v748
        %832 = vst.msk [vmem:[%s332 + $0x38] sm:$0xff] %vm373, %v751
        %833 = vst.msk [vmem:[%s332 + $0x40] sm:$0xff] %vm373, %v754
        %834 = vst.msk [vmem:[%s332 + $0x48] sm:$0xff] %vm373, %v757
        %835 = vst.msk [vmem:[%s332 + $0x50] sm:$0xff] %vm373, %v760
        %836 = vst.msk [vmem:[%s332 + $0x58] sm:$0xff] %vm373, %v763
        %837 = vst.msk [vmem:[%s332 + $0x60] sm:$0xff] %vm373, %v766
        %838 = vst.msk [vmem:[%s332 + $0x68] sm:$0xff] %vm373, %v769
        %839 = vst.msk [vmem:[%s332 + $0x70] sm:$0xff] %vm373, %v772
        %840 = vst.msk [vmem:[%s332 + $0x78] sm:$0xff] %vm373, %v775
        %841 = vst.msk [vmem:[%s332 + $0x80] sm:$0xff] %vm373, %v778
        %842 = vst.msk [vmem:[%s332 + $0x88] sm:$0xff] %vm373, %v781
        %843 = vst.msk [vmem:[%s332 + $0x90] sm:$0xff] %vm373, %v784
        %844 = vst.msk [vmem:[%s332 + $0x98] sm:$0xff] %vm373, %v787
        %845 = vst.msk [vmem:[%s332 + $0xa0] sm:$0xff] %vm373, %v790
        %846 = vst.msk [vmem:[%s332 + $0xa8] sm:$0xff] %vm373, %v793
        %847 = vst.msk [vmem:[%s332 + $0xb0] sm:$0xff] %vm373, %v796
        %848 = vst.msk [vmem:[%s332 + $0xb8] sm:$0xff] %vm373, %v799
        %849 = vst.msk [vmem:[%s332 + $0xc0] sm:$0xff] %vm373, %v802
        %850 = vst.msk [vmem:[%s332 + $0xc8] sm:$0xff] %vm373, %v805
        %851 = vst.msk [vmem:[%s332 + $0xd0] sm:$0xff] %vm373, %v808
        %852 = vst.msk [vmem:[%s332 + $0xd8] sm:$0xff] %vm373, %v811
        %853 = vst.msk [vmem:[%s332 + $0xe0] sm:$0xff] %vm373, %v814
        %854 = vst.msk [vmem:[%s332 + $0xe8] sm:$0xff] %vm373, %v817
        %855 = vst.msk [vmem:[%s332 + $0xf0] sm:$0xff] %vm373, %v820
        %856 = vst.msk [vmem:[%s332 + $0xf8] sm:$0xff] %vm373, %v823
        %v857 = vmul.f32 %v488, %v488
        %v858 = vmul.f32 %v491, %v491
        %v859 = vmul.f32 %v494, %v494
        %v860 = vmul.f32 %v497, %v497
        %v861 = vmul.f32 %v500, %v500
        %v862 = vmul.f32 %v503, %v503
        %v863 = vmul.f32 %v506, %v506
        %v864 = vmul.f32 %v509, %v509
        %v865 = vmul.f32 %v512, %v512
        %v866 = vmul.f32 %v515, %v515
        %v867 = vmul.f32 %v518, %v518
        %v868 = vmul.f32 %v521, %v521
        %v869 = vmul.f32 %v524, %v524
        %v870 = vmul.f32 %v527, %v527
        %v871 = vmul.f32 %v530, %v530
        %v872 = vmul.f32 %v533, %v533
        %v873 = vmul.f32 %v536, %v536
        %v874 = vmul.f32 %v539, %v539
        %v875 = vmul.f32 %v542, %v542
        %v876 = vmul.f32 %v545, %v545
        %v877 = vmul.f32 %v548, %v548
        %v878 = vmul.f32 %v551, %v551
        %v879 = vmul.f32 %v554, %v554
        %v880 = vmul.f32 %v557, %v557
        %v881 = vmul.f32 %v560, %v560
        %v882 = vmul.f32 %v563, %v563
        %v883 = vmul.f32 %v566, %v566
        %v884 = vmul.f32 %v569, %v569
        %v885 = vmul.f32 %v572, %v572
        %v886 = vmul.f32 %v575, %v575
        %v887 = vmul.f32 %v578, %v578
        %v888 = vmul.f32 %v581, %v581
        %vm889 = vcmask 130048
        %v890 = vsel %vm889, %v857, 0.0
        %v891 = vsel %vm889, %v858, 0.0
        %v892 = vadd.f32 %v890, %v891
        %v893 = vsel %vm889, %v859, 0.0
        %v894 = vadd.f32 %v892, %v893
        %v895 = vsel %vm889, %v860, 0.0
        %v896 = vadd.f32 %v894, %v895
        %v897 = vsel %vm889, %v861, 0.0
        %v898 = vadd.f32 %v896, %v897
        %v899 = vsel %vm889, %v862, 0.0
        %v900 = vadd.f32 %v898, %v899
        %v901 = vsel %vm889, %v863, 0.0
        %v902 = vadd.f32 %v900, %v901
        %v903 = vsel %vm889, %v864, 0.0
        %v904 = vadd.f32 %v902, %v903
        %v905 = vsel %vm889, %v865, 0.0
        %v906 = vadd.f32 %v904, %v905
        %v907 = vsel %vm889, %v866, 0.0
        %v908 = vadd.f32 %v906, %v907
        %v909 = vsel %vm889, %v867, 0.0
        %v910 = vadd.f32 %v908, %v909
        %v911 = vsel %vm889, %v868, 0.0
        %v912 = vadd.f32 %v910, %v911
        %v913 = vsel %vm889, %v869, 0.0
        %v914 = vadd.f32 %v912, %v913
        %v915 = vsel %vm889, %v870, 0.0
        %v916 = vadd.f32 %v914, %v915
        %v917 = vsel %vm889, %v871, 0.0
        %v918 = vadd.f32 %v916, %v917
        %v919 = vsel %vm889, %v872, 0.0
        %v920 = vadd.f32 %v918, %v919
        %v921 = vsel %vm889, %v873, 0.0
        %v922 = vadd.f32 %v920, %v921
        %v923 = vsel %vm889, %v874, 0.0
        %v924 = vadd.f32 %v922, %v923
        %v925 = vsel %vm889, %v875, 0.0
        %v926 = vadd.f32 %v924, %v925
        %v927 = vsel %vm889, %v876, 0.0
        %v928 = vadd.f32 %v926, %v927
        %v929 = vsel %vm889, %v877, 0.0
        %v930 = vadd.f32 %v928, %v929
        %v931 = vsel %vm889, %v878, 0.0
        %v932 = vadd.f32 %v930, %v931
        %v933 = vsel %vm889, %v879, 0.0
        %v934 = vadd.f32 %v932, %v933
        %v935 = vsel %vm889, %v880, 0.0
        %v936 = vadd.f32 %v934, %v935
        %v937 = vsel %vm889, %v881, 0.0
        %v938 = vadd.f32 %v936, %v937
        %v939 = vsel %vm889, %v882, 0.0
        %v940 = vadd.f32 %v938, %v939
        %v941 = vsel %vm889, %v883, 0.0
        %v942 = vadd.f32 %v940, %v941
        %v943 = vsel %vm889, %v884, 0.0
        %v944 = vadd.f32 %v942, %v943
        %v945 = vsel %vm889, %v885, 0.0
        %v946 = vadd.f32 %v944, %v945
        %v947 = vsel %vm889, %v886, 0.0
        %v948 = vadd.f32 %v946, %v947
        %v949 = vsel %vm889, %v887, 0.0
        %v950 = vadd.f32 %v948, %v949
        %v951 = vsel %vm889, %v888, 0.0
        %v952 = vadd.f32 %v950, %v951
        %v953 = vrot.slane %v952, 4
        %v954 = vadd.f32 %v952, %v953
        %v955 = vrot.slane %v954, 2
        %v956 = vadd.f32 %v954, %v955
        %v957 = vrot.slane %v956, 1
        %v958 = vadd.f32 %v956, %v957
        %v959 = vrsqrt.pop %v958
        %v960 = vmul.f32 %v959, %v958
        %v961 = vmul.f32 %v960, %v959
        %v962 = vmul.f32 0.5, %v961
        %v963 = vsub.f32 1.5, %v962
        %v964 = vmul.f32 %v959, %v963
        %v965 = vmul.f32 %v958, %v964
        %vm966 = vcmp.eq.f32.partialorder %v958, inf
        %v967 = vsel %vm966, %v958, %v965
        %vm968 = vcmp.eq.f32.partialorder %v958, 0.0
        %v969 = vand.u32 %v958, 2147483648
        %v970 = vsel %vm968, %v969, %v967
        %v971 = vmax.f32 %v970, 1e-12
        %v972 = vrcp.pop %v971
        %v973 = vmul.f32 %v971, %v972
        %v974 = vsub.f32 1.0, %v973
        %v975 = vmul.f32 %v972, %v974
        %v976 = vadd.f32 %v972, %v975
        %vm977 = vweird.f32 %v971
        %vm978 = vweird.f32 %v972
        %vm979 = vmor %vm977, %vm978
        %v980 = vsel %vm979, %v972, %v976
        %v981 = vand.u32 2147483647, %v971
        %vm982 = vcmp.eq.f32.partialorder %v981, 8.507059e+37
        %v983 = vand.u32 %v971, 2147483648
        %v984 = vor.u32 1.1754944e-38, %v983
        %v985 = vsel %vm982, %v984, %v980
        %v986 = vmul.f32 %v488, %v985
        %v987 = vmul.f32 %v491, %v985
        %v988 = vmul.f32 %v494, %v985
        %v989 = vmul.f32 %v497, %v985
        %v990 = vmul.f32 %v500, %v985
        %v991 = vmul.f32 %v503, %v985
        %v992 = vmul.f32 %v506, %v985
        %v993 = vmul.f32 %v509, %v985
        %v994 = vmul.f32 %v512, %v985
        %v995 = vmul.f32 %v515, %v985
        %v996 = vmul.f32 %v518, %v985
        %v997 = vmul.f32 %v521, %v985
        %v998 = vmul.f32 %v524, %v985
        %v999 = vmul.f32 %v527, %v985
        %v1000 = vmul.f32 %v530, %v985
        %v1001 = vmul.f32 %v533, %v985
        %v1002 = vmul.f32 %v536, %v985
        %v1003 = vmul.f32 %v539, %v985
        %v1004 = vmul.f32 %v542, %v985
        %v1005 = vmul.f32 %v545, %v985
        %v1006 = vmul.f32 %v548, %v985
        %v1007 = vmul.f32 %v551, %v985
        %v1008 = vmul.f32 %v554, %v985
        %v1009 = vmul.f32 %v557, %v985
        %v1010 = vmul.f32 %v560, %v985
        %v1011 = vmul.f32 %v563, %v985
        %v1012 = vmul.f32 %v566, %v985
        %v1013 = vmul.f32 %v569, %v985
        %v1014 = vmul.f32 %v572, %v985
        %v1015 = vmul.f32 %v575, %v985
        %v1016 = vmul.f32 %v578, %v985
        %v1017 = vmul.f32 %v581, %v985
        %v1018 = vmul.f32 %v609, %v609
        %v1019 = vmul.f32 %v612, %v612
        %v1020 = vmul.f32 %v615, %v615
        %v1021 = vmul.f32 %v618, %v618
        %v1022 = vmul.f32 %v621, %v621
        %v1023 = vmul.f32 %v624, %v624
        %v1024 = vmul.f32 %v627, %v627
        %v1025 = vmul.f32 %v630, %v630
        %v1026 = vmul.f32 %v633, %v633
        %v1027 = vmul.f32 %v636, %v636
        %v1028 = vmul.f32 %v639, %v639
        %v1029 = vmul.f32 %v642, %v642
        %v1030 = vmul.f32 %v645, %v645
        %v1031 = vmul.f32 %v648, %v648
        %v1032 = vmul.f32 %v651, %v651
        %v1033 = vmul.f32 %v654, %v654
        %v1034 = vmul.f32 %v657, %v657
        %v1035 = vmul.f32 %v660, %v660
        %v1036 = vmul.f32 %v663, %v663
        %v1037 = vmul.f32 %v666, %v666
        %v1038 = vmul.f32 %v669, %v669
        %v1039 = vmul.f32 %v672, %v672
        %v1040 = vmul.f32 %v675, %v675
        %v1041 = vmul.f32 %v678, %v678
        %v1042 = vmul.f32 %v681, %v681
        %v1043 = vmul.f32 %v684, %v684
        %v1044 = vmul.f32 %v687, %v687
        %v1045 = vmul.f32 %v690, %v690
        %v1046 = vmul.f32 %v693, %v693
        %v1047 = vmul.f32 %v696, %v696
        %v1048 = vmul.f32 %v699, %v699
        %v1049 = vmul.f32 %v702, %v702
        %v1050 = vsel %vm889, %v1018, 0.0
        %v1051 = vsel %vm889, %v1019, 0.0
        %v1052 = vadd.f32 %v1050, %v1051
        %v1053 = vsel %vm889, %v1020, 0.0
        %v1054 = vadd.f32 %v1052, %v1053
        %v1055 = vsel %vm889, %v1021, 0.0
        %v1056 = vadd.f32 %v1054, %v1055
        %v1057 = vsel %vm889, %v1022, 0.0
        %v1058 = vadd.f32 %v1056, %v1057
        %v1059 = vsel %vm889, %v1023, 0.0
        %v1060 = vadd.f32 %v1058, %v1059
        %v1061 = vsel %vm889, %v1024, 0.0
        %v1062 = vadd.f32 %v1060, %v1061
        %v1063 = vsel %vm889, %v1025, 0.0
        %v1064 = vadd.f32 %v1062, %v1063
        %v1065 = vsel %vm889, %v1026, 0.0
        %v1066 = vadd.f32 %v1064, %v1065
        %v1067 = vsel %vm889, %v1027, 0.0
        %v1068 = vadd.f32 %v1066, %v1067
        %v1069 = vsel %vm889, %v1028, 0.0
        %v1070 = vadd.f32 %v1068, %v1069
        %v1071 = vsel %vm889, %v1029, 0.0
        %v1072 = vadd.f32 %v1070, %v1071
        %v1073 = vsel %vm889, %v1030, 0.0
        %v1074 = vadd.f32 %v1072, %v1073
        %v1075 = vsel %vm889, %v1031, 0.0
        %v1076 = vadd.f32 %v1074, %v1075
        %v1077 = vsel %vm889, %v1032, 0.0
        %v1078 = vadd.f32 %v1076, %v1077
        %v1079 = vsel %vm889, %v1033, 0.0
        %v1080 = vadd.f32 %v1078, %v1079
        %v1081 = vsel %vm889, %v1034, 0.0
        %v1082 = vadd.f32 %v1080, %v1081
        %v1083 = vsel %vm889, %v1035, 0.0
        %v1084 = vadd.f32 %v1082, %v1083
        %v1085 = vsel %vm889, %v1036, 0.0
        %v1086 = vadd.f32 %v1084, %v1085
        %v1087 = vsel %vm889, %v1037, 0.0
        %v1088 = vadd.f32 %v1086, %v1087
        %v1089 = vsel %vm889, %v1038, 0.0
        %v1090 = vadd.f32 %v1088, %v1089
        %v1091 = vsel %vm889, %v1039, 0.0
        %v1092 = vadd.f32 %v1090, %v1091
        %v1093 = vsel %vm889, %v1040, 0.0
        %v1094 = vadd.f32 %v1092, %v1093
        %v1095 = vsel %vm889, %v1041, 0.0
        %v1096 = vadd.f32 %v1094, %v1095
        %v1097 = vsel %vm889, %v1042, 0.0
        %v1098 = vadd.f32 %v1096, %v1097
        %v1099 = vsel %vm889, %v1043, 0.0
        %v1100 = vadd.f32 %v1098, %v1099
        %v1101 = vsel %vm889, %v1044, 0.0
        %v1102 = vadd.f32 %v1100, %v1101
        %v1103 = vsel %vm889, %v1045, 0.0
        %v1104 = vadd.f32 %v1102, %v1103
        %v1105 = vsel %vm889, %v1046, 0.0
        %v1106 = vadd.f32 %v1104, %v1105
        %v1107 = vsel %vm889, %v1047, 0.0
        %v1108 = vadd.f32 %v1106, %v1107
        %v1109 = vsel %vm889, %v1048, 0.0
        %v1110 = vadd.f32 %v1108, %v1109
        %v1111 = vsel %vm889, %v1049, 0.0
        %v1112 = vadd.f32 %v1110, %v1111
        %v1113 = vrot.slane %v1112, 4
        %v1114 = vadd.f32 %v1112, %v1113
        %v1115 = vrot.slane %v1114, 2
        %v1116 = vadd.f32 %v1114, %v1115
        %v1117 = vrot.slane %v1116, 1
        %v1118 = vadd.f32 %v1116, %v1117
        %v1119 = vrsqrt.pop %v1118
        %v1120 = vmul.f32 %v1119, %v1118
        %v1121 = vmul.f32 %v1120, %v1119
        %v1122 = vmul.f32 0.5, %v1121
        %v1123 = vsub.f32 1.5, %v1122
        %v1124 = vmul.f32 %v1119, %v1123
        %v1125 = vmul.f32 %v1118, %v1124
        %vm1126 = vcmp.eq.f32.partialorder %v1118, inf
        %v1127 = vsel %vm1126, %v1118, %v1125
        %vm1128 = vcmp.eq.f32.partialorder %v1118, 0.0
        %v1129 = vand.u32 %v1118, 2147483648
        %v1130 = vsel %vm1128, %v1129, %v1127
        %v1131 = vmax.f32 %v1130, 1e-12
        %v1132 = vrcp.pop %v1131
        %v1133 = vmul.f32 %v1131, %v1132
        %v1134 = vsub.f32 1.0, %v1133
        %v1135 = vmul.f32 %v1132, %v1134
        %v1136 = vadd.f32 %v1132, %v1135
        %vm1137 = vweird.f32 %v1131
        %vm1138 = vweird.f32 %v1132
        %vm1139 = vmor %vm1137, %vm1138
        %v1140 = vsel %vm1139, %v1132, %v1136
        %v1141 = vand.u32 2147483647, %v1131
        %vm1142 = vcmp.eq.f32.partialorder %v1141, 8.507059e+37
        %v1143 = vand.u32 %v1131, 2147483648
        %v1144 = vor.u32 1.1754944e-38, %v1143
        %v1145 = vsel %vm1142, %v1144, %v1140
        %v1146 = vmul.f32 %v609, %v1145
        %v1147 = vmul.f32 %v612, %v1145
        %v1148 = vmul.f32 %v615, %v1145
        %v1149 = vmul.f32 %v618, %v1145
        %v1150 = vmul.f32 %v621, %v1145
        %v1151 = vmul.f32 %v624, %v1145
        %v1152 = vmul.f32 %v627, %v1145
        %v1153 = vmul.f32 %v630, %v1145
        %v1154 = vmul.f32 %v633, %v1145
        %v1155 = vmul.f32 %v636, %v1145
        %v1156 = vmul.f32 %v639, %v1145
        %v1157 = vmul.f32 %v642, %v1145
        %v1158 = vmul.f32 %v645, %v1145
        %v1159 = vmul.f32 %v648, %v1145
        %v1160 = vmul.f32 %v651, %v1145
        %v1161 = vmul.f32 %v654, %v1145
        %v1162 = vmul.f32 %v657, %v1145
        %v1163 = vmul.f32 %v660, %v1145
        %v1164 = vmul.f32 %v663, %v1145
        %v1165 = vmul.f32 %v666, %v1145
        %v1166 = vmul.f32 %v669, %v1145
        %v1167 = vmul.f32 %v672, %v1145
        %v1168 = vmul.f32 %v675, %v1145
        %v1169 = vmul.f32 %v678, %v1145
        %v1170 = vmul.f32 %v681, %v1145
        %v1171 = vmul.f32 %v684, %v1145
        %v1172 = vmul.f32 %v687, %v1145
        %v1173 = vmul.f32 %v690, %v1145
        %v1174 = vmul.f32 %v693, %v1145
        %v1175 = vmul.f32 %v696, %v1145
        %v1176 = vmul.f32 %v699, %v1145
        %v1177 = vmul.f32 %v702, %v1145
        %1178 = vxpose.xlu0.b32.start [1/16] %v1146, 128
        %1179 = vxpose.xlu0.b32.cont [2/16] %v1147, 128
        %1180 = vxpose.xlu0.b32.cont [3/16] %v1148, 128
        %1181 = vxpose.xlu0.b32.cont [4/16] %v1149, 128
        %1182 = vxpose.xlu0.b32.cont [5/16] %v1150, 128
        %1183 = vxpose.xlu0.b32.cont [6/16] %v1151, 128
        %1184 = vxpose.xlu0.b32.cont [7/16] %v1152, 128
        %1185 = vxpose.xlu0.b32.cont [8/16] %v1153, 128
        %1186 = vxpose.xlu0.b32.cont [9/16] %v1154, 128
        %1187 = vxpose.xlu0.b32.cont [10/16] %v1155, 128
        %1188 = vxpose.xlu0.b32.cont [11/16] %v1156, 128
        %1189 = vxpose.xlu0.b32.cont [12/16] %v1157, 128
        %1190 = vxpose.xlu0.b32.cont [13/16] %v1158, 128
        %1191 = vxpose.xlu0.b32.cont [14/16] %v1159, 128
        %1192 = vxpose.xlu0.b32.cont [15/16] %v1160, 128
        %1193 = vxpose.xlu0.b32.end [16/16] %v1161, 128
        %v1194 = vpop.trf.xlu0
        %v1195 = vpop.trf.xlu0
        %v1196 = vpop.trf.xlu0
        %v1197 = vpop.trf.xlu0
        %v1198 = vpop.trf.xlu0
        %v1199 = vpop.trf.xlu0
        %v1200 = vpop.trf.xlu0
        %v1201 = vpop.trf.xlu0
        %v1202 = vpop.trf.xlu0
        %v1203 = vpop.trf.xlu0
        %v1204 = vpop.trf.xlu0
        %v1205 = vpop.trf.xlu0
        %v1206 = vpop.trf.xlu0
        %v1207 = vpop.trf.xlu0
        %v1208 = vpop.trf.xlu0
        %v1209 = vpop.trf.xlu0
        %1210 = vxpose.xlu0.b32.start [1/16] %v1162, 128
        %1211 = vxpose.xlu0.b32.cont [2/16] %v1163, 128
        %1212 = vxpose.xlu0.b32.cont [3/16] %v1164, 128
        %1213 = vxpose.xlu0.b32.cont [4/16] %v1165, 128
        %1214 = vxpose.xlu0.b32.cont [5/16] %v1166, 128
        %1215 = vxpose.xlu0.b32.cont [6/16] %v1167, 128
        %1216 = vxpose.xlu0.b32.cont [7/16] %v1168, 128
        %1217 = vxpose.xlu0.b32.cont [8/16] %v1169, 128
        %1218 = vxpose.xlu0.b32.cont [9/16] %v1170, 128
        %1219 = vxpose.xlu0.b32.cont [10/16] %v1171, 128
        %1220 = vxpose.xlu0.b32.cont [11/16] %v1172, 128
        %1221 = vxpose.xlu0.b32.cont [12/16] %v1173, 128
        %1222 = vxpose.xlu0.b32.cont [13/16] %v1174, 128
        %1223 = vxpose.xlu0.b32.cont [14/16] %v1175, 128
        %1224 = vxpose.xlu0.b32.cont [15/16] %v1176, 128
        %1225 = vxpose.xlu0.b32.end [16/16] %v1177, 128
        %v1226 = vpop.trf.xlu0
        %v1227 = vpop.trf.xlu0
        %v1228 = vpop.trf.xlu0
        %v1229 = vpop.trf.xlu0
        %v1230 = vpop.trf.xlu0
        %v1231 = vpop.trf.xlu0
        %v1232 = vpop.trf.xlu0
        %v1233 = vpop.trf.xlu0
        %v1234 = vpop.trf.xlu0
        %v1235 = vpop.trf.xlu0
        %v1236 = vpop.trf.xlu0
        %v1237 = vpop.trf.xlu0
        %v1238 = vpop.trf.xlu0
        %v1239 = vpop.trf.xlu0
        %v1240 = vpop.trf.xlu0
        %v1241 = vpop.trf.xlu0
        %1242 = vmatpush.msra.mxu0 %v1001
        %1243 = vmatpush.msra.mxu0 %v1000
        %1244 = vmatpush.msra.mxu0 %v999
        %1245 = vmatpush.msra.mxu0 %v998
        %1246 = vmatpush.msra.mxu0 %v997
        %1247 = vmatpush.msra.mxu0 %v996
        %1248 = vmatpush.msra.mxu0 %v995
        %1249 = vmatpush.msra.mxu0 %v994
        %1250 = vmatpush.msra.mxu0 %v993
        %1251 = vmatpush.msra.mxu0 %v992
        %1252 = vmatpush.msra.mxu0 %v991
        %1253 = vmatpush.msra.mxu0 %v990
        %1254 = vmatpush.msra.mxu0 %v989
        %1255 = vmatpush.msra.mxu0 %v988
        %1256 = vmatpush.msra.mxu0 %v987
        %1257 = vmatpush.msra.mxu0 %v986
        %1258 = vmatmul.f32.gmra.mxu0 %v1194
        %v1259 = vpop.f32.mrf.mxu0
        %v1260 = vadd.f32 0.0, %v1259
        %1261 = vmatmul.f32.gmra.mxu0 %v1195
        %v1262 = vpop.f32.mrf.mxu0
        %v1263 = vadd.f32 0.0, %v1262
        %1264 = vdwg.mxu0
        %1265 = vmatpush.msra.mxu0 %v1017
        %1266 = vmatpush.msra.mxu0 %v1016
        %1267 = vmatpush.msra.mxu0 %v1015
        %1268 = vmatpush.msra.mxu0 %v1014
        %1269 = vmatpush.msra.mxu0 %v1013
        %1270 = vmatpush.msra.mxu0 %v1012
        %1271 = vmatpush.msra.mxu0 %v1011
        %1272 = vmatpush.msra.mxu0 %v1010
        %1273 = vmatpush.msra.mxu0 %v1009
        %1274 = vmatpush.msra.mxu0 %v1008
        %1275 = vmatpush.msra.mxu0 %v1007
        %1276 = vmatpush.msra.mxu0 %v1006
        %1277 = vmatpush.msra.mxu0 %v1005
        %1278 = vmatpush.msra.mxu0 %v1004
        %1279 = vmatpush.msra.mxu0 %v1003
        %1280 = vmatpush.msra.mxu0 %v1002
        %1281 = vmatmul.f32.gmra.mxu0 %v1226
        %v1282 = vpop.f32.mrf.mxu0
        %v1283 = vadd.f32 %v1260, %v1282
        %1284 = vmatmul.f32.gmra.mxu0 %v1227
        %v1285 = vpop.f32.mrf.mxu0
        %v1286 = vadd.f32 %v1263, %v1285
        %1287 = vdwg.mxu0
        %s1288 = sld [smem:[#allocation2]]
        %v1289 = vstv %s1288
        %v1290 = vmul.f32 %v1283, %v1289
        %v1291 = vmul.f32 %v1286, %v1289
        %v1292 = vsel %vm889, %v1290, -inf
        %1293 = vmax.xlane.f32.xlu0 %v1292
        %v1294 = vpop.xlane.xlu0 %1293
        %v1295 = vsel %vm889, %v1291, -inf
        %1296 = vmax.xlane.f32.xlu0 %v1295
        %v1297 = vpop.xlane.xlu0 %1296
        %v1298 = vsub.f32 %v1290, %v1294
        %v1299 = vsub.f32 %v1291, %v1297
        %v1300 = vmul.f32 %v1298, 1.442695
        %v1301 = vpow.pop %v1300
        %v1302 = vmul.f32 %v1299, 1.442695
        %v1303 = vpow.pop %v1302
        %v1304 = vsel %vm889, %v1301, 0.0
        %1305 = vadd.xlane.f32.xlu0 %v1304
        %v1306 = vpop.xlane.xlu0 %1305
        %v1307 = vsel %vm889, %v1303, 0.0
        %1308 = vadd.xlane.f32.xlu0 %v1307
        %v1309 = vpop.xlane.xlu0 %1308
        %v1310 = vrcp.pop %v1306
        %v1311 = vmul.f32 %v1306, %v1310
        %v1312 = vsub.f32 1.0, %v1311
        %v1313 = vmul.f32 %v1310, %v1312
        %v1314 = vadd.f32 %v1310, %v1313
        %vm1315 = vweird.f32 %v1306
        %vm1316 = vweird.f32 %v1310
        %vm1317 = vmor %vm1315, %vm1316
        %v1318 = vsel %vm1317, %v1310, %v1314
        %v1319 = vand.u32 2147483647, %v1306
        %vm1320 = vcmp.eq.f32.partialorder %v1319, 8.507059e+37
        %v1321 = vand.u32 %v1306, 2147483648
        %v1322 = vor.u32 1.1754944e-38, %v1321
        %v1323 = vsel %vm1320, %v1322, %v1318
        %v1324 = vmul.f32 %v1301, %v1323
        %v1325 = vrcp.pop %v1309
        %v1326 = vmul.f32 %v1309, %v1325
        %v1327 = vsub.f32 1.0, %v1326
        %v1328 = vmul.f32 %v1325, %v1327
        %v1329 = vadd.f32 %v1325, %v1328
        %vm1330 = vweird.f32 %v1309
        %vm1331 = vweird.f32 %v1325
        %vm1332 = vmor %vm1330, %vm1331
        %v1333 = vsel %vm1332, %v1325, %v1329
        %v1334 = vand.u32 2147483647, %v1309
        %vm1335 = vcmp.eq.f32.partialorder %v1334, 8.507059e+37
        %v1336 = vand.u32 %v1309, 2147483648
        %v1337 = vor.u32 1.1754944e-38, %v1336
        %v1338 = vsel %vm1335, %v1337, %v1333
        %v1339 = vmul.f32 %v1303, %v1338
        %v1341 = vsel %vm889, %v730, 0
        %v1344 = vsel %vm889, %v733, 0
        %v1347 = vsel %vm889, %v736, 0
        %v1350 = vsel %vm889, %v739, 0
        %v1353 = vsel %vm889, %v742, 0
        %v1356 = vsel %vm889, %v745, 0
        %v1359 = vsel %vm889, %v748, 0
        %v1362 = vsel %vm889, %v751, 0
        %v1365 = vsel %vm889, %v754, 0
        %v1368 = vsel %vm889, %v757, 0
        %v1371 = vsel %vm889, %v760, 0
        %v1374 = vsel %vm889, %v763, 0
        %v1377 = vsel %vm889, %v766, 0
        %v1380 = vsel %vm889, %v769, 0
        %v1383 = vsel %vm889, %v772, 0
        %v1386 = vsel %vm889, %v775, 0
        %v1389 = vsel %vm889, %v778, 0
        %v1392 = vsel %vm889, %v781, 0
        %v1395 = vsel %vm889, %v784, 0
        %v1398 = vsel %vm889, %v787, 0
        %v1401 = vsel %vm889, %v790, 0
        %v1404 = vsel %vm889, %v793, 0
        %v1407 = vsel %vm889, %v796, 0
        %v1410 = vsel %vm889, %v799, 0
        %v1413 = vsel %vm889, %v802, 0
        %v1416 = vsel %vm889, %v805, 0
        %v1419 = vsel %vm889, %v808, 0
        %v1422 = vsel %vm889, %v811, 0
        %v1425 = vsel %vm889, %v814, 0
        %v1428 = vsel %vm889, %v817, 0
        %v1431 = vsel %vm889, %v820, 0
        %v1434 = vsel %vm889, %v823, 0
        %v1437 = vsel %vm889, %v1324, 0
        %v1440 = vsel %vm889, %v1339, 0
        %1442 = vmatpush.xpose.msra.mxu0 0.0
        %1443 = vmatpush.xpose.msra.mxu0 0.0
        %1444 = vmatpush.xpose.msra.mxu0 0.0
        %1445 = vmatpush.xpose.msra.mxu0 0.0
        %1446 = vmatpush.xpose.msra.mxu0 0.0
        %1447 = vmatpush.xpose.msra.mxu0 0.0
        %1448 = vmatpush.xpose.msra.mxu0 0.0
        %1449 = vmatpush.xpose.msra.mxu0 0.0
        %1450 = vmatpush.xpose.msra.mxu0 0.0
        %1451 = vmatpush.xpose.msra.mxu0 0.0
        %1452 = vmatpush.xpose.msra.mxu0 0.0
        %1453 = vmatpush.xpose.msra.mxu0 0.0
        %1454 = vmatpush.xpose.msra.mxu0 0.0
        %1455 = vmatpush.xpose.msra.mxu0 0.0
        %1456 = vmatpush.xpose.msra.mxu0 %v1440
        %1457 = vmatpush.xpose.msra.mxu0 %v1437
        %1458 = vmatmul.f32.gmra.mxu0 %v1341
        %v1459 = vpop.f32.mrf.mxu0
        %v1460 = vadd.f32 0.0, %v1459
        %1461 = vmatmul.f32.gmra.mxu0 %v1344
        %v1462 = vpop.f32.mrf.mxu0
        %v1463 = vadd.f32 0.0, %v1462
        %1464 = vmatmul.f32.gmra.mxu0 %v1347
        %v1465 = vpop.f32.mrf.mxu0
        %v1466 = vadd.f32 0.0, %v1465
        %1467 = vmatmul.f32.gmra.mxu0 %v1350
        %v1468 = vpop.f32.mrf.mxu0
        %v1469 = vadd.f32 0.0, %v1468
        %1470 = vmatmul.f32.gmra.mxu0 %v1353
        %v1471 = vpop.f32.mrf.mxu0
        %v1472 = vadd.f32 0.0, %v1471
        %1473 = vmatmul.f32.gmra.mxu0 %v1356
        %v1474 = vpop.f32.mrf.mxu0
        %v1475 = vadd.f32 0.0, %v1474
        %1476 = vmatmul.f32.gmra.mxu0 %v1359
        %v1477 = vpop.f32.mrf.mxu0
        %v1478 = vadd.f32 0.0, %v1477
        %1479 = vmatmul.f32.gmra.mxu0 %v1362
        %v1480 = vpop.f32.mrf.mxu0
        %v1481 = vadd.f32 0.0, %v1480
        %1482 = vmatmul.f32.gmra.mxu0 %v1365
        %v1483 = vpop.f32.mrf.mxu0
        %v1484 = vadd.f32 0.0, %v1483
        %1485 = vmatmul.f32.gmra.mxu0 %v1368
        %v1486 = vpop.f32.mrf.mxu0
        %v1487 = vadd.f32 0.0, %v1486
        %1488 = vmatmul.f32.gmra.mxu0 %v1371
        %v1489 = vpop.f32.mrf.mxu0
        %v1490 = vadd.f32 0.0, %v1489
        %1491 = vmatmul.f32.gmra.mxu0 %v1374
        %v1492 = vpop.f32.mrf.mxu0
        %v1493 = vadd.f32 0.0, %v1492
        %1494 = vmatmul.f32.gmra.mxu0 %v1377
        %v1495 = vpop.f32.mrf.mxu0
        %v1496 = vadd.f32 0.0, %v1495
        %1497 = vmatmul.f32.gmra.mxu0 %v1380
        %v1498 = vpop.f32.mrf.mxu0
        %v1499 = vadd.f32 0.0, %v1498
        %1500 = vmatmul.f32.gmra.mxu0 %v1383
        %v1501 = vpop.f32.mrf.mxu0
        %v1502 = vadd.f32 0.0, %v1501
        %1503 = vmatmul.f32.gmra.mxu0 %v1386
        %v1504 = vpop.f32.mrf.mxu0
        %v1505 = vadd.f32 0.0, %v1504
        %1506 = vmatmul.f32.gmra.mxu0 %v1389
        %v1507 = vpop.f32.mrf.mxu0
        %v1508 = vadd.f32 0.0, %v1507
        %1509 = vmatmul.f32.gmra.mxu0 %v1392
        %v1510 = vpop.f32.mrf.mxu0
        %v1511 = vadd.f32 0.0, %v1510
        %1512 = vmatmul.f32.gmra.mxu0 %v1395
        %v1513 = vpop.f32.mrf.mxu0
        %v1514 = vadd.f32 0.0, %v1513
        %1515 = vmatmul.f32.gmra.mxu0 %v1398
        %v1516 = vpop.f32.mrf.mxu0
        %v1517 = vadd.f32 0.0, %v1516
        %1518 = vmatmul.f32.gmra.mxu0 %v1401
        %v1519 = vpop.f32.mrf.mxu0
        %v1520 = vadd.f32 0.0, %v1519
        %1521 = vmatmul.f32.gmra.mxu0 %v1404
        %v1522 = vpop.f32.mrf.mxu0
        %v1523 = vadd.f32 0.0, %v1522
        %1524 = vmatmul.f32.gmra.mxu0 %v1407
        %v1525 = vpop.f32.mrf.mxu0
        %v1526 = vadd.f32 0.0, %v1525
        %1527 = vmatmul.f32.gmra.mxu0 %v1410
        %v1528 = vpop.f32.mrf.mxu0
        %v1529 = vadd.f32 0.0, %v1528
        %1530 = vmatmul.f32.gmra.mxu0 %v1413
        %v1531 = vpop.f32.mrf.mxu0
        %v1532 = vadd.f32 0.0, %v1531
        %1533 = vmatmul.f32.gmra.mxu0 %v1416
        %v1534 = vpop.f32.mrf.mxu0
        %v1535 = vadd.f32 0.0, %v1534
        %1536 = vmatmul.f32.gmra.mxu0 %v1419
        %v1537 = vpop.f32.mrf.mxu0
        %v1538 = vadd.f32 0.0, %v1537
        %1539 = vmatmul.f32.gmra.mxu0 %v1422
        %v1540 = vpop.f32.mrf.mxu0
        %v1541 = vadd.f32 0.0, %v1540
        %1542 = vmatmul.f32.gmra.mxu0 %v1425
        %v1543 = vpop.f32.mrf.mxu0
        %v1544 = vadd.f32 0.0, %v1543
        %1545 = vmatmul.f32.gmra.mxu0 %v1428
        %v1546 = vpop.f32.mrf.mxu0
        %v1547 = vadd.f32 0.0, %v1546
        %1548 = vmatmul.f32.gmra.mxu0 %v1431
        %v1549 = vpop.f32.mrf.mxu0
        %v1550 = vadd.f32 0.0, %v1549
        %1551 = vmatmul.f32.gmra.mxu0 %v1434
        %v1552 = vpop.f32.mrf.mxu0
        %v1553 = vadd.f32 0.0, %v1552
        %1554 = vdwg.mxu0
        %vm1555 = vcmask 261248
        %v1556 = vsel %vm1555, %v857, 0.0
        %v1557 = vsel %vm1555, %v858, 0.0
        %v1558 = vadd.f32 %v1556, %v1557
        %v1559 = vsel %vm1555, %v859, 0.0
        %v1560 = vadd.f32 %v1558, %v1559
        %v1561 = vsel %vm1555, %v860, 0.0
        %v1562 = vadd.f32 %v1560, %v1561
        %v1563 = vsel %vm1555, %v861, 0.0
        %v1564 = vadd.f32 %v1562, %v1563
        %v1565 = vsel %vm1555, %v862, 0.0
        %v1566 = vadd.f32 %v1564, %v1565
        %v1567 = vsel %vm1555, %v863, 0.0
        %v1568 = vadd.f32 %v1566, %v1567
        %v1569 = vsel %vm1555, %v864, 0.0
        %v1570 = vadd.f32 %v1568, %v1569
        %v1571 = vsel %vm1555, %v865, 0.0
        %v1572 = vadd.f32 %v1570, %v1571
        %v1573 = vsel %vm1555, %v866, 0.0
        %v1574 = vadd.f32 %v1572, %v1573
        %v1575 = vsel %vm1555, %v867, 0.0
        %v1576 = vadd.f32 %v1574, %v1575
        %v1577 = vsel %vm1555, %v868, 0.0
        %v1578 = vadd.f32 %v1576, %v1577
        %v1579 = vsel %vm1555, %v869, 0.0
        %v1580 = vadd.f32 %v1578, %v1579
        %v1581 = vsel %vm1555, %v870, 0.0
        %v1582 = vadd.f32 %v1580, %v1581
        %v1583 = vsel %vm1555, %v871, 0.0
        %v1584 = vadd.f32 %v1582, %v1583
        %v1585 = vsel %vm1555, %v872, 0.0
        %v1586 = vadd.f32 %v1584, %v1585
        %v1587 = vsel %vm1555, %v873, 0.0
        %v1588 = vadd.f32 %v1586, %v1587
        %v1589 = vsel %vm1555, %v874, 0.0
        %v1590 = vadd.f32 %v1588, %v1589
        %v1591 = vsel %vm1555, %v875, 0.0
        %v1592 = vadd.f32 %v1590, %v1591
        %v1593 = vsel %vm1555, %v876, 0.0
        %v1594 = vadd.f32 %v1592, %v1593
        %v1595 = vsel %vm1555, %v877, 0.0
        %v1596 = vadd.f32 %v1594, %v1595
        %v1597 = vsel %vm1555, %v878, 0.0
        %v1598 = vadd.f32 %v1596, %v1597
        %v1599 = vsel %vm1555, %v879, 0.0
        %v1600 = vadd.f32 %v1598, %v1599
        %v1601 = vsel %vm1555, %v880, 0.0
        %v1602 = vadd.f32 %v1600, %v1601
        %v1603 = vsel %vm1555, %v881, 0.0
        %v1604 = vadd.f32 %v1602, %v1603
        %v1605 = vsel %vm1555, %v882, 0.0
        %v1606 = vadd.f32 %v1604, %v1605
        %v1607 = vsel %vm1555, %v883, 0.0
        %v1608 = vadd.f32 %v1606, %v1607
        %v1609 = vsel %vm1555, %v884, 0.0
        %v1610 = vadd.f32 %v1608, %v1609
        %v1611 = vsel %vm1555, %v885, 0.0
        %v1612 = vadd.f32 %v1610, %v1611
        %v1613 = vsel %vm1555, %v886, 0.0
        %v1614 = vadd.f32 %v1612, %v1613
        %v1615 = vsel %vm1555, %v887, 0.0
        %v1616 = vadd.f32 %v1614, %v1615
        %v1617 = vsel %vm1555, %v888, 0.0
        %v1618 = vadd.f32 %v1616, %v1617
        %v1619 = vrot.slane %v1618, 4
        %v1620 = vadd.f32 %v1618, %v1619
        %v1621 = vrot.slane %v1620, 2
        %v1622 = vadd.f32 %v1620, %v1621
        %v1623 = vrot.slane %v1622, 1
        %v1624 = vadd.f32 %v1622, %v1623
        %v1625 = vrsqrt.pop %v1624
        %v1626 = vmul.f32 %v1625, %v1624
        %v1627 = vmul.f32 %v1626, %v1625
        %v1628 = vmul.f32 0.5, %v1627
        %v1629 = vsub.f32 1.5, %v1628
        %v1630 = vmul.f32 %v1625, %v1629
        %v1631 = vmul.f32 %v1624, %v1630
        %vm1632 = vcmp.eq.f32.partialorder %v1624, inf
        %v1633 = vsel %vm1632, %v1624, %v1631
        %vm1634 = vcmp.eq.f32.partialorder %v1624, 0.0
        %v1635 = vand.u32 %v1624, 2147483648
        %v1636 = vsel %vm1634, %v1635, %v1633
        %v1637 = vmax.f32 %v1636, 1e-12
        %v1638 = vrcp.pop %v1637
        %v1639 = vmul.f32 %v1637, %v1638
        %v1640 = vsub.f32 1.0, %v1639
        %v1641 = vmul.f32 %v1638, %v1640
        %v1642 = vadd.f32 %v1638, %v1641
        %vm1643 = vweird.f32 %v1637
        %vm1644 = vweird.f32 %v1638
        %vm1645 = vmor %vm1643, %vm1644
        %v1646 = vsel %vm1645, %v1638, %v1642
        %v1647 = vand.u32 2147483647, %v1637
        %vm1648 = vcmp.eq.f32.partialorder %v1647, 8.507059e+37
        %v1649 = vand.u32 %v1637, 2147483648
        %v1650 = vor.u32 1.1754944e-38, %v1649
        %v1651 = vsel %vm1648, %v1650, %v1646
        %v1652 = vmul.f32 %v488, %v1651
        %v1653 = vmul.f32 %v491, %v1651
        %v1654 = vmul.f32 %v494, %v1651
        %v1655 = vmul.f32 %v497, %v1651
        %v1656 = vmul.f32 %v500, %v1651
        %v1657 = vmul.f32 %v503, %v1651
        %v1658 = vmul.f32 %v506, %v1651
        %v1659 = vmul.f32 %v509, %v1651
        %v1660 = vmul.f32 %v512, %v1651
        %v1661 = vmul.f32 %v515, %v1651
        %v1662 = vmul.f32 %v518, %v1651
        %v1663 = vmul.f32 %v521, %v1651
        %v1664 = vmul.f32 %v524, %v1651
        %v1665 = vmul.f32 %v527, %v1651
        %v1666 = vmul.f32 %v530, %v1651
        %v1667 = vmul.f32 %v533, %v1651
        %v1668 = vmul.f32 %v536, %v1651
        %v1669 = vmul.f32 %v539, %v1651
        %v1670 = vmul.f32 %v542, %v1651
        %v1671 = vmul.f32 %v545, %v1651
        %v1672 = vmul.f32 %v548, %v1651
        %v1673 = vmul.f32 %v551, %v1651
        %v1674 = vmul.f32 %v554, %v1651
        %v1675 = vmul.f32 %v557, %v1651
        %v1676 = vmul.f32 %v560, %v1651
        %v1677 = vmul.f32 %v563, %v1651
        %v1678 = vmul.f32 %v566, %v1651
        %v1679 = vmul.f32 %v569, %v1651
        %v1680 = vmul.f32 %v572, %v1651
        %v1681 = vmul.f32 %v575, %v1651
        %v1682 = vmul.f32 %v578, %v1651
        %v1683 = vmul.f32 %v581, %v1651
        %v1684 = vsel %vm1555, %v1018, 0.0
        %v1685 = vsel %vm1555, %v1019, 0.0
        %v1686 = vadd.f32 %v1684, %v1685
        %v1687 = vsel %vm1555, %v1020, 0.0
        %v1688 = vadd.f32 %v1686, %v1687
        %v1689 = vsel %vm1555, %v1021, 0.0
        %v1690 = vadd.f32 %v1688, %v1689
        %v1691 = vsel %vm1555, %v1022, 0.0
        %v1692 = vadd.f32 %v1690, %v1691
        %v1693 = vsel %vm1555, %v1023, 0.0
        %v1694 = vadd.f32 %v1692, %v1693
        %v1695 = vsel %vm1555, %v1024, 0.0
        %v1696 = vadd.f32 %v1694, %v1695
        %v1697 = vsel %vm1555, %v1025, 0.0
        %v1698 = vadd.f32 %v1696, %v1697
        %v1699 = vsel %vm1555, %v1026, 0.0
        %v1700 = vadd.f32 %v1698, %v1699
        %v1701 = vsel %vm1555, %v1027, 0.0
        %v1702 = vadd.f32 %v1700, %v1701
        %v1703 = vsel %vm1555, %v1028, 0.0
        %v1704 = vadd.f32 %v1702, %v1703
        %v1705 = vsel %vm1555, %v1029, 0.0
        %v1706 = vadd.f32 %v1704, %v1705
        %v1707 = vsel %vm1555, %v1030, 0.0
        %v1708 = vadd.f32 %v1706, %v1707
        %v1709 = vsel %vm1555, %v1031, 0.0
        %v1710 = vadd.f32 %v1708, %v1709
        %v1711 = vsel %vm1555, %v1032, 0.0
        %v1712 = vadd.f32 %v1710, %v1711
        %v1713 = vsel %vm1555, %v1033, 0.0
        %v1714 = vadd.f32 %v1712, %v1713
        %v1715 = vsel %vm1555, %v1034, 0.0
        %v1716 = vadd.f32 %v1714, %v1715
        %v1717 = vsel %vm1555, %v1035, 0.0
        %v1718 = vadd.f32 %v1716, %v1717
        %v1719 = vsel %vm1555, %v1036, 0.0
        %v1720 = vadd.f32 %v1718, %v1719
        %v1721 = vsel %vm1555, %v1037, 0.0
        %v1722 = vadd.f32 %v1720, %v1721
        %v1723 = vsel %vm1555, %v1038, 0.0
        %v1724 = vadd.f32 %v1722, %v1723
        %v1725 = vsel %vm1555, %v1039, 0.0
        %v1726 = vadd.f32 %v1724, %v1725
        %v1727 = vsel %vm1555, %v1040, 0.0
        %v1728 = vadd.f32 %v1726, %v1727
        %v1729 = vsel %vm1555, %v1041, 0.0
        %v1730 = vadd.f32 %v1728, %v1729
        %v1731 = vsel %vm1555, %v1042, 0.0
        %v1732 = vadd.f32 %v1730, %v1731
        %v1733 = vsel %vm1555, %v1043, 0.0
        %v1734 = vadd.f32 %v1732, %v1733
        %v1735 = vsel %vm1555, %v1044, 0.0
        %v1736 = vadd.f32 %v1734, %v1735
        %v1737 = vsel %vm1555, %v1045, 0.0
        %v1738 = vadd.f32 %v1736, %v1737
        %v1739 = vsel %vm1555, %v1046, 0.0
        %v1740 = vadd.f32 %v1738, %v1739
        %v1741 = vsel %vm1555, %v1047, 0.0
        %v1742 = vadd.f32 %v1740, %v1741
        %v1743 = vsel %vm1555, %v1048, 0.0
        %v1744 = vadd.f32 %v1742, %v1743
        %v1745 = vsel %vm1555, %v1049, 0.0
        %v1746 = vadd.f32 %v1744, %v1745
        %v1747 = vrot.slane %v1746, 4
        %v1748 = vadd.f32 %v1746, %v1747
        %v1749 = vrot.slane %v1748, 2
        %v1750 = vadd.f32 %v1748, %v1749
        %v1751 = vrot.slane %v1750, 1
        %v1752 = vadd.f32 %v1750, %v1751
        %v1753 = vrsqrt.pop %v1752
        %v1754 = vmul.f32 %v1753, %v1752
        %v1755 = vmul.f32 %v1754, %v1753
        %v1756 = vmul.f32 0.5, %v1755
        %v1757 = vsub.f32 1.5, %v1756
        %v1758 = vmul.f32 %v1753, %v1757
        %v1759 = vmul.f32 %v1752, %v1758
        %vm1760 = vcmp.eq.f32.partialorder %v1752, inf
        %v1761 = vsel %vm1760, %v1752, %v1759
        %vm1762 = vcmp.eq.f32.partialorder %v1752, 0.0
        %v1763 = vand.u32 %v1752, 2147483648
        %v1764 = vsel %vm1762, %v1763, %v1761
        %v1765 = vmax.f32 %v1764, 1e-12
        %v1766 = vrcp.pop %v1765
        %v1767 = vmul.f32 %v1765, %v1766
        %v1768 = vsub.f32 1.0, %v1767
        %v1769 = vmul.f32 %v1766, %v1768
        %v1770 = vadd.f32 %v1766, %v1769
        %vm1771 = vweird.f32 %v1765
        %vm1772 = vweird.f32 %v1766
        %vm1773 = vmor %vm1771, %vm1772
        %v1774 = vsel %vm1773, %v1766, %v1770
        %v1775 = vand.u32 2147483647, %v1765
        %vm1776 = vcmp.eq.f32.partialorder %v1775, 8.507059e+37
        %v1777 = vand.u32 %v1765, 2147483648
        %v1778 = vor.u32 1.1754944e-38, %v1777
        %v1779 = vsel %vm1776, %v1778, %v1774
        %v1780 = vmul.f32 %v609, %v1779
        %v1781 = vmul.f32 %v612, %v1779
        %v1782 = vmul.f32 %v615, %v1779
        %v1783 = vmul.f32 %v618, %v1779
        %v1784 = vmul.f32 %v621, %v1779
        %v1785 = vmul.f32 %v624, %v1779
        %v1786 = vmul.f32 %v627, %v1779
        %v1787 = vmul.f32 %v630, %v1779
        %v1788 = vmul.f32 %v633, %v1779
        %v1789 = vmul.f32 %v636, %v1779
        %v1790 = vmul.f32 %v639, %v1779
        %v1791 = vmul.f32 %v642, %v1779
        %v1792 = vmul.f32 %v645, %v1779
        %v1793 = vmul.f32 %v648, %v1779
        %v1794 = vmul.f32 %v651, %v1779
        %v1795 = vmul.f32 %v654, %v1779
        %v1796 = vmul.f32 %v657, %v1779
        %v1797 = vmul.f32 %v660, %v1779
        %v1798 = vmul.f32 %v663, %v1779
        %v1799 = vmul.f32 %v666, %v1779
        %v1800 = vmul.f32 %v669, %v1779
        %v1801 = vmul.f32 %v672, %v1779
        %v1802 = vmul.f32 %v675, %v1779
        %v1803 = vmul.f32 %v678, %v1779
        %v1804 = vmul.f32 %v681, %v1779
        %v1805 = vmul.f32 %v684, %v1779
        %v1806 = vmul.f32 %v687, %v1779
        %v1807 = vmul.f32 %v690, %v1779
        %v1808 = vmul.f32 %v693, %v1779
        %v1809 = vmul.f32 %v696, %v1779
        %v1810 = vmul.f32 %v699, %v1779
        %v1811 = vmul.f32 %v702, %v1779
        %1844 = vrot.lane.b32.xlu0 %v1780, 112
        %v1845 = vpop.permute.xlu0 %1844
        %1846 = vrot.lane.b32.xlu0 %v1781, 112
        %v1847 = vpop.permute.xlu0 %1846
        %1848 = vrot.lane.b32.xlu0 %v1782, 112
        %v1849 = vpop.permute.xlu0 %1848
        %1850 = vrot.lane.b32.xlu0 %v1783, 112
        %v1851 = vpop.permute.xlu0 %1850
        %1852 = vrot.lane.b32.xlu0 %v1784, 112
        %v1853 = vpop.permute.xlu0 %1852
        %1854 = vrot.lane.b32.xlu0 %v1785, 112
        %v1855 = vpop.permute.xlu0 %1854
        %1856 = vrot.lane.b32.xlu0 %v1786, 112
        %v1857 = vpop.permute.xlu0 %1856
        %1858 = vrot.lane.b32.xlu0 %v1787, 112
        %v1859 = vpop.permute.xlu0 %1858
        %1860 = vrot.lane.b32.xlu0 %v1788, 112
        %v1861 = vpop.permute.xlu0 %1860
        %1862 = vrot.lane.b32.xlu0 %v1789, 112
        %v1863 = vpop.permute.xlu0 %1862
        %1864 = vrot.lane.b32.xlu0 %v1790, 112
        %v1865 = vpop.permute.xlu0 %1864
        %1866 = vrot.lane.b32.xlu0 %v1791, 112
        %v1867 = vpop.permute.xlu0 %1866
        %1868 = vrot.lane.b32.xlu0 %v1792, 112
        %v1869 = vpop.permute.xlu0 %1868
        %1870 = vrot.lane.b32.xlu0 %v1793, 112
        %v1871 = vpop.permute.xlu0 %1870
        %1872 = vrot.lane.b32.xlu0 %v1794, 112
        %v1873 = vpop.permute.xlu0 %1872
        %1874 = vrot.lane.b32.xlu0 %v1795, 112
        %v1875 = vpop.permute.xlu0 %1874
        %1876 = vrot.lane.b32.xlu0 %v1796, 112
        %v1877 = vpop.permute.xlu0 %1876
        %1878 = vrot.lane.b32.xlu0 %v1797, 112
        %v1879 = vpop.permute.xlu0 %1878
        %1880 = vrot.lane.b32.xlu0 %v1798, 112
        %v1881 = vpop.permute.xlu0 %1880
        %1882 = vrot.lane.b32.xlu0 %v1799, 112
        %v1883 = vpop.permute.xlu0 %1882
        %1884 = vrot.lane.b32.xlu0 %v1800, 112
        %v1885 = vpop.permute.xlu0 %1884
        %1886 = vrot.lane.b32.xlu0 %v1801, 112
        %v1887 = vpop.permute.xlu0 %1886
        %1888 = vrot.lane.b32.xlu0 %v1802, 112
        %v1889 = vpop.permute.xlu0 %1888
        %1890 = vrot.lane.b32.xlu0 %v1803, 112
        %v1891 = vpop.permute.xlu0 %1890
        %1892 = vrot.lane.b32.xlu0 %v1804, 112
        %v1893 = vpop.permute.xlu0 %1892
        %1894 = vrot.lane.b32.xlu0 %v1805, 112
        %v1895 = vpop.permute.xlu0 %1894
        %1896 = vrot.lane.b32.xlu0 %v1806, 112
        %v1897 = vpop.permute.xlu0 %1896
        %1898 = vrot.lane.b32.xlu0 %v1807, 112
        %v1899 = vpop.permute.xlu0 %1898
        %1900 = vrot.lane.b32.xlu0 %v1808, 112
        %v1901 = vpop.permute.xlu0 %1900
        %1902 = vrot.lane.b32.xlu0 %v1809, 112
        %v1903 = vpop.permute.xlu0 %1902
        %1904 = vrot.lane.b32.xlu0 %v1810, 112
        %v1905 = vpop.permute.xlu0 %1904
        %1906 = vrot.lane.b32.xlu0 %v1811, 112
        %v1907 = vpop.permute.xlu0 %1906
        %1940 = vxpose.xlu0.b32.start [1/16] %v1845, 128
        %1941 = vxpose.xlu0.b32.cont [2/16] %v1847, 128
        %1942 = vxpose.xlu0.b32.cont [3/16] %v1849, 128
        %1943 = vxpose.xlu0.b32.cont [4/16] %v1851, 128
        %1944 = vxpose.xlu0.b32.cont [5/16] %v1853, 128
        %1945 = vxpose.xlu0.b32.cont [6/16] %v1855, 128
        %1946 = vxpose.xlu0.b32.cont [7/16] %v1857, 128
        %1947 = vxpose.xlu0.b32.cont [8/16] %v1859, 128
        %1948 = vxpose.xlu0.b32.cont [9/16] %v1861, 128
        %1949 = vxpose.xlu0.b32.cont [10/16] %v1863, 128
        %1950 = vxpose.xlu0.b32.cont [11/16] %v1865, 128
        %1951 = vxpose.xlu0.b32.cont [12/16] %v1867, 128
        %1952 = vxpose.xlu0.b32.cont [13/16] %v1869, 128
        %1953 = vxpose.xlu0.b32.cont [14/16] %v1871, 128
        %1954 = vxpose.xlu0.b32.cont [15/16] %v1873, 128
        %1955 = vxpose.xlu0.b32.end [16/16] %v1875, 128
        %v1956 = vpop.trf.xlu0
        %v1957 = vpop.trf.xlu0
        %v1958 = vpop.trf.xlu0
        %v1959 = vpop.trf.xlu0
        %v1960 = vpop.trf.xlu0
        %v1961 = vpop.trf.xlu0
        %v1962 = vpop.trf.xlu0
        %v1963 = vpop.trf.xlu0
        %v1964 = vpop.trf.xlu0
        %v1965 = vpop.trf.xlu0
        %v1966 = vpop.trf.xlu0
        %v1967 = vpop.trf.xlu0
        %v1968 = vpop.trf.xlu0
        %v1969 = vpop.trf.xlu0
        %v1970 = vpop.trf.xlu0
        %v1971 = vpop.trf.xlu0
        %1972 = vxpose.xlu0.b32.start [1/16] %v1877, 128
        %1973 = vxpose.xlu0.b32.cont [2/16] %v1879, 128
        %1974 = vxpose.xlu0.b32.cont [3/16] %v1881, 128
        %1975 = vxpose.xlu0.b32.cont [4/16] %v1883, 128
        %1976 = vxpose.xlu0.b32.cont [5/16] %v1885, 128
        %1977 = vxpose.xlu0.b32.cont [6/16] %v1887, 128
        %1978 = vxpose.xlu0.b32.cont [7/16] %v1889, 128
        %1979 = vxpose.xlu0.b32.cont [8/16] %v1891, 128
        %1980 = vxpose.xlu0.b32.cont [9/16] %v1893, 128
        %1981 = vxpose.xlu0.b32.cont [10/16] %v1895, 128
        %1982 = vxpose.xlu0.b32.cont [11/16] %v1897, 128
        %1983 = vxpose.xlu0.b32.cont [12/16] %v1899, 128
        %1984 = vxpose.xlu0.b32.cont [13/16] %v1901, 128
        %1985 = vxpose.xlu0.b32.cont [14/16] %v1903, 128
        %1986 = vxpose.xlu0.b32.cont [15/16] %v1905, 128
        %1987 = vxpose.xlu0.b32.end [16/16] %v1907, 128
        %v1988 = vpop.trf.xlu0
        %v1989 = vpop.trf.xlu0
        %v1990 = vpop.trf.xlu0
        %v1991 = vpop.trf.xlu0
        %v1992 = vpop.trf.xlu0
        %v1993 = vpop.trf.xlu0
        %v1994 = vpop.trf.xlu0
        %v1995 = vpop.trf.xlu0
        %v1996 = vpop.trf.xlu0
        %v1997 = vpop.trf.xlu0
        %v1998 = vpop.trf.xlu0
        %v1999 = vpop.trf.xlu0
        %v2000 = vpop.trf.xlu0
        %v2001 = vpop.trf.xlu0
        %v2002 = vpop.trf.xlu0
        %v2003 = vpop.trf.xlu0
        %2036 = vrot.lane.b32.xlu0 %v1652, 112
        %v2037 = vpop.permute.xlu0 %2036
        %2038 = vrot.lane.b32.xlu0 %v1653, 112
        %v2039 = vpop.permute.xlu0 %2038
        %2040 = vrot.lane.b32.xlu0 %v1654, 112
        %v2041 = vpop.permute.xlu0 %2040
        %2042 = vrot.lane.b32.xlu0 %v1655, 112
        %v2043 = vpop.permute.xlu0 %2042
        %2044 = vrot.lane.b32.xlu0 %v1656, 112
        %v2045 = vpop.permute.xlu0 %2044
        %2046 = vrot.lane.b32.xlu0 %v1657, 112
        %v2047 = vpop.permute.xlu0 %2046
        %2048 = vrot.lane.b32.xlu0 %v1658, 112
        %v2049 = vpop.permute.xlu0 %2048
        %2050 = vrot.lane.b32.xlu0 %v1659, 112
        %v2051 = vpop.permute.xlu0 %2050
        %2052 = vrot.lane.b32.xlu0 %v1660, 112
        %v2053 = vpop.permute.xlu0 %2052
        %2054 = vrot.lane.b32.xlu0 %v1661, 112
        %v2055 = vpop.permute.xlu0 %2054
        %2056 = vrot.lane.b32.xlu0 %v1662, 112
        %v2057 = vpop.permute.xlu0 %2056
        %2058 = vrot.lane.b32.xlu0 %v1663, 112
        %v2059 = vpop.permute.xlu0 %2058
        %2060 = vrot.lane.b32.xlu0 %v1664, 112
        %v2061 = vpop.permute.xlu0 %2060
        %2062 = vrot.lane.b32.xlu0 %v1665, 112
        %v2063 = vpop.permute.xlu0 %2062
        %2064 = vrot.lane.b32.xlu0 %v1666, 112
        %v2065 = vpop.permute.xlu0 %2064
        %2066 = vrot.lane.b32.xlu0 %v1667, 112
        %v2067 = vpop.permute.xlu0 %2066
        %2068 = vrot.lane.b32.xlu0 %v1668, 112
        %v2069 = vpop.permute.xlu0 %2068
        %2070 = vrot.lane.b32.xlu0 %v1669, 112
        %v2071 = vpop.permute.xlu0 %2070
        %2072 = vrot.lane.b32.xlu0 %v1670, 112
        %v2073 = vpop.permute.xlu0 %2072
        %2074 = vrot.lane.b32.xlu0 %v1671, 112
        %v2075 = vpop.permute.xlu0 %2074
        %2076 = vrot.lane.b32.xlu0 %v1672, 112
        %v2077 = vpop.permute.xlu0 %2076
        %2078 = vrot.lane.b32.xlu0 %v1673, 112
        %v2079 = vpop.permute.xlu0 %2078
        %2080 = vrot.lane.b32.xlu0 %v1674, 112
        %v2081 = vpop.permute.xlu0 %2080
        %2082 = vrot.lane.b32.xlu0 %v1675, 112
        %v2083 = vpop.permute.xlu0 %2082
        %2084 = vrot.lane.b32.xlu0 %v1676, 112
        %v2085 = vpop.permute.xlu0 %2084
        %2086 = vrot.lane.b32.xlu0 %v1677, 112
        %v2087 = vpop.permute.xlu0 %2086
        %2088 = vrot.lane.b32.xlu0 %v1678, 112
        %v2089 = vpop.permute.xlu0 %2088
        %2090 = vrot.lane.b32.xlu0 %v1679, 112
        %v2091 = vpop.permute.xlu0 %2090
        %2092 = vrot.lane.b32.xlu0 %v1680, 112
        %v2093 = vpop.permute.xlu0 %2092
        %2094 = vrot.lane.b32.xlu0 %v1681, 112
        %v2095 = vpop.permute.xlu0 %2094
        %2096 = vrot.lane.b32.xlu0 %v1682, 112
        %v2097 = vpop.permute.xlu0 %2096
        %2098 = vrot.lane.b32.xlu0 %v1683, 112
        %v2099 = vpop.permute.xlu0 %2098
        %2132 = vmatpush.msra.mxu0 %v2067
        %2133 = vmatpush.msra.mxu0 %v2065
        %2134 = vmatpush.msra.mxu0 %v2063
        %2135 = vmatpush.msra.mxu0 %v2061
        %2136 = vmatpush.msra.mxu0 %v2059
        %2137 = vmatpush.msra.mxu0 %v2057
        %2138 = vmatpush.msra.mxu0 %v2055
        %2139 = vmatpush.msra.mxu0 %v2053
        %2140 = vmatpush.msra.mxu0 %v2051
        %2141 = vmatpush.msra.mxu0 %v2049
        %2142 = vmatpush.msra.mxu0 %v2047
        %2143 = vmatpush.msra.mxu0 %v2045
        %2144 = vmatpush.msra.mxu0 %v2043
        %2145 = vmatpush.msra.mxu0 %v2041
        %2146 = vmatpush.msra.mxu0 %v2039
        %2147 = vmatpush.msra.mxu0 %v2037
        %2148 = vmatmul.f32.gmra.mxu0 %v1956
        %v2149 = vpop.f32.mrf.mxu0
        %v2150 = vadd.f32 0.0, %v2149
        %2151 = vmatmul.f32.gmra.mxu0 %v1957
        %v2152 = vpop.f32.mrf.mxu0
        %v2153 = vadd.f32 0.0, %v2152
        %2154 = vdwg.mxu0
        %2155 = vmatpush.msra.mxu0 %v2099
        %2156 = vmatpush.msra.mxu0 %v2097
        %2157 = vmatpush.msra.mxu0 %v2095
        %2158 = vmatpush.msra.mxu0 %v2093
        %2159 = vmatpush.msra.mxu0 %v2091
        %2160 = vmatpush.msra.mxu0 %v2089
        %2161 = vmatpush.msra.mxu0 %v2087
        %2162 = vmatpush.msra.mxu0 %v2085
        %2163 = vmatpush.msra.mxu0 %v2083
        %2164 = vmatpush.msra.mxu0 %v2081
        %2165 = vmatpush.msra.mxu0 %v2079
        %2166 = vmatpush.msra.mxu0 %v2077
        %2167 = vmatpush.msra.mxu0 %v2075
        %2168 = vmatpush.msra.mxu0 %v2073
        %2169 = vmatpush.msra.mxu0 %v2071
        %2170 = vmatpush.msra.mxu0 %v2069
        %2171 = vmatmul.f32.gmra.mxu0 %v1988
        %v2172 = vpop.f32.mrf.mxu0
        %v2173 = vadd.f32 %v2150, %v2172
        %2174 = vmatmul.f32.gmra.mxu0 %v1989
        %v2175 = vpop.f32.mrf.mxu0
        %v2176 = vadd.f32 %v2153, %v2175
        %2177 = vdwg.mxu0
        %s2178 = sld [smem:[#allocation2 + $0x1]]
        %v2179 = vstv %s2178
        %v2180 = vmul.f32 %v2173, %v2179
        %v2181 = vmul.f32 %v2176, %v2179
        %v2182 = vsel %vm889, %v2180, -inf
        %2183 = vmax.xlane.f32.xlu0 %v2182
        %v2184 = vpop.xlane.xlu0 %2183
        %v2185 = vsel %vm889, %v2181, -inf
        %2186 = vmax.xlane.f32.xlu0 %v2185
        %v2187 = vpop.xlane.xlu0 %2186
        %v2188 = vsub.f32 %v2180, %v2184
        %v2189 = vsub.f32 %v2181, %v2187
        %v2190 = vmul.f32 %v2188, 1.442695
        %v2191 = vpow.pop %v2190
        %v2192 = vmul.f32 %v2189, 1.442695
        %v2193 = vpow.pop %v2192
        %v2194 = vsel %vm889, %v2191, 0.0
        %2195 = vadd.xlane.f32.xlu0 %v2194
        %v2196 = vpop.xlane.xlu0 %2195
        %v2197 = vsel %vm889, %v2193, 0.0
        %2198 = vadd.xlane.f32.xlu0 %v2197
        %v2199 = vpop.xlane.xlu0 %2198
        %v2200 = vrcp.pop %v2196
        %v2201 = vmul.f32 %v2196, %v2200
        %v2202 = vsub.f32 1.0, %v2201
        %v2203 = vmul.f32 %v2200, %v2202
        %v2204 = vadd.f32 %v2200, %v2203
        %vm2205 = vweird.f32 %v2196
        %vm2206 = vweird.f32 %v2200
        %vm2207 = vmor %vm2205, %vm2206
        %v2208 = vsel %vm2207, %v2200, %v2204
        %v2209 = vand.u32 2147483647, %v2196
        %vm2210 = vcmp.eq.f32.partialorder %v2209, 8.507059e+37
        %v2211 = vand.u32 %v2196, 2147483648
        %v2212 = vor.u32 1.1754944e-38, %v2211
        %v2213 = vsel %vm2210, %v2212, %v2208
        %v2214 = vmul.f32 %v2191, %v2213
        %v2215 = vrcp.pop %v2199
        %v2216 = vmul.f32 %v2199, %v2215
        %v2217 = vsub.f32 1.0, %v2216
        %v2218 = vmul.f32 %v2215, %v2217
        %v2219 = vadd.f32 %v2215, %v2218
        %vm2220 = vweird.f32 %v2199
        %vm2221 = vweird.f32 %v2215
        %vm2222 = vmor %vm2220, %vm2221
        %v2223 = vsel %vm2222, %v2215, %v2219
        %v2224 = vand.u32 2147483647, %v2199
        %vm2225 = vcmp.eq.f32.partialorder %v2224, 8.507059e+37
        %v2226 = vand.u32 %v2199, 2147483648
        %v2227 = vor.u32 1.1754944e-38, %v2226
        %v2228 = vsel %vm2225, %v2227, %v2223
        %v2229 = vmul.f32 %v2193, %v2228
        %2230 = vrot.lane.b32.xlu0 %v730, 112
        %v2231 = vpop.permute.xlu0 %2230
        %2232 = vrot.lane.b32.xlu0 %v733, 112
        %v2233 = vpop.permute.xlu0 %2232
        %2234 = vrot.lane.b32.xlu0 %v736, 112
        %v2235 = vpop.permute.xlu0 %2234
        %2236 = vrot.lane.b32.xlu0 %v739, 112
        %v2237 = vpop.permute.xlu0 %2236
        %2238 = vrot.lane.b32.xlu0 %v742, 112
        %v2239 = vpop.permute.xlu0 %2238
        %2240 = vrot.lane.b32.xlu0 %v745, 112
        %v2241 = vpop.permute.xlu0 %2240
        %2242 = vrot.lane.b32.xlu0 %v748, 112
        %v2243 = vpop.permute.xlu0 %2242
        %2244 = vrot.lane.b32.xlu0 %v751, 112
        %v2245 = vpop.permute.xlu0 %2244
        %2246 = vrot.lane.b32.xlu0 %v754, 112
        %v2247 = vpop.permute.xlu0 %2246
        %2248 = vrot.lane.b32.xlu0 %v757, 112
        %v2249 = vpop.permute.xlu0 %2248
        %2250 = vrot.lane.b32.xlu0 %v760, 112
        %v2251 = vpop.permute.xlu0 %2250
        %2252 = vrot.lane.b32.xlu0 %v763, 112
        %v2253 = vpop.permute.xlu0 %2252
        %2254 = vrot.lane.b32.xlu0 %v766, 112
        %v2255 = vpop.permute.xlu0 %2254
        %2256 = vrot.lane.b32.xlu0 %v769, 112
        %v2257 = vpop.permute.xlu0 %2256
        %2258 = vrot.lane.b32.xlu0 %v772, 112
        %v2259 = vpop.permute.xlu0 %2258
        %2260 = vrot.lane.b32.xlu0 %v775, 112
        %v2261 = vpop.permute.xlu0 %2260
        %2262 = vrot.lane.b32.xlu0 %v778, 112
        %v2263 = vpop.permute.xlu0 %2262
        %2264 = vrot.lane.b32.xlu0 %v781, 112
        %v2265 = vpop.permute.xlu0 %2264
        %2266 = vrot.lane.b32.xlu0 %v784, 112
        %v2267 = vpop.permute.xlu0 %2266
        %2268 = vrot.lane.b32.xlu0 %v787, 112
        %v2269 = vpop.permute.xlu0 %2268
        %2270 = vrot.lane.b32.xlu0 %v790, 112
        %v2271 = vpop.permute.xlu0 %2270
        %2272 = vrot.lane.b32.xlu0 %v793, 112
        %v2273 = vpop.permute.xlu0 %2272
        %2274 = vrot.lane.b32.xlu0 %v796, 112
        %v2275 = vpop.permute.xlu0 %2274
        %2276 = vrot.lane.b32.xlu0 %v799, 112
        %v2277 = vpop.permute.xlu0 %2276
        %2278 = vrot.lane.b32.xlu0 %v802, 112
        %v2279 = vpop.permute.xlu0 %2278
        %2280 = vrot.lane.b32.xlu0 %v805, 112
        %v2281 = vpop.permute.xlu0 %2280
        %2282 = vrot.lane.b32.xlu0 %v808, 112
        %v2283 = vpop.permute.xlu0 %2282
        %2284 = vrot.lane.b32.xlu0 %v811, 112
        %v2285 = vpop.permute.xlu0 %2284
        %2286 = vrot.lane.b32.xlu0 %v814, 112
        %v2287 = vpop.permute.xlu0 %2286
        %2288 = vrot.lane.b32.xlu0 %v817, 112
        %v2289 = vpop.permute.xlu0 %2288
        %2290 = vrot.lane.b32.xlu0 %v820, 112
        %v2291 = vpop.permute.xlu0 %2290
        %2292 = vrot.lane.b32.xlu0 %v823, 112
        %v2293 = vpop.permute.xlu0 %2292
        %v2294 = vsel %vm889, %v2231, 0
        %v2296 = vsel %vm889, %v2233, 0
        %v2298 = vsel %vm889, %v2235, 0
        %v2300 = vsel %vm889, %v2237, 0
        %v2302 = vsel %vm889, %v2239, 0
        %v2304 = vsel %vm889, %v2241, 0
        %v2306 = vsel %vm889, %v2243, 0
        %v2308 = vsel %vm889, %v2245, 0
        %v2310 = vsel %vm889, %v2247, 0
        %v2312 = vsel %vm889, %v2249, 0
        %v2314 = vsel %vm889, %v2251, 0
        %v2316 = vsel %vm889, %v2253, 0
        %v2318 = vsel %vm889, %v2255, 0
        %v2320 = vsel %vm889, %v2257, 0
        %v2322 = vsel %vm889, %v2259, 0
        %v2324 = vsel %vm889, %v2261, 0
        %v2326 = vsel %vm889, %v2263, 0
        %v2328 = vsel %vm889, %v2265, 0
        %v2330 = vsel %vm889, %v2267, 0
        %v2332 = vsel %vm889, %v2269, 0
        %v2334 = vsel %vm889, %v2271, 0
        %v2336 = vsel %vm889, %v2273, 0
        %v2338 = vsel %vm889, %v2275, 0
        %v2340 = vsel %vm889, %v2277, 0
        %v2342 = vsel %vm889, %v2279, 0
        %v2344 = vsel %vm889, %v2281, 0
        %v2346 = vsel %vm889, %v2283, 0
        %v2348 = vsel %vm889, %v2285, 0
        %v2350 = vsel %vm889, %v2287, 0
        %v2352 = vsel %vm889, %v2289, 0
        %v2354 = vsel %vm889, %v2291, 0
        %v2356 = vsel %vm889, %v2293, 0
        %v2359 = vsel %vm889, %v2214, 0
        %v2362 = vsel %vm889, %v2229, 0
        %2364 = vmatpush.xpose.msra.mxu0 0.0
        %2365 = vmatpush.xpose.msra.mxu0 0.0
        %2366 = vmatpush.xpose.msra.mxu0 0.0
        %2367 = vmatpush.xpose.msra.mxu0 0.0
        %2368 = vmatpush.xpose.msra.mxu0 0.0
        %2369 = vmatpush.xpose.msra.mxu0 0.0
        %2370 = vmatpush.xpose.msra.mxu0 0.0
        %2371 = vmatpush.xpose.msra.mxu0 0.0
        %2372 = vmatpush.xpose.msra.mxu0 0.0
        %2373 = vmatpush.xpose.msra.mxu0 0.0
        %2374 = vmatpush.xpose.msra.mxu0 0.0
        %2375 = vmatpush.xpose.msra.mxu0 0.0
        %2376 = vmatpush.xpose.msra.mxu0 0.0
        %2377 = vmatpush.xpose.msra.mxu0 0.0
        %2378 = vmatpush.xpose.msra.mxu0 %v2362
        %2379 = vmatpush.xpose.msra.mxu0 %v2359
        %2380 = vmatmul.f32.gmra.mxu0 %v2294
        %v2381 = vpop.f32.mrf.mxu0
        %v2382 = vadd.f32 0.0, %v2381
        %2383 = vmatmul.f32.gmra.mxu0 %v2296
        %v2384 = vpop.f32.mrf.mxu0
        %v2385 = vadd.f32 0.0, %v2384
        %2386 = vmatmul.f32.gmra.mxu0 %v2298
        %v2387 = vpop.f32.mrf.mxu0
        %v2388 = vadd.f32 0.0, %v2387
        %2389 = vmatmul.f32.gmra.mxu0 %v2300
        %v2390 = vpop.f32.mrf.mxu0
        %v2391 = vadd.f32 0.0, %v2390
        %2392 = vmatmul.f32.gmra.mxu0 %v2302
        %v2393 = vpop.f32.mrf.mxu0
        %v2394 = vadd.f32 0.0, %v2393
        %2395 = vmatmul.f32.gmra.mxu0 %v2304
        %v2396 = vpop.f32.mrf.mxu0
        %v2397 = vadd.f32 0.0, %v2396
        %2398 = vmatmul.f32.gmra.mxu0 %v2306
        %v2399 = vpop.f32.mrf.mxu0
        %v2400 = vadd.f32 0.0, %v2399
        %2401 = vmatmul.f32.gmra.mxu0 %v2308
        %v2402 = vpop.f32.mrf.mxu0
        %v2403 = vadd.f32 0.0, %v2402
        %2404 = vmatmul.f32.gmra.mxu0 %v2310
        %v2405 = vpop.f32.mrf.mxu0
        %v2406 = vadd.f32 0.0, %v2405
        %2407 = vmatmul.f32.gmra.mxu0 %v2312
        %v2408 = vpop.f32.mrf.mxu0
        %v2409 = vadd.f32 0.0, %v2408
        %2410 = vmatmul.f32.gmra.mxu0 %v2314
        %v2411 = vpop.f32.mrf.mxu0
        %v2412 = vadd.f32 0.0, %v2411
        %2413 = vmatmul.f32.gmra.mxu0 %v2316
        %v2414 = vpop.f32.mrf.mxu0
        %v2415 = vadd.f32 0.0, %v2414
        %2416 = vmatmul.f32.gmra.mxu0 %v2318
        %v2417 = vpop.f32.mrf.mxu0
        %v2418 = vadd.f32 0.0, %v2417
        %2419 = vmatmul.f32.gmra.mxu0 %v2320
        %v2420 = vpop.f32.mrf.mxu0
        %v2421 = vadd.f32 0.0, %v2420
        %2422 = vmatmul.f32.gmra.mxu0 %v2322
        %v2423 = vpop.f32.mrf.mxu0
        %v2424 = vadd.f32 0.0, %v2423
        %2425 = vmatmul.f32.gmra.mxu0 %v2324
        %v2426 = vpop.f32.mrf.mxu0
        %v2427 = vadd.f32 0.0, %v2426
        %2428 = vmatmul.f32.gmra.mxu0 %v2326
        %v2429 = vpop.f32.mrf.mxu0
        %v2430 = vadd.f32 0.0, %v2429
        %2431 = vmatmul.f32.gmra.mxu0 %v2328
        %v2432 = vpop.f32.mrf.mxu0
        %v2433 = vadd.f32 0.0, %v2432
        %2434 = vmatmul.f32.gmra.mxu0 %v2330
        %v2435 = vpop.f32.mrf.mxu0
        %v2436 = vadd.f32 0.0, %v2435
        %2437 = vmatmul.f32.gmra.mxu0 %v2332
        %v2438 = vpop.f32.mrf.mxu0
        %v2439 = vadd.f32 0.0, %v2438
        %2440 = vmatmul.f32.gmra.mxu0 %v2334
        %v2441 = vpop.f32.mrf.mxu0
        %v2442 = vadd.f32 0.0, %v2441
        %2443 = vmatmul.f32.gmra.mxu0 %v2336
        %v2444 = vpop.f32.mrf.mxu0
        %v2445 = vadd.f32 0.0, %v2444
        %2446 = vmatmul.f32.gmra.mxu0 %v2338
        %v2447 = vpop.f32.mrf.mxu0
        %v2448 = vadd.f32 0.0, %v2447
        %2449 = vmatmul.f32.gmra.mxu0 %v2340
        %v2450 = vpop.f32.mrf.mxu0
        %v2451 = vadd.f32 0.0, %v2450
        %2452 = vmatmul.f32.gmra.mxu0 %v2342
        %v2453 = vpop.f32.mrf.mxu0
        %v2454 = vadd.f32 0.0, %v2453
        %2455 = vmatmul.f32.gmra.mxu0 %v2344
        %v2456 = vpop.f32.mrf.mxu0
        %v2457 = vadd.f32 0.0, %v2456
        %2458 = vmatmul.f32.gmra.mxu0 %v2346
        %v2459 = vpop.f32.mrf.mxu0
        %v2460 = vadd.f32 0.0, %v2459
        %2461 = vmatmul.f32.gmra.mxu0 %v2348
        %v2462 = vpop.f32.mrf.mxu0
        %v2463 = vadd.f32 0.0, %v2462
        %2464 = vmatmul.f32.gmra.mxu0 %v2350
        %v2465 = vpop.f32.mrf.mxu0
        %v2466 = vadd.f32 0.0, %v2465
        %2467 = vmatmul.f32.gmra.mxu0 %v2352
        %v2468 = vpop.f32.mrf.mxu0
        %v2469 = vadd.f32 0.0, %v2468
        %2470 = vmatmul.f32.gmra.mxu0 %v2354
        %v2471 = vpop.f32.mrf.mxu0
        %v2472 = vadd.f32 0.0, %v2471
        %2473 = vmatmul.f32.gmra.mxu0 %v2356
        %v2474 = vpop.f32.mrf.mxu0
        %v2475 = vadd.f32 0.0, %v2474
        %2476 = vdwg.mxu0
        %vm2477 = vcmask 392448
        %v2478 = vsel %vm2477, %v857, 0.0
        %v2479 = vsel %vm2477, %v858, 0.0
        %v2480 = vadd.f32 %v2478, %v2479
        %v2481 = vsel %vm2477, %v859, 0.0
        %v2482 = vadd.f32 %v2480, %v2481
        %v2483 = vsel %vm2477, %v860, 0.0
        %v2484 = vadd.f32 %v2482, %v2483
        %v2485 = vsel %vm2477, %v861, 0.0
        %v2486 = vadd.f32 %v2484, %v2485
        %v2487 = vsel %vm2477, %v862, 0.0
        %v2488 = vadd.f32 %v2486, %v2487
        %v2489 = vsel %vm2477, %v863, 0.0
        %v2490 = vadd.f32 %v2488, %v2489
        %v2491 = vsel %vm2477, %v864, 0.0
        %v2492 = vadd.f32 %v2490, %v2491
        %v2493 = vsel %vm2477, %v865, 0.0
        %v2494 = vadd.f32 %v2492, %v2493
        %v2495 = vsel %vm2477, %v866, 0.0
        %v2496 = vadd.f32 %v2494, %v2495
        %v2497 = vsel %vm2477, %v867, 0.0
        %v2498 = vadd.f32 %v2496, %v2497
        %v2499 = vsel %vm2477, %v868, 0.0
        %v2500 = vadd.f32 %v2498, %v2499
        %v2501 = vsel %vm2477, %v869, 0.0
        %v2502 = vadd.f32 %v2500, %v2501
        %v2503 = vsel %vm2477, %v870, 0.0
        %v2504 = vadd.f32 %v2502, %v2503
        %v2505 = vsel %vm2477, %v871, 0.0
        %v2506 = vadd.f32 %v2504, %v2505
        %v2507 = vsel %vm2477, %v872, 0.0
        %v2508 = vadd.f32 %v2506, %v2507
        %v2509 = vsel %vm2477, %v873, 0.0
        %v2510 = vadd.f32 %v2508, %v2509
        %v2511 = vsel %vm2477, %v874, 0.0
        %v2512 = vadd.f32 %v2510, %v2511
        %v2513 = vsel %vm2477, %v875, 0.0
        %v2514 = vadd.f32 %v2512, %v2513
        %v2515 = vsel %vm2477, %v876, 0.0
        %v2516 = vadd.f32 %v2514, %v2515
        %v2517 = vsel %vm2477, %v877, 0.0
        %v2518 = vadd.f32 %v2516, %v2517
        %v2519 = vsel %vm2477, %v878, 0.0
        %v2520 = vadd.f32 %v2518, %v2519
        %v2521 = vsel %vm2477, %v879, 0.0
        %v2522 = vadd.f32 %v2520, %v2521
        %v2523 = vsel %vm2477, %v880, 0.0
        %v2524 = vadd.f32 %v2522, %v2523
        %v2525 = vsel %vm2477, %v881, 0.0
        %v2526 = vadd.f32 %v2524, %v2525
        %v2527 = vsel %vm2477, %v882, 0.0
        %v2528 = vadd.f32 %v2526, %v2527
        %v2529 = vsel %vm2477, %v883, 0.0
        %v2530 = vadd.f32 %v2528, %v2529
        %v2531 = vsel %vm2477, %v884, 0.0
        %v2532 = vadd.f32 %v2530, %v2531
        %v2533 = vsel %vm2477, %v885, 0.0
        %v2534 = vadd.f32 %v2532, %v2533
        %v2535 = vsel %vm2477, %v886, 0.0
        %v2536 = vadd.f32 %v2534, %v2535
        %v2537 = vsel %vm2477, %v887, 0.0
        %v2538 = vadd.f32 %v2536, %v2537
        %v2539 = vsel %vm2477, %v888, 0.0
        %v2540 = vadd.f32 %v2538, %v2539
        %v2541 = vrot.slane %v2540, 4
        %v2542 = vadd.f32 %v2540, %v2541
        %v2543 = vrot.slane %v2542, 2
        %v2544 = vadd.f32 %v2542, %v2543
        %v2545 = vrot.slane %v2544, 1
        %v2546 = vadd.f32 %v2544, %v2545
        %v2547 = vrsqrt.pop %v2546
        %v2548 = vmul.f32 %v2547, %v2546
        %v2549 = vmul.f32 %v2548, %v2547
        %v2550 = vmul.f32 0.5, %v2549
        %v2551 = vsub.f32 1.5, %v2550
        %v2552 = vmul.f32 %v2547, %v2551
        %v2553 = vmul.f32 %v2546, %v2552
        %vm2554 = vcmp.eq.f32.partialorder %v2546, inf
        %v2555 = vsel %vm2554, %v2546, %v2553
        %vm2556 = vcmp.eq.f32.partialorder %v2546, 0.0
        %v2557 = vand.u32 %v2546, 2147483648
        %v2558 = vsel %vm2556, %v2557, %v2555
        %v2559 = vmax.f32 %v2558, 1e-12
        %v2560 = vrcp.pop %v2559
        %v2561 = vmul.f32 %v2559, %v2560
        %v2562 = vsub.f32 1.0, %v2561
        %v2563 = vmul.f32 %v2560, %v2562
        %v2564 = vadd.f32 %v2560, %v2563
        %vm2565 = vweird.f32 %v2559
        %vm2566 = vweird.f32 %v2560
        %vm2567 = vmor %vm2565, %vm2566
        %v2568 = vsel %vm2567, %v2560, %v2564
        %v2569 = vand.u32 2147483647, %v2559
        %vm2570 = vcmp.eq.f32.partialorder %v2569, 8.507059e+37
        %v2571 = vand.u32 %v2559, 2147483648
        %v2572 = vor.u32 1.1754944e-38, %v2571
        %v2573 = vsel %vm2570, %v2572, %v2568
        %v2574 = vmul.f32 %v488, %v2573
        %v2575 = vmul.f32 %v491, %v2573
        %v2576 = vmul.f32 %v494, %v2573
        %v2577 = vmul.f32 %v497, %v2573
        %v2578 = vmul.f32 %v500, %v2573
        %v2579 = vmul.f32 %v503, %v2573
        %v2580 = vmul.f32 %v506, %v2573
        %v2581 = vmul.f32 %v509, %v2573
        %v2582 = vmul.f32 %v512, %v2573
        %v2583 = vmul.f32 %v515, %v2573
        %v2584 = vmul.f32 %v518, %v2573
        %v2585 = vmul.f32 %v521, %v2573
        %v2586 = vmul.f32 %v524, %v2573
        %v2587 = vmul.f32 %v527, %v2573
        %v2588 = vmul.f32 %v530, %v2573
        %v2589 = vmul.f32 %v533, %v2573
        %v2590 = vmul.f32 %v536, %v2573
        %v2591 = vmul.f32 %v539, %v2573
        %v2592 = vmul.f32 %v542, %v2573
        %v2593 = vmul.f32 %v545, %v2573
        %v2594 = vmul.f32 %v548, %v2573
        %v2595 = vmul.f32 %v551, %v2573
        %v2596 = vmul.f32 %v554, %v2573
        %v2597 = vmul.f32 %v557, %v2573
        %v2598 = vmul.f32 %v560, %v2573
        %v2599 = vmul.f32 %v563, %v2573
        %v2600 = vmul.f32 %v566, %v2573
        %v2601 = vmul.f32 %v569, %v2573
        %v2602 = vmul.f32 %v572, %v2573
        %v2603 = vmul.f32 %v575, %v2573
        %v2604 = vmul.f32 %v578, %v2573
        %v2605 = vmul.f32 %v581, %v2573
        %v2606 = vsel %vm2477, %v1018, 0.0
        %v2607 = vsel %vm2477, %v1019, 0.0
        %v2608 = vadd.f32 %v2606, %v2607
        %v2609 = vsel %vm2477, %v1020, 0.0
        %v2610 = vadd.f32 %v2608, %v2609
        %v2611 = vsel %vm2477, %v1021, 0.0
        %v2612 = vadd.f32 %v2610, %v2611
        %v2613 = vsel %vm2477, %v1022, 0.0
        %v2614 = vadd.f32 %v2612, %v2613
        %v2615 = vsel %vm2477, %v1023, 0.0
        %v2616 = vadd.f32 %v2614, %v2615
        %v2617 = vsel %vm2477, %v1024, 0.0
        %v2618 = vadd.f32 %v2616, %v2617
        %v2619 = vsel %vm2477, %v1025, 0.0
        %v2620 = vadd.f32 %v2618, %v2619
        %v2621 = vsel %vm2477, %v1026, 0.0
        %v2622 = vadd.f32 %v2620, %v2621
        %v2623 = vsel %vm2477, %v1027, 0.0
        %v2624 = vadd.f32 %v2622, %v2623
        %v2625 = vsel %vm2477, %v1028, 0.0
        %v2626 = vadd.f32 %v2624, %v2625
        %v2627 = vsel %vm2477, %v1029, 0.0
        %v2628 = vadd.f32 %v2626, %v2627
        %v2629 = vsel %vm2477, %v1030, 0.0
        %v2630 = vadd.f32 %v2628, %v2629
        %v2631 = vsel %vm2477, %v1031, 0.0
        %v2632 = vadd.f32 %v2630, %v2631
        %v2633 = vsel %vm2477, %v1032, 0.0
        %v2634 = vadd.f32 %v2632, %v2633
        %v2635 = vsel %vm2477, %v1033, 0.0
        %v2636 = vadd.f32 %v2634, %v2635
        %v2637 = vsel %vm2477, %v1034, 0.0
        %v2638 = vadd.f32 %v2636, %v2637
        %v2639 = vsel %vm2477, %v1035, 0.0
        %v2640 = vadd.f32 %v2638, %v2639
        %v2641 = vsel %vm2477, %v1036, 0.0
        %v2642 = vadd.f32 %v2640, %v2641
        %v2643 = vsel %vm2477, %v1037, 0.0
        %v2644 = vadd.f32 %v2642, %v2643
        %v2645 = vsel %vm2477, %v1038, 0.0
        %v2646 = vadd.f32 %v2644, %v2645
        %v2647 = vsel %vm2477, %v1039, 0.0
        %v2648 = vadd.f32 %v2646, %v2647
        %v2649 = vsel %vm2477, %v1040, 0.0
        %v2650 = vadd.f32 %v2648, %v2649
        %v2651 = vsel %vm2477, %v1041, 0.0
        %v2652 = vadd.f32 %v2650, %v2651
        %v2653 = vsel %vm2477, %v1042, 0.0
        %v2654 = vadd.f32 %v2652, %v2653
        %v2655 = vsel %vm2477, %v1043, 0.0
        %v2656 = vadd.f32 %v2654, %v2655
        %v2657 = vsel %vm2477, %v1044, 0.0
        %v2658 = vadd.f32 %v2656, %v2657
        %v2659 = vsel %vm2477, %v1045, 0.0
        %v2660 = vadd.f32 %v2658, %v2659
        %v2661 = vsel %vm2477, %v1046, 0.0
        %v2662 = vadd.f32 %v2660, %v2661
        %v2663 = vsel %vm2477, %v1047, 0.0
        %v2664 = vadd.f32 %v2662, %v2663
        %v2665 = vsel %vm2477, %v1048, 0.0
        %v2666 = vadd.f32 %v2664, %v2665
        %v2667 = vsel %vm2477, %v1049, 0.0
        %v2668 = vadd.f32 %v2666, %v2667
        %v2669 = vrot.slane %v2668, 4
        %v2670 = vadd.f32 %v2668, %v2669
        %v2671 = vrot.slane %v2670, 2
        %v2672 = vadd.f32 %v2670, %v2671
        %v2673 = vrot.slane %v2672, 1
        %v2674 = vadd.f32 %v2672, %v2673
        %v2675 = vrsqrt.pop %v2674
        %v2676 = vmul.f32 %v2675, %v2674
        %v2677 = vmul.f32 %v2676, %v2675
        %v2678 = vmul.f32 0.5, %v2677
        %v2679 = vsub.f32 1.5, %v2678
        %v2680 = vmul.f32 %v2675, %v2679
        %v2681 = vmul.f32 %v2674, %v2680
        %vm2682 = vcmp.eq.f32.partialorder %v2674, inf
        %v2683 = vsel %vm2682, %v2674, %v2681
        %vm2684 = vcmp.eq.f32.partialorder %v2674, 0.0
        %v2685 = vand.u32 %v2674, 2147483648
        %v2686 = vsel %vm2684, %v2685, %v2683
        %v2687 = vmax.f32 %v2686, 1e-12
        %v2688 = vrcp.pop %v2687
        %v2689 = vmul.f32 %v2687, %v2688
        %v2690 = vsub.f32 1.0, %v2689
        %v2691 = vmul.f32 %v2688, %v2690
        %v2692 = vadd.f32 %v2688, %v2691
        %vm2693 = vweird.f32 %v2687
        %vm2694 = vweird.f32 %v2688
        %vm2695 = vmor %vm2693, %vm2694
        %v2696 = vsel %vm2695, %v2688, %v2692
        %v2697 = vand.u32 2147483647, %v2687
        %vm2698 = vcmp.eq.f32.partialorder %v2697, 8.507059e+37
        %v2699 = vand.u32 %v2687, 2147483648
        %v2700 = vor.u32 1.1754944e-38, %v2699
        %v2701 = vsel %vm2698, %v2700, %v2696
        %v2702 = vmul.f32 %v609, %v2701
        %v2703 = vmul.f32 %v612, %v2701
        %v2704 = vmul.f32 %v615, %v2701
        %v2705 = vmul.f32 %v618, %v2701
        %v2706 = vmul.f32 %v621, %v2701
        %v2707 = vmul.f32 %v624, %v2701
        %v2708 = vmul.f32 %v627, %v2701
        %v2709 = vmul.f32 %v630, %v2701
        %v2710 = vmul.f32 %v633, %v2701
        %v2711 = vmul.f32 %v636, %v2701
        %v2712 = vmul.f32 %v639, %v2701
        %v2713 = vmul.f32 %v642, %v2701
        %v2714 = vmul.f32 %v645, %v2701
        %v2715 = vmul.f32 %v648, %v2701
        %v2716 = vmul.f32 %v651, %v2701
        %v2717 = vmul.f32 %v654, %v2701
        %v2718 = vmul.f32 %v657, %v2701
        %v2719 = vmul.f32 %v660, %v2701
        %v2720 = vmul.f32 %v663, %v2701
        %v2721 = vmul.f32 %v666, %v2701
        %v2722 = vmul.f32 %v669, %v2701
        %v2723 = vmul.f32 %v672, %v2701
        %v2724 = vmul.f32 %v675, %v2701
        %v2725 = vmul.f32 %v678, %v2701
        %v2726 = vmul.f32 %v681, %v2701
        %v2727 = vmul.f32 %v684, %v2701
        %v2728 = vmul.f32 %v687, %v2701
        %v2729 = vmul.f32 %v690, %v2701
        %v2730 = vmul.f32 %v693, %v2701
        %v2731 = vmul.f32 %v696, %v2701
        %v2732 = vmul.f32 %v699, %v2701
        %v2733 = vmul.f32 %v702, %v2701
        %2766 = vrot.lane.b32.xlu0 %v2702, 96
        %v2767 = vpop.permute.xlu0 %2766
        %2768 = vrot.lane.b32.xlu0 %v2703, 96
        %v2769 = vpop.permute.xlu0 %2768
        %2770 = vrot.lane.b32.xlu0 %v2704, 96
        %v2771 = vpop.permute.xlu0 %2770
        %2772 = vrot.lane.b32.xlu0 %v2705, 96
        %v2773 = vpop.permute.xlu0 %2772
        %2774 = vrot.lane.b32.xlu0 %v2706, 96
        %v2775 = vpop.permute.xlu0 %2774
        %2776 = vrot.lane.b32.xlu0 %v2707, 96
        %v2777 = vpop.permute.xlu0 %2776
        %2778 = vrot.lane.b32.xlu0 %v2708, 96
        %v2779 = vpop.permute.xlu0 %2778
        %2780 = vrot.lane.b32.xlu0 %v2709, 96
        %v2781 = vpop.permute.xlu0 %2780
        %2782 = vrot.lane.b32.xlu0 %v2710, 96
        %v2783 = vpop.permute.xlu0 %2782
        %2784 = vrot.lane.b32.xlu0 %v2711, 96
        %v2785 = vpop.permute.xlu0 %2784
        %2786 = vrot.lane.b32.xlu0 %v2712, 96
        %v2787 = vpop.permute.xlu0 %2786
        %2788 = vrot.lane.b32.xlu0 %v2713, 96
        %v2789 = vpop.permute.xlu0 %2788
        %2790 = vrot.lane.b32.xlu0 %v2714, 96
        %v2791 = vpop.permute.xlu0 %2790
        %2792 = vrot.lane.b32.xlu0 %v2715, 96
        %v2793 = vpop.permute.xlu0 %2792
        %2794 = vrot.lane.b32.xlu0 %v2716, 96
        %v2795 = vpop.permute.xlu0 %2794
        %2796 = vrot.lane.b32.xlu0 %v2717, 96
        %v2797 = vpop.permute.xlu0 %2796
        %2798 = vrot.lane.b32.xlu0 %v2718, 96
        %v2799 = vpop.permute.xlu0 %2798
        %2800 = vrot.lane.b32.xlu0 %v2719, 96
        %v2801 = vpop.permute.xlu0 %2800
        %2802 = vrot.lane.b32.xlu0 %v2720, 96
        %v2803 = vpop.permute.xlu0 %2802
        %2804 = vrot.lane.b32.xlu0 %v2721, 96
        %v2805 = vpop.permute.xlu0 %2804
        %2806 = vrot.lane.b32.xlu0 %v2722, 96
        %v2807 = vpop.permute.xlu0 %2806
        %2808 = vrot.lane.b32.xlu0 %v2723, 96
        %v2809 = vpop.permute.xlu0 %2808
        %2810 = vrot.lane.b32.xlu0 %v2724, 96
        %v2811 = vpop.permute.xlu0 %2810
        %2812 = vrot.lane.b32.xlu0 %v2725, 96
        %v2813 = vpop.permute.xlu0 %2812
        %2814 = vrot.lane.b32.xlu0 %v2726, 96
        %v2815 = vpop.permute.xlu0 %2814
        %2816 = vrot.lane.b32.xlu0 %v2727, 96
        %v2817 = vpop.permute.xlu0 %2816
        %2818 = vrot.lane.b32.xlu0 %v2728, 96
        %v2819 = vpop.permute.xlu0 %2818
        %2820 = vrot.lane.b32.xlu0 %v2729, 96
        %v2821 = vpop.permute.xlu0 %2820
        %2822 = vrot.lane.b32.xlu0 %v2730, 96
        %v2823 = vpop.permute.xlu0 %2822
        %2824 = vrot.lane.b32.xlu0 %v2731, 96
        %v2825 = vpop.permute.xlu0 %2824
        %2826 = vrot.lane.b32.xlu0 %v2732, 96
        %v2827 = vpop.permute.xlu0 %2826
        %2828 = vrot.lane.b32.xlu0 %v2733, 96
        %v2829 = vpop.permute.xlu0 %2828
        %2862 = vxpose.xlu0.b32.start [1/16] %v2767, 128
        %2863 = vxpose.xlu0.b32.cont [2/16] %v2769, 128
        %2864 = vxpose.xlu0.b32.cont [3/16] %v2771, 128
        %2865 = vxpose.xlu0.b32.cont [4/16] %v2773, 128
        %2866 = vxpose.xlu0.b32.cont [5/16] %v2775, 128
        %2867 = vxpose.xlu0.b32.cont [6/16] %v2777, 128
        %2868 = vxpose.xlu0.b32.cont [7/16] %v2779, 128
        %2869 = vxpose.xlu0.b32.cont [8/16] %v2781, 128
        %2870 = vxpose.xlu0.b32.cont [9/16] %v2783, 128
        %2871 = vxpose.xlu0.b32.cont [10/16] %v2785, 128
        %2872 = vxpose.xlu0.b32.cont [11/16] %v2787, 128
        %2873 = vxpose.xlu0.b32.cont [12/16] %v2789, 128
        %2874 = vxpose.xlu0.b32.cont [13/16] %v2791, 128
        %2875 = vxpose.xlu0.b32.cont [14/16] %v2793, 128
        %2876 = vxpose.xlu0.b32.cont [15/16] %v2795, 128
        %2877 = vxpose.xlu0.b32.end [16/16] %v2797, 128
        %v2878 = vpop.trf.xlu0
        %v2879 = vpop.trf.xlu0
        %v2880 = vpop.trf.xlu0
        %v2881 = vpop.trf.xlu0
        %v2882 = vpop.trf.xlu0
        %v2883 = vpop.trf.xlu0
        %v2884 = vpop.trf.xlu0
        %v2885 = vpop.trf.xlu0
        %v2886 = vpop.trf.xlu0
        %v2887 = vpop.trf.xlu0
        %v2888 = vpop.trf.xlu0
        %v2889 = vpop.trf.xlu0
        %v2890 = vpop.trf.xlu0
        %v2891 = vpop.trf.xlu0
        %v2892 = vpop.trf.xlu0
        %v2893 = vpop.trf.xlu0
        %2894 = vxpose.xlu0.b32.start [1/16] %v2799, 128
        %2895 = vxpose.xlu0.b32.cont [2/16] %v2801, 128
        %2896 = vxpose.xlu0.b32.cont [3/16] %v2803, 128
        %2897 = vxpose.xlu0.b32.cont [4/16] %v2805, 128
        %2898 = vxpose.xlu0.b32.cont [5/16] %v2807, 128
        %2899 = vxpose.xlu0.b32.cont [6/16] %v2809, 128
        %2900 = vxpose.xlu0.b32.cont [7/16] %v2811, 128
        %2901 = vxpose.xlu0.b32.cont [8/16] %v2813, 128
        %2902 = vxpose.xlu0.b32.cont [9/16] %v2815, 128
        %2903 = vxpose.xlu0.b32.cont [10/16] %v2817, 128
        %2904 = vxpose.xlu0.b32.cont [11/16] %v2819, 128
        %2905 = vxpose.xlu0.b32.cont [12/16] %v2821, 128
        %2906 = vxpose.xlu0.b32.cont [13/16] %v2823, 128
        %2907 = vxpose.xlu0.b32.cont [14/16] %v2825, 128
        %2908 = vxpose.xlu0.b32.cont [15/16] %v2827, 128
        %2909 = vxpose.xlu0.b32.end [16/16] %v2829, 128
        %v2910 = vpop.trf.xlu0
        %v2911 = vpop.trf.xlu0
        %v2912 = vpop.trf.xlu0
        %v2913 = vpop.trf.xlu0
        %v2914 = vpop.trf.xlu0
        %v2915 = vpop.trf.xlu0
        %v2916 = vpop.trf.xlu0
        %v2917 = vpop.trf.xlu0
        %v2918 = vpop.trf.xlu0
        %v2919 = vpop.trf.xlu0
        %v2920 = vpop.trf.xlu0
        %v2921 = vpop.trf.xlu0
        %v2922 = vpop.trf.xlu0
        %v2923 = vpop.trf.xlu0
        %v2924 = vpop.trf.xlu0
        %v2925 = vpop.trf.xlu0
        %2958 = vrot.lane.b32.xlu0 %v2574, 96
        %v2959 = vpop.permute.xlu0 %2958
        %2960 = vrot.lane.b32.xlu0 %v2575, 96
        %v2961 = vpop.permute.xlu0 %2960
        %2962 = vrot.lane.b32.xlu0 %v2576, 96
        %v2963 = vpop.permute.xlu0 %2962
        %2964 = vrot.lane.b32.xlu0 %v2577, 96
        %v2965 = vpop.permute.xlu0 %2964
        %2966 = vrot.lane.b32.xlu0 %v2578, 96
        %v2967 = vpop.permute.xlu0 %2966
        %2968 = vrot.lane.b32.xlu0 %v2579, 96
        %v2969 = vpop.permute.xlu0 %2968
        %2970 = vrot.lane.b32.xlu0 %v2580, 96
        %v2971 = vpop.permute.xlu0 %2970
        %2972 = vrot.lane.b32.xlu0 %v2581, 96
        %v2973 = vpop.permute.xlu0 %2972
        %2974 = vrot.lane.b32.xlu0 %v2582, 96
        %v2975 = vpop.permute.xlu0 %2974
        %2976 = vrot.lane.b32.xlu0 %v2583, 96
        %v2977 = vpop.permute.xlu0 %2976
        %2978 = vrot.lane.b32.xlu0 %v2584, 96
        %v2979 = vpop.permute.xlu0 %2978
        %2980 = vrot.lane.b32.xlu0 %v2585, 96
        %v2981 = vpop.permute.xlu0 %2980
        %2982 = vrot.lane.b32.xlu0 %v2586, 96
        %v2983 = vpop.permute.xlu0 %2982
        %2984 = vrot.lane.b32.xlu0 %v2587, 96
        %v2985 = vpop.permute.xlu0 %2984
        %2986 = vrot.lane.b32.xlu0 %v2588, 96
        %v2987 = vpop.permute.xlu0 %2986
        %2988 = vrot.lane.b32.xlu0 %v2589, 96
        %v2989 = vpop.permute.xlu0 %2988
        %2990 = vrot.lane.b32.xlu0 %v2590, 96
        %v2991 = vpop.permute.xlu0 %2990
        %2992 = vrot.lane.b32.xlu0 %v2591, 96
        %v2993 = vpop.permute.xlu0 %2992
        %2994 = vrot.lane.b32.xlu0 %v2592, 96
        %v2995 = vpop.permute.xlu0 %2994
        %2996 = vrot.lane.b32.xlu0 %v2593, 96
        %v2997 = vpop.permute.xlu0 %2996
        %2998 = vrot.lane.b32.xlu0 %v2594, 96
        %v2999 = vpop.permute.xlu0 %2998
        %3000 = vrot.lane.b32.xlu0 %v2595, 96
        %v3001 = vpop.permute.xlu0 %3000
        %3002 = vrot.lane.b32.xlu0 %v2596, 96
        %v3003 = vpop.permute.xlu0 %3002
        %3004 = vrot.lane.b32.xlu0 %v2597, 96
        %v3005 = vpop.permute.xlu0 %3004
        %3006 = vrot.lane.b32.xlu0 %v2598, 96
        %v3007 = vpop.permute.xlu0 %3006
        %3008 = vrot.lane.b32.xlu0 %v2599, 96
        %v3009 = vpop.permute.xlu0 %3008
        %3010 = vrot.lane.b32.xlu0 %v2600, 96
        %v3011 = vpop.permute.xlu0 %3010
        %3012 = vrot.lane.b32.xlu0 %v2601, 96
        %v3013 = vpop.permute.xlu0 %3012
        %3014 = vrot.lane.b32.xlu0 %v2602, 96
        %v3015 = vpop.permute.xlu0 %3014
        %3016 = vrot.lane.b32.xlu0 %v2603, 96
        %v3017 = vpop.permute.xlu0 %3016
        %3018 = vrot.lane.b32.xlu0 %v2604, 96
        %v3019 = vpop.permute.xlu0 %3018
        %3020 = vrot.lane.b32.xlu0 %v2605, 96
        %v3021 = vpop.permute.xlu0 %3020
        %3054 = vmatpush.msra.mxu0 %v2989
        %3055 = vmatpush.msra.mxu0 %v2987
        %3056 = vmatpush.msra.mxu0 %v2985
        %3057 = vmatpush.msra.mxu0 %v2983
        %3058 = vmatpush.msra.mxu0 %v2981
        %3059 = vmatpush.msra.mxu0 %v2979
        %3060 = vmatpush.msra.mxu0 %v2977
        %3061 = vmatpush.msra.mxu0 %v2975
        %3062 = vmatpush.msra.mxu0 %v2973
        %3063 = vmatpush.msra.mxu0 %v2971
        %3064 = vmatpush.msra.mxu0 %v2969
        %3065 = vmatpush.msra.mxu0 %v2967
        %3066 = vmatpush.msra.mxu0 %v2965
        %3067 = vmatpush.msra.mxu0 %v2963
        %3068 = vmatpush.msra.mxu0 %v2961
        %3069 = vmatpush.msra.mxu0 %v2959
        %3070 = vmatmul.f32.gmra.mxu0 %v2878
        %v3071 = vpop.f32.mrf.mxu0
        %v3072 = vadd.f32 0.0, %v3071
        %3073 = vmatmul.f32.gmra.mxu0 %v2879
        %v3074 = vpop.f32.mrf.mxu0
        %v3075 = vadd.f32 0.0, %v3074
        %3076 = vdwg.mxu0
        %3077 = vmatpush.msra.mxu0 %v3021
        %3078 = vmatpush.msra.mxu0 %v3019
        %3079 = vmatpush.msra.mxu0 %v3017
        %3080 = vmatpush.msra.mxu0 %v3015
        %3081 = vmatpush.msra.mxu0 %v3013
        %3082 = vmatpush.msra.mxu0 %v3011
        %3083 = vmatpush.msra.mxu0 %v3009
        %3084 = vmatpush.msra.mxu0 %v3007
        %3085 = vmatpush.msra.mxu0 %v3005
        %3086 = vmatpush.msra.mxu0 %v3003
        %3087 = vmatpush.msra.mxu0 %v3001
        %3088 = vmatpush.msra.mxu0 %v2999
        %3089 = vmatpush.msra.mxu0 %v2997
        %3090 = vmatpush.msra.mxu0 %v2995
        %3091 = vmatpush.msra.mxu0 %v2993
        %3092 = vmatpush.msra.mxu0 %v2991
        %3093 = vmatmul.f32.gmra.mxu0 %v2910
        %v3094 = vpop.f32.mrf.mxu0
        %v3095 = vadd.f32 %v3072, %v3094
        %3096 = vmatmul.f32.gmra.mxu0 %v2911
        %v3097 = vpop.f32.mrf.mxu0
        %v3098 = vadd.f32 %v3075, %v3097
        %3099 = vdwg.mxu0
        %s3100 = sld [smem:[#allocation2 + $0x2]]
        %v3101 = vstv %s3100
        %v3102 = vmul.f32 %v3095, %v3101
        %v3103 = vmul.f32 %v3098, %v3101
        %v3104 = vsel %vm889, %v3102, -inf
        %3105 = vmax.xlane.f32.xlu0 %v3104
        %v3106 = vpop.xlane.xlu0 %3105
        %v3107 = vsel %vm889, %v3103, -inf
        %3108 = vmax.xlane.f32.xlu0 %v3107
        %v3109 = vpop.xlane.xlu0 %3108
        %v3110 = vsub.f32 %v3102, %v3106
        %v3111 = vsub.f32 %v3103, %v3109
        %v3112 = vmul.f32 %v3110, 1.442695
        %v3113 = vpow.pop %v3112
        %v3114 = vmul.f32 %v3111, 1.442695
        %v3115 = vpow.pop %v3114
        %v3116 = vsel %vm889, %v3113, 0.0
        %3117 = vadd.xlane.f32.xlu0 %v3116
        %v3118 = vpop.xlane.xlu0 %3117
        %v3119 = vsel %vm889, %v3115, 0.0
        %3120 = vadd.xlane.f32.xlu0 %v3119
        %v3121 = vpop.xlane.xlu0 %3120
        %v3122 = vrcp.pop %v3118
        %v3123 = vmul.f32 %v3118, %v3122
        %v3124 = vsub.f32 1.0, %v3123
        %v3125 = vmul.f32 %v3122, %v3124
        %v3126 = vadd.f32 %v3122, %v3125
        %vm3127 = vweird.f32 %v3118
        %vm3128 = vweird.f32 %v3122
        %vm3129 = vmor %vm3127, %vm3128
        %v3130 = vsel %vm3129, %v3122, %v3126
        %v3131 = vand.u32 2147483647, %v3118
        %vm3132 = vcmp.eq.f32.partialorder %v3131, 8.507059e+37
        %v3133 = vand.u32 %v3118, 2147483648
        %v3134 = vor.u32 1.1754944e-38, %v3133
        %v3135 = vsel %vm3132, %v3134, %v3130
        %v3136 = vmul.f32 %v3113, %v3135
        %v3137 = vrcp.pop %v3121
        %v3138 = vmul.f32 %v3121, %v3137
        %v3139 = vsub.f32 1.0, %v3138
        %v3140 = vmul.f32 %v3137, %v3139
        %v3141 = vadd.f32 %v3137, %v3140
        %vm3142 = vweird.f32 %v3121
        %vm3143 = vweird.f32 %v3137
        %vm3144 = vmor %vm3142, %vm3143
        %v3145 = vsel %vm3144, %v3137, %v3141
        %v3146 = vand.u32 2147483647, %v3121
        %vm3147 = vcmp.eq.f32.partialorder %v3146, 8.507059e+37
        %v3148 = vand.u32 %v3121, 2147483648
        %v3149 = vor.u32 1.1754944e-38, %v3148
        %v3150 = vsel %vm3147, %v3149, %v3145
        %v3151 = vmul.f32 %v3115, %v3150
        %3152 = vrot.lane.b32.xlu0 %v730, 96
        %v3153 = vpop.permute.xlu0 %3152
        %3154 = vrot.lane.b32.xlu0 %v733, 96
        %v3155 = vpop.permute.xlu0 %3154
        %3156 = vrot.lane.b32.xlu0 %v736, 96
        %v3157 = vpop.permute.xlu0 %3156
        %3158 = vrot.lane.b32.xlu0 %v739, 96
        %v3159 = vpop.permute.xlu0 %3158
        %3160 = vrot.lane.b32.xlu0 %v742, 96
        %v3161 = vpop.permute.xlu0 %3160
        %3162 = vrot.lane.b32.xlu0 %v745, 96
        %v3163 = vpop.permute.xlu0 %3162
        %3164 = vrot.lane.b32.xlu0 %v748, 96
        %v3165 = vpop.permute.xlu0 %3164
        %3166 = vrot.lane.b32.xlu0 %v751, 96
        %v3167 = vpop.permute.xlu0 %3166
        %3168 = vrot.lane.b32.xlu0 %v754, 96
        %v3169 = vpop.permute.xlu0 %3168
        %3170 = vrot.lane.b32.xlu0 %v757, 96
        %v3171 = vpop.permute.xlu0 %3170
        %3172 = vrot.lane.b32.xlu0 %v760, 96
        %v3173 = vpop.permute.xlu0 %3172
        %3174 = vrot.lane.b32.xlu0 %v763, 96
        %v3175 = vpop.permute.xlu0 %3174
        %3176 = vrot.lane.b32.xlu0 %v766, 96
        %v3177 = vpop.permute.xlu0 %3176
        %3178 = vrot.lane.b32.xlu0 %v769, 96
        %v3179 = vpop.permute.xlu0 %3178
        %3180 = vrot.lane.b32.xlu0 %v772, 96
        %v3181 = vpop.permute.xlu0 %3180
        %3182 = vrot.lane.b32.xlu0 %v775, 96
        %v3183 = vpop.permute.xlu0 %3182
        %3184 = vrot.lane.b32.xlu0 %v778, 96
        %v3185 = vpop.permute.xlu0 %3184
        %3186 = vrot.lane.b32.xlu0 %v781, 96
        %v3187 = vpop.permute.xlu0 %3186
        %3188 = vrot.lane.b32.xlu0 %v784, 96
        %v3189 = vpop.permute.xlu0 %3188
        %3190 = vrot.lane.b32.xlu0 %v787, 96
        %v3191 = vpop.permute.xlu0 %3190
        %3192 = vrot.lane.b32.xlu0 %v790, 96
        %v3193 = vpop.permute.xlu0 %3192
        %3194 = vrot.lane.b32.xlu0 %v793, 96
        %v3195 = vpop.permute.xlu0 %3194
        %3196 = vrot.lane.b32.xlu0 %v796, 96
        %v3197 = vpop.permute.xlu0 %3196
        %3198 = vrot.lane.b32.xlu0 %v799, 96
        %v3199 = vpop.permute.xlu0 %3198
        %3200 = vrot.lane.b32.xlu0 %v802, 96
        %v3201 = vpop.permute.xlu0 %3200
        %3202 = vrot.lane.b32.xlu0 %v805, 96
        %v3203 = vpop.permute.xlu0 %3202
        %3204 = vrot.lane.b32.xlu0 %v808, 96
        %v3205 = vpop.permute.xlu0 %3204
        %3206 = vrot.lane.b32.xlu0 %v811, 96
        %v3207 = vpop.permute.xlu0 %3206
        %3208 = vrot.lane.b32.xlu0 %v814, 96
        %v3209 = vpop.permute.xlu0 %3208
        %3210 = vrot.lane.b32.xlu0 %v817, 96
        %v3211 = vpop.permute.xlu0 %3210
        %3212 = vrot.lane.b32.xlu0 %v820, 96
        %v3213 = vpop.permute.xlu0 %3212
        %3214 = vrot.lane.b32.xlu0 %v823, 96
        %v3215 = vpop.permute.xlu0 %3214
        %v3216 = vsel %vm889, %v3153, 0
        %v3218 = vsel %vm889, %v3155, 0
        %v3220 = vsel %vm889, %v3157, 0
        %v3222 = vsel %vm889, %v3159, 0
        %v3224 = vsel %vm889, %v3161, 0
        %v3226 = vsel %vm889, %v3163, 0
        %v3228 = vsel %vm889, %v3165, 0
        %v3230 = vsel %vm889, %v3167, 0
        %v3232 = vsel %vm889, %v3169, 0
        %v3234 = vsel %vm889, %v3171, 0
        %v3236 = vsel %vm889, %v3173, 0
        %v3238 = vsel %vm889, %v3175, 0
        %v3240 = vsel %vm889, %v3177, 0
        %v3242 = vsel %vm889, %v3179, 0
        %v3244 = vsel %vm889, %v3181, 0
        %v3246 = vsel %vm889, %v3183, 0
        %v3248 = vsel %vm889, %v3185, 0
        %v3250 = vsel %vm889, %v3187, 0
        %v3252 = vsel %vm889, %v3189, 0
        %v3254 = vsel %vm889, %v3191, 0
        %v3256 = vsel %vm889, %v3193, 0
        %v3258 = vsel %vm889, %v3195, 0
        %v3260 = vsel %vm889, %v3197, 0
        %v3262 = vsel %vm889, %v3199, 0
        %v3264 = vsel %vm889, %v3201, 0
        %v3266 = vsel %vm889, %v3203, 0
        %v3268 = vsel %vm889, %v3205, 0
        %v3270 = vsel %vm889, %v3207, 0
        %v3272 = vsel %vm889, %v3209, 0
        %v3274 = vsel %vm889, %v3211, 0
        %v3276 = vsel %vm889, %v3213, 0
        %v3278 = vsel %vm889, %v3215, 0
        %v3281 = vsel %vm889, %v3136, 0
        %v3284 = vsel %vm889, %v3151, 0
        %3286 = vmatpush.xpose.msra.mxu0 0.0
        %3287 = vmatpush.xpose.msra.mxu0 0.0
        %3288 = vmatpush.xpose.msra.mxu0 0.0
        %3289 = vmatpush.xpose.msra.mxu0 0.0
        %3290 = vmatpush.xpose.msra.mxu0 0.0
        %3291 = vmatpush.xpose.msra.mxu0 0.0
        %3292 = vmatpush.xpose.msra.mxu0 0.0
        %3293 = vmatpush.xpose.msra.mxu0 0.0
        %3294 = vmatpush.xpose.msra.mxu0 0.0
        %3295 = vmatpush.xpose.msra.mxu0 0.0
        %3296 = vmatpush.xpose.msra.mxu0 0.0
        %3297 = vmatpush.xpose.msra.mxu0 0.0
        %3298 = vmatpush.xpose.msra.mxu0 0.0
        %3299 = vmatpush.xpose.msra.mxu0 0.0
        %3300 = vmatpush.xpose.msra.mxu0 %v3284
        %3301 = vmatpush.xpose.msra.mxu0 %v3281
        %3302 = vmatmul.f32.gmra.mxu0 %v3216
        %v3303 = vpop.f32.mrf.mxu0
        %v3304 = vadd.f32 0.0, %v3303
        %3305 = vmatmul.f32.gmra.mxu0 %v3218
        %v3306 = vpop.f32.mrf.mxu0
        %v3307 = vadd.f32 0.0, %v3306
        %3308 = vmatmul.f32.gmra.mxu0 %v3220
        %v3309 = vpop.f32.mrf.mxu0
        %v3310 = vadd.f32 0.0, %v3309
        %3311 = vmatmul.f32.gmra.mxu0 %v3222
        %v3312 = vpop.f32.mrf.mxu0
        %v3313 = vadd.f32 0.0, %v3312
        %3314 = vmatmul.f32.gmra.mxu0 %v3224
        %v3315 = vpop.f32.mrf.mxu0
        %v3316 = vadd.f32 0.0, %v3315
        %3317 = vmatmul.f32.gmra.mxu0 %v3226
        %v3318 = vpop.f32.mrf.mxu0
        %v3319 = vadd.f32 0.0, %v3318
        %3320 = vmatmul.f32.gmra.mxu0 %v3228
        %v3321 = vpop.f32.mrf.mxu0
        %v3322 = vadd.f32 0.0, %v3321
        %3323 = vmatmul.f32.gmra.mxu0 %v3230
        %v3324 = vpop.f32.mrf.mxu0
        %v3325 = vadd.f32 0.0, %v3324
        %3326 = vmatmul.f32.gmra.mxu0 %v3232
        %v3327 = vpop.f32.mrf.mxu0
        %v3328 = vadd.f32 0.0, %v3327
        %3329 = vmatmul.f32.gmra.mxu0 %v3234
        %v3330 = vpop.f32.mrf.mxu0
        %v3331 = vadd.f32 0.0, %v3330
        %3332 = vmatmul.f32.gmra.mxu0 %v3236
        %v3333 = vpop.f32.mrf.mxu0
        %v3334 = vadd.f32 0.0, %v3333
        %3335 = vmatmul.f32.gmra.mxu0 %v3238
        %v3336 = vpop.f32.mrf.mxu0
        %v3337 = vadd.f32 0.0, %v3336
        %3338 = vmatmul.f32.gmra.mxu0 %v3240
        %v3339 = vpop.f32.mrf.mxu0
        %v3340 = vadd.f32 0.0, %v3339
        %3341 = vmatmul.f32.gmra.mxu0 %v3242
        %v3342 = vpop.f32.mrf.mxu0
        %v3343 = vadd.f32 0.0, %v3342
        %3344 = vmatmul.f32.gmra.mxu0 %v3244
        %v3345 = vpop.f32.mrf.mxu0
        %v3346 = vadd.f32 0.0, %v3345
        %3347 = vmatmul.f32.gmra.mxu0 %v3246
        %v3348 = vpop.f32.mrf.mxu0
        %v3349 = vadd.f32 0.0, %v3348
        %3350 = vmatmul.f32.gmra.mxu0 %v3248
        %v3351 = vpop.f32.mrf.mxu0
        %v3352 = vadd.f32 0.0, %v3351
        %3353 = vmatmul.f32.gmra.mxu0 %v3250
        %v3354 = vpop.f32.mrf.mxu0
        %v3355 = vadd.f32 0.0, %v3354
        %3356 = vmatmul.f32.gmra.mxu0 %v3252
        %v3357 = vpop.f32.mrf.mxu0
        %v3358 = vadd.f32 0.0, %v3357
        %3359 = vmatmul.f32.gmra.mxu0 %v3254
        %v3360 = vpop.f32.mrf.mxu0
        %v3361 = vadd.f32 0.0, %v3360
        %3362 = vmatmul.f32.gmra.mxu0 %v3256
        %v3363 = vpop.f32.mrf.mxu0
        %v3364 = vadd.f32 0.0, %v3363
        %3365 = vmatmul.f32.gmra.mxu0 %v3258
        %v3366 = vpop.f32.mrf.mxu0
        %v3367 = vadd.f32 0.0, %v3366
        %3368 = vmatmul.f32.gmra.mxu0 %v3260
        %v3369 = vpop.f32.mrf.mxu0
        %v3370 = vadd.f32 0.0, %v3369
        %3371 = vmatmul.f32.gmra.mxu0 %v3262
        %v3372 = vpop.f32.mrf.mxu0
        %v3373 = vadd.f32 0.0, %v3372
        %3374 = vmatmul.f32.gmra.mxu0 %v3264
        %v3375 = vpop.f32.mrf.mxu0
        %v3376 = vadd.f32 0.0, %v3375
        %3377 = vmatmul.f32.gmra.mxu0 %v3266
        %v3378 = vpop.f32.mrf.mxu0
        %v3379 = vadd.f32 0.0, %v3378
        %3380 = vmatmul.f32.gmra.mxu0 %v3268
        %v3381 = vpop.f32.mrf.mxu0
        %v3382 = vadd.f32 0.0, %v3381
        %3383 = vmatmul.f32.gmra.mxu0 %v3270
        %v3384 = vpop.f32.mrf.mxu0
        %v3385 = vadd.f32 0.0, %v3384
        %3386 = vmatmul.f32.gmra.mxu0 %v3272
        %v3387 = vpop.f32.mrf.mxu0
        %v3388 = vadd.f32 0.0, %v3387
        %3389 = vmatmul.f32.gmra.mxu0 %v3274
        %v3390 = vpop.f32.mrf.mxu0
        %v3391 = vadd.f32 0.0, %v3390
        %3392 = vmatmul.f32.gmra.mxu0 %v3276
        %v3393 = vpop.f32.mrf.mxu0
        %v3394 = vadd.f32 0.0, %v3393
        %3395 = vmatmul.f32.gmra.mxu0 %v3278
        %v3396 = vpop.f32.mrf.mxu0
        %v3397 = vadd.f32 0.0, %v3396
        %3398 = vdwg.mxu0
        %vm3399 = vcmask 523648
        %v3400 = vsel %vm3399, %v857, 0.0
        %v3401 = vsel %vm3399, %v858, 0.0
        %v3402 = vadd.f32 %v3400, %v3401
        %v3403 = vsel %vm3399, %v859, 0.0
        %v3404 = vadd.f32 %v3402, %v3403
        %v3405 = vsel %vm3399, %v860, 0.0
        %v3406 = vadd.f32 %v3404, %v3405
        %v3407 = vsel %vm3399, %v861, 0.0
        %v3408 = vadd.f32 %v3406, %v3407
        %v3409 = vsel %vm3399, %v862, 0.0
        %v3410 = vadd.f32 %v3408, %v3409
        %v3411 = vsel %vm3399, %v863, 0.0
        %v3412 = vadd.f32 %v3410, %v3411
        %v3413 = vsel %vm3399, %v864, 0.0
        %v3414 = vadd.f32 %v3412, %v3413
        %v3415 = vsel %vm3399, %v865, 0.0
        %v3416 = vadd.f32 %v3414, %v3415
        %v3417 = vsel %vm3399, %v866, 0.0
        %v3418 = vadd.f32 %v3416, %v3417
        %v3419 = vsel %vm3399, %v867, 0.0
        %v3420 = vadd.f32 %v3418, %v3419
        %v3421 = vsel %vm3399, %v868, 0.0
        %v3422 = vadd.f32 %v3420, %v3421
        %v3423 = vsel %vm3399, %v869, 0.0
        %v3424 = vadd.f32 %v3422, %v3423
        %v3425 = vsel %vm3399, %v870, 0.0
        %v3426 = vadd.f32 %v3424, %v3425
        %v3427 = vsel %vm3399, %v871, 0.0
        %v3428 = vadd.f32 %v3426, %v3427
        %v3429 = vsel %vm3399, %v872, 0.0
        %v3430 = vadd.f32 %v3428, %v3429
        %v3431 = vsel %vm3399, %v873, 0.0
        %v3432 = vadd.f32 %v3430, %v3431
        %v3433 = vsel %vm3399, %v874, 0.0
        %v3434 = vadd.f32 %v3432, %v3433
        %v3435 = vsel %vm3399, %v875, 0.0
        %v3436 = vadd.f32 %v3434, %v3435
        %v3437 = vsel %vm3399, %v876, 0.0
        %v3438 = vadd.f32 %v3436, %v3437
        %v3439 = vsel %vm3399, %v877, 0.0
        %v3440 = vadd.f32 %v3438, %v3439
        %v3441 = vsel %vm3399, %v878, 0.0
        %v3442 = vadd.f32 %v3440, %v3441
        %v3443 = vsel %vm3399, %v879, 0.0
        %v3444 = vadd.f32 %v3442, %v3443
        %v3445 = vsel %vm3399, %v880, 0.0
        %v3446 = vadd.f32 %v3444, %v3445
        %v3447 = vsel %vm3399, %v881, 0.0
        %v3448 = vadd.f32 %v3446, %v3447
        %v3449 = vsel %vm3399, %v882, 0.0
        %v3450 = vadd.f32 %v3448, %v3449
        %v3451 = vsel %vm3399, %v883, 0.0
        %v3452 = vadd.f32 %v3450, %v3451
        %v3453 = vsel %vm3399, %v884, 0.0
        %v3454 = vadd.f32 %v3452, %v3453
        %v3455 = vsel %vm3399, %v885, 0.0
        %v3456 = vadd.f32 %v3454, %v3455
        %v3457 = vsel %vm3399, %v886, 0.0
        %v3458 = vadd.f32 %v3456, %v3457
        %v3459 = vsel %vm3399, %v887, 0.0
        %v3460 = vadd.f32 %v3458, %v3459
        %v3461 = vsel %vm3399, %v888, 0.0
        %v3462 = vadd.f32 %v3460, %v3461
        %v3463 = vrot.slane %v3462, 4
        %v3464 = vadd.f32 %v3462, %v3463
        %v3465 = vrot.slane %v3464, 2
        %v3466 = vadd.f32 %v3464, %v3465
        %v3467 = vrot.slane %v3466, 1
        %v3468 = vadd.f32 %v3466, %v3467
        %v3469 = vrsqrt.pop %v3468
        %v3470 = vmul.f32 %v3469, %v3468
        %v3471 = vmul.f32 %v3470, %v3469
        %v3472 = vmul.f32 0.5, %v3471
        %v3473 = vsub.f32 1.5, %v3472
        %v3474 = vmul.f32 %v3469, %v3473
        %v3475 = vmul.f32 %v3468, %v3474
        %vm3476 = vcmp.eq.f32.partialorder %v3468, inf
        %v3477 = vsel %vm3476, %v3468, %v3475
        %vm3478 = vcmp.eq.f32.partialorder %v3468, 0.0
        %v3479 = vand.u32 %v3468, 2147483648
        %v3480 = vsel %vm3478, %v3479, %v3477
        %v3481 = vmax.f32 %v3480, 1e-12
        %v3482 = vrcp.pop %v3481
        %v3483 = vmul.f32 %v3481, %v3482
        %v3484 = vsub.f32 1.0, %v3483
        %v3485 = vmul.f32 %v3482, %v3484
        %v3486 = vadd.f32 %v3482, %v3485
        %vm3487 = vweird.f32 %v3481
        %vm3488 = vweird.f32 %v3482
        %vm3489 = vmor %vm3487, %vm3488
        %v3490 = vsel %vm3489, %v3482, %v3486
        %v3491 = vand.u32 2147483647, %v3481
        %vm3492 = vcmp.eq.f32.partialorder %v3491, 8.507059e+37
        %v3493 = vand.u32 %v3481, 2147483648
        %v3494 = vor.u32 1.1754944e-38, %v3493
        %v3495 = vsel %vm3492, %v3494, %v3490
        %v3496 = vmul.f32 %v488, %v3495
        %v3497 = vmul.f32 %v491, %v3495
        %v3498 = vmul.f32 %v494, %v3495
        %v3499 = vmul.f32 %v497, %v3495
        %v3500 = vmul.f32 %v500, %v3495
        %v3501 = vmul.f32 %v503, %v3495
        %v3502 = vmul.f32 %v506, %v3495
        %v3503 = vmul.f32 %v509, %v3495
        %v3504 = vmul.f32 %v512, %v3495
        %v3505 = vmul.f32 %v515, %v3495
        %v3506 = vmul.f32 %v518, %v3495
        %v3507 = vmul.f32 %v521, %v3495
        %v3508 = vmul.f32 %v524, %v3495
        %v3509 = vmul.f32 %v527, %v3495
        %v3510 = vmul.f32 %v530, %v3495
        %v3511 = vmul.f32 %v533, %v3495
        %v3512 = vmul.f32 %v536, %v3495
        %v3513 = vmul.f32 %v539, %v3495
        %v3514 = vmul.f32 %v542, %v3495
        %v3515 = vmul.f32 %v545, %v3495
        %v3516 = vmul.f32 %v548, %v3495
        %v3517 = vmul.f32 %v551, %v3495
        %v3518 = vmul.f32 %v554, %v3495
        %v3519 = vmul.f32 %v557, %v3495
        %v3520 = vmul.f32 %v560, %v3495
        %v3521 = vmul.f32 %v563, %v3495
        %v3522 = vmul.f32 %v566, %v3495
        %v3523 = vmul.f32 %v569, %v3495
        %v3524 = vmul.f32 %v572, %v3495
        %v3525 = vmul.f32 %v575, %v3495
        %v3526 = vmul.f32 %v578, %v3495
        %v3527 = vmul.f32 %v581, %v3495
        %v3528 = vsel %vm3399, %v1018, 0.0
        %v3529 = vsel %vm3399, %v1019, 0.0
        %v3530 = vadd.f32 %v3528, %v3529
        %v3531 = vsel %vm3399, %v1020, 0.0
        %v3532 = vadd.f32 %v3530, %v3531
        %v3533 = vsel %vm3399, %v1021, 0.0
        %v3534 = vadd.f32 %v3532, %v3533
        %v3535 = vsel %vm3399, %v1022, 0.0
        %v3536 = vadd.f32 %v3534, %v3535
        %v3537 = vsel %vm3399, %v1023, 0.0
        %v3538 = vadd.f32 %v3536, %v3537
        %v3539 = vsel %vm3399, %v1024, 0.0
        %v3540 = vadd.f32 %v3538, %v3539
        %v3541 = vsel %vm3399, %v1025, 0.0
        %v3542 = vadd.f32 %v3540, %v3541
        %v3543 = vsel %vm3399, %v1026, 0.0
        %v3544 = vadd.f32 %v3542, %v3543
        %v3545 = vsel %vm3399, %v1027, 0.0
        %v3546 = vadd.f32 %v3544, %v3545
        %v3547 = vsel %vm3399, %v1028, 0.0
        %v3548 = vadd.f32 %v3546, %v3547
        %v3549 = vsel %vm3399, %v1029, 0.0
        %v3550 = vadd.f32 %v3548, %v3549
        %v3551 = vsel %vm3399, %v1030, 0.0
        %v3552 = vadd.f32 %v3550, %v3551
        %v3553 = vsel %vm3399, %v1031, 0.0
        %v3554 = vadd.f32 %v3552, %v3553
        %v3555 = vsel %vm3399, %v1032, 0.0
        %v3556 = vadd.f32 %v3554, %v3555
        %v3557 = vsel %vm3399, %v1033, 0.0
        %v3558 = vadd.f32 %v3556, %v3557
        %v3559 = vsel %vm3399, %v1034, 0.0
        %v3560 = vadd.f32 %v3558, %v3559
        %v3561 = vsel %vm3399, %v1035, 0.0
        %v3562 = vadd.f32 %v3560, %v3561
        %v3563 = vsel %vm3399, %v1036, 0.0
        %v3564 = vadd.f32 %v3562, %v3563
        %v3565 = vsel %vm3399, %v1037, 0.0
        %v3566 = vadd.f32 %v3564, %v3565
        %v3567 = vsel %vm3399, %v1038, 0.0
        %v3568 = vadd.f32 %v3566, %v3567
        %v3569 = vsel %vm3399, %v1039, 0.0
        %v3570 = vadd.f32 %v3568, %v3569
        %v3571 = vsel %vm3399, %v1040, 0.0
        %v3572 = vadd.f32 %v3570, %v3571
        %v3573 = vsel %vm3399, %v1041, 0.0
        %v3574 = vadd.f32 %v3572, %v3573
        %v3575 = vsel %vm3399, %v1042, 0.0
        %v3576 = vadd.f32 %v3574, %v3575
        %v3577 = vsel %vm3399, %v1043, 0.0
        %v3578 = vadd.f32 %v3576, %v3577
        %v3579 = vsel %vm3399, %v1044, 0.0
        %v3580 = vadd.f32 %v3578, %v3579
        %v3581 = vsel %vm3399, %v1045, 0.0
        %v3582 = vadd.f32 %v3580, %v3581
        %v3583 = vsel %vm3399, %v1046, 0.0
        %v3584 = vadd.f32 %v3582, %v3583
        %v3585 = vsel %vm3399, %v1047, 0.0
        %v3586 = vadd.f32 %v3584, %v3585
        %v3587 = vsel %vm3399, %v1048, 0.0
        %v3588 = vadd.f32 %v3586, %v3587
        %v3589 = vsel %vm3399, %v1049, 0.0
        %v3590 = vadd.f32 %v3588, %v3589
        %v3591 = vrot.slane %v3590, 4
        %v3592 = vadd.f32 %v3590, %v3591
        %v3593 = vrot.slane %v3592, 2
        %v3594 = vadd.f32 %v3592, %v3593
        %v3595 = vrot.slane %v3594, 1
        %v3596 = vadd.f32 %v3594, %v3595
        %v3597 = vrsqrt.pop %v3596
        %v3598 = vmul.f32 %v3597, %v3596
        %v3599 = vmul.f32 %v3598, %v3597
        %v3600 = vmul.f32 0.5, %v3599
        %v3601 = vsub.f32 1.5, %v3600
        %v3602 = vmul.f32 %v3597, %v3601
        %v3603 = vmul.f32 %v3596, %v3602
        %vm3604 = vcmp.eq.f32.partialorder %v3596, inf
        %v3605 = vsel %vm3604, %v3596, %v3603
        %vm3606 = vcmp.eq.f32.partialorder %v3596, 0.0
        %v3607 = vand.u32 %v3596, 2147483648
        %v3608 = vsel %vm3606, %v3607, %v3605
        %v3609 = vmax.f32 %v3608, 1e-12
        %v3610 = vrcp.pop %v3609
        %v3611 = vmul.f32 %v3609, %v3610
        %v3612 = vsub.f32 1.0, %v3611
        %v3613 = vmul.f32 %v3610, %v3612
        %v3614 = vadd.f32 %v3610, %v3613
        %vm3615 = vweird.f32 %v3609
        %vm3616 = vweird.f32 %v3610
        %vm3617 = vmor %vm3615, %vm3616
        %v3618 = vsel %vm3617, %v3610, %v3614
        %v3619 = vand.u32 2147483647, %v3609
        %vm3620 = vcmp.eq.f32.partialorder %v3619, 8.507059e+37
        %v3621 = vand.u32 %v3609, 2147483648
        %v3622 = vor.u32 1.1754944e-38, %v3621
        %v3623 = vsel %vm3620, %v3622, %v3618
        %v3624 = vmul.f32 %v609, %v3623
        %v3625 = vmul.f32 %v612, %v3623
        %v3626 = vmul.f32 %v615, %v3623
        %v3627 = vmul.f32 %v618, %v3623
        %v3628 = vmul.f32 %v621, %v3623
        %v3629 = vmul.f32 %v624, %v3623
        %v3630 = vmul.f32 %v627, %v3623
        %v3631 = vmul.f32 %v630, %v3623
        %v3632 = vmul.f32 %v633, %v3623
        %v3633 = vmul.f32 %v636, %v3623
        %v3634 = vmul.f32 %v639, %v3623
        %v3635 = vmul.f32 %v642, %v3623
        %v3636 = vmul.f32 %v645, %v3623
        %v3637 = vmul.f32 %v648, %v3623
        %v3638 = vmul.f32 %v651, %v3623
        %v3639 = vmul.f32 %v654, %v3623
        %v3640 = vmul.f32 %v657, %v3623
        %v3641 = vmul.f32 %v660, %v3623
        %v3642 = vmul.f32 %v663, %v3623
        %v3643 = vmul.f32 %v666, %v3623
        %v3644 = vmul.f32 %v669, %v3623
        %v3645 = vmul.f32 %v672, %v3623
        %v3646 = vmul.f32 %v675, %v3623
        %v3647 = vmul.f32 %v678, %v3623
        %v3648 = vmul.f32 %v681, %v3623
        %v3649 = vmul.f32 %v684, %v3623
        %v3650 = vmul.f32 %v687, %v3623
        %v3651 = vmul.f32 %v690, %v3623
        %v3652 = vmul.f32 %v693, %v3623
        %v3653 = vmul.f32 %v696, %v3623
        %v3654 = vmul.f32 %v699, %v3623
        %v3655 = vmul.f32 %v702, %v3623
        %3688 = vrot.lane.b32.xlu0 %v3624, 80
        %v3689 = vpop.permute.xlu0 %3688
        %3690 = vrot.lane.b32.xlu0 %v3625, 80
        %v3691 = vpop.permute.xlu0 %3690
        %3692 = vrot.lane.b32.xlu0 %v3626, 80
        %v3693 = vpop.permute.xlu0 %3692
        %3694 = vrot.lane.b32.xlu0 %v3627, 80
        %v3695 = vpop.permute.xlu0 %3694
        %3696 = vrot.lane.b32.xlu0 %v3628, 80
        %v3697 = vpop.permute.xlu0 %3696
        %3698 = vrot.lane.b32.xlu0 %v3629, 80
        %v3699 = vpop.permute.xlu0 %3698
        %3700 = vrot.lane.b32.xlu0 %v3630, 80
        %v3701 = vpop.permute.xlu0 %3700
        %3702 = vrot.lane.b32.xlu0 %v3631, 80
        %v3703 = vpop.permute.xlu0 %3702
        %3704 = vrot.lane.b32.xlu0 %v3632, 80
        %v3705 = vpop.permute.xlu0 %3704
        %3706 = vrot.lane.b32.xlu0 %v3633, 80
        %v3707 = vpop.permute.xlu0 %3706
        %3708 = vrot.lane.b32.xlu0 %v3634, 80
        %v3709 = vpop.permute.xlu0 %3708
        %3710 = vrot.lane.b32.xlu0 %v3635, 80
        %v3711 = vpop.permute.xlu0 %3710
        %3712 = vrot.lane.b32.xlu0 %v3636, 80
        %v3713 = vpop.permute.xlu0 %3712
        %3714 = vrot.lane.b32.xlu0 %v3637, 80
        %v3715 = vpop.permute.xlu0 %3714
        %3716 = vrot.lane.b32.xlu0 %v3638, 80
        %v3717 = vpop.permute.xlu0 %3716
        %3718 = vrot.lane.b32.xlu0 %v3639, 80
        %v3719 = vpop.permute.xlu0 %3718
        %3720 = vrot.lane.b32.xlu0 %v3640, 80
        %v3721 = vpop.permute.xlu0 %3720
        %3722 = vrot.lane.b32.xlu0 %v3641, 80
        %v3723 = vpop.permute.xlu0 %3722
        %3724 = vrot.lane.b32.xlu0 %v3642, 80
        %v3725 = vpop.permute.xlu0 %3724
        %3726 = vrot.lane.b32.xlu0 %v3643, 80
        %v3727 = vpop.permute.xlu0 %3726
        %3728 = vrot.lane.b32.xlu0 %v3644, 80
        %v3729 = vpop.permute.xlu0 %3728
        %3730 = vrot.lane.b32.xlu0 %v3645, 80
        %v3731 = vpop.permute.xlu0 %3730
        %3732 = vrot.lane.b32.xlu0 %v3646, 80
        %v3733 = vpop.permute.xlu0 %3732
        %3734 = vrot.lane.b32.xlu0 %v3647, 80
        %v3735 = vpop.permute.xlu0 %3734
        %3736 = vrot.lane.b32.xlu0 %v3648, 80
        %v3737 = vpop.permute.xlu0 %3736
        %3738 = vrot.lane.b32.xlu0 %v3649, 80
        %v3739 = vpop.permute.xlu0 %3738
        %3740 = vrot.lane.b32.xlu0 %v3650, 80
        %v3741 = vpop.permute.xlu0 %3740
        %3742 = vrot.lane.b32.xlu0 %v3651, 80
        %v3743 = vpop.permute.xlu0 %3742
        %3744 = vrot.lane.b32.xlu0 %v3652, 80
        %v3745 = vpop.permute.xlu0 %3744
        %3746 = vrot.lane.b32.xlu0 %v3653, 80
        %v3747 = vpop.permute.xlu0 %3746
        %3748 = vrot.lane.b32.xlu0 %v3654, 80
        %v3749 = vpop.permute.xlu0 %3748
        %3750 = vrot.lane.b32.xlu0 %v3655, 80
        %v3751 = vpop.permute.xlu0 %3750
        %3784 = vxpose.xlu0.b32.start [1/16] %v3689, 128
        %3785 = vxpose.xlu0.b32.cont [2/16] %v3691, 128
        %3786 = vxpose.xlu0.b32.cont [3/16] %v3693, 128
        %3787 = vxpose.xlu0.b32.cont [4/16] %v3695, 128
        %3788 = vxpose.xlu0.b32.cont [5/16] %v3697, 128
        %3789 = vxpose.xlu0.b32.cont [6/16] %v3699, 128
        %3790 = vxpose.xlu0.b32.cont [7/16] %v3701, 128
        %3791 = vxpose.xlu0.b32.cont [8/16] %v3703, 128
        %3792 = vxpose.xlu0.b32.cont [9/16] %v3705, 128
        %3793 = vxpose.xlu0.b32.cont [10/16] %v3707, 128
        %3794 = vxpose.xlu0.b32.cont [11/16] %v3709, 128
        %3795 = vxpose.xlu0.b32.cont [12/16] %v3711, 128
        %3796 = vxpose.xlu0.b32.cont [13/16] %v3713, 128
        %3797 = vxpose.xlu0.b32.cont [14/16] %v3715, 128
        %3798 = vxpose.xlu0.b32.cont [15/16] %v3717, 128
        %3799 = vxpose.xlu0.b32.end [16/16] %v3719, 128
        %v3800 = vpop.trf.xlu0
        %v3801 = vpop.trf.xlu0
        %v3802 = vpop.trf.xlu0
        %v3803 = vpop.trf.xlu0
        %v3804 = vpop.trf.xlu0
        %v3805 = vpop.trf.xlu0
        %v3806 = vpop.trf.xlu0
        %v3807 = vpop.trf.xlu0
        %v3808 = vpop.trf.xlu0
        %v3809 = vpop.trf.xlu0
        %v3810 = vpop.trf.xlu0
        %v3811 = vpop.trf.xlu0
        %v3812 = vpop.trf.xlu0
        %v3813 = vpop.trf.xlu0
        %v3814 = vpop.trf.xlu0
        %v3815 = vpop.trf.xlu0
        %3816 = vxpose.xlu0.b32.start [1/16] %v3721, 128
        %3817 = vxpose.xlu0.b32.cont [2/16] %v3723, 128
        %3818 = vxpose.xlu0.b32.cont [3/16] %v3725, 128
        %3819 = vxpose.xlu0.b32.cont [4/16] %v3727, 128
        %3820 = vxpose.xlu0.b32.cont [5/16] %v3729, 128
        %3821 = vxpose.xlu0.b32.cont [6/16] %v3731, 128
        %3822 = vxpose.xlu0.b32.cont [7/16] %v3733, 128
        %3823 = vxpose.xlu0.b32.cont [8/16] %v3735, 128
        %3824 = vxpose.xlu0.b32.cont [9/16] %v3737, 128
        %3825 = vxpose.xlu0.b32.cont [10/16] %v3739, 128
        %3826 = vxpose.xlu0.b32.cont [11/16] %v3741, 128
        %3827 = vxpose.xlu0.b32.cont [12/16] %v3743, 128
        %3828 = vxpose.xlu0.b32.cont [13/16] %v3745, 128
        %3829 = vxpose.xlu0.b32.cont [14/16] %v3747, 128
        %3830 = vxpose.xlu0.b32.cont [15/16] %v3749, 128
        %3831 = vxpose.xlu0.b32.end [16/16] %v3751, 128
        %v3832 = vpop.trf.xlu0
        %v3833 = vpop.trf.xlu0
        %v3834 = vpop.trf.xlu0
        %v3835 = vpop.trf.xlu0
        %v3836 = vpop.trf.xlu0
        %v3837 = vpop.trf.xlu0
        %v3838 = vpop.trf.xlu0
        %v3839 = vpop.trf.xlu0
        %v3840 = vpop.trf.xlu0
        %v3841 = vpop.trf.xlu0
        %v3842 = vpop.trf.xlu0
        %v3843 = vpop.trf.xlu0
        %v3844 = vpop.trf.xlu0
        %v3845 = vpop.trf.xlu0
        %v3846 = vpop.trf.xlu0
        %v3847 = vpop.trf.xlu0
        %3880 = vrot.lane.b32.xlu0 %v3496, 80
        %v3881 = vpop.permute.xlu0 %3880
        %3882 = vrot.lane.b32.xlu0 %v3497, 80
        %v3883 = vpop.permute.xlu0 %3882
        %3884 = vrot.lane.b32.xlu0 %v3498, 80
        %v3885 = vpop.permute.xlu0 %3884
        %3886 = vrot.lane.b32.xlu0 %v3499, 80
        %v3887 = vpop.permute.xlu0 %3886
        %3888 = vrot.lane.b32.xlu0 %v3500, 80
        %v3889 = vpop.permute.xlu0 %3888
        %3890 = vrot.lane.b32.xlu0 %v3501, 80
        %v3891 = vpop.permute.xlu0 %3890
        %3892 = vrot.lane.b32.xlu0 %v3502, 80
        %v3893 = vpop.permute.xlu0 %3892
        %3894 = vrot.lane.b32.xlu0 %v3503, 80
        %v3895 = vpop.permute.xlu0 %3894
        %3896 = vrot.lane.b32.xlu0 %v3504, 80
        %v3897 = vpop.permute.xlu0 %3896
        %3898 = vrot.lane.b32.xlu0 %v3505, 80
        %v3899 = vpop.permute.xlu0 %3898
        %3900 = vrot.lane.b32.xlu0 %v3506, 80
        %v3901 = vpop.permute.xlu0 %3900
        %3902 = vrot.lane.b32.xlu0 %v3507, 80
        %v3903 = vpop.permute.xlu0 %3902
        %3904 = vrot.lane.b32.xlu0 %v3508, 80
        %v3905 = vpop.permute.xlu0 %3904
        %3906 = vrot.lane.b32.xlu0 %v3509, 80
        %v3907 = vpop.permute.xlu0 %3906
        %3908 = vrot.lane.b32.xlu0 %v3510, 80
        %v3909 = vpop.permute.xlu0 %3908
        %3910 = vrot.lane.b32.xlu0 %v3511, 80
        %v3911 = vpop.permute.xlu0 %3910
        %3912 = vrot.lane.b32.xlu0 %v3512, 80
        %v3913 = vpop.permute.xlu0 %3912
        %3914 = vrot.lane.b32.xlu0 %v3513, 80
        %v3915 = vpop.permute.xlu0 %3914
        %3916 = vrot.lane.b32.xlu0 %v3514, 80
        %v3917 = vpop.permute.xlu0 %3916
        %3918 = vrot.lane.b32.xlu0 %v3515, 80
        %v3919 = vpop.permute.xlu0 %3918
        %3920 = vrot.lane.b32.xlu0 %v3516, 80
        %v3921 = vpop.permute.xlu0 %3920
        %3922 = vrot.lane.b32.xlu0 %v3517, 80
        %v3923 = vpop.permute.xlu0 %3922
        %3924 = vrot.lane.b32.xlu0 %v3518, 80
        %v3925 = vpop.permute.xlu0 %3924
        %3926 = vrot.lane.b32.xlu0 %v3519, 80
        %v3927 = vpop.permute.xlu0 %3926
        %3928 = vrot.lane.b32.xlu0 %v3520, 80
        %v3929 = vpop.permute.xlu0 %3928
        %3930 = vrot.lane.b32.xlu0 %v3521, 80
        %v3931 = vpop.permute.xlu0 %3930
        %3932 = vrot.lane.b32.xlu0 %v3522, 80
        %v3933 = vpop.permute.xlu0 %3932
        %3934 = vrot.lane.b32.xlu0 %v3523, 80
        %v3935 = vpop.permute.xlu0 %3934
        %3936 = vrot.lane.b32.xlu0 %v3524, 80
        %v3937 = vpop.permute.xlu0 %3936
        %3938 = vrot.lane.b32.xlu0 %v3525, 80
        %v3939 = vpop.permute.xlu0 %3938
        %3940 = vrot.lane.b32.xlu0 %v3526, 80
        %v3941 = vpop.permute.xlu0 %3940
        %3942 = vrot.lane.b32.xlu0 %v3527, 80
        %v3943 = vpop.permute.xlu0 %3942
        %3976 = vmatpush.msra.mxu0 %v3911
        %3977 = vmatpush.msra.mxu0 %v3909
        %3978 = vmatpush.msra.mxu0 %v3907
        %3979 = vmatpush.msra.mxu0 %v3905
        %3980 = vmatpush.msra.mxu0 %v3903
        %3981 = vmatpush.msra.mxu0 %v3901
        %3982 = vmatpush.msra.mxu0 %v3899
        %3983 = vmatpush.msra.mxu0 %v3897
        %3984 = vmatpush.msra.mxu0 %v3895
        %3985 = vmatpush.msra.mxu0 %v3893
        %3986 = vmatpush.msra.mxu0 %v3891
        %3987 = vmatpush.msra.mxu0 %v3889
        %3988 = vmatpush.msra.mxu0 %v3887
        %3989 = vmatpush.msra.mxu0 %v3885
        %3990 = vmatpush.msra.mxu0 %v3883
        %3991 = vmatpush.msra.mxu0 %v3881
        %3992 = vmatmul.f32.gmra.mxu0 %v3800
        %v3993 = vpop.f32.mrf.mxu0
        %v3994 = vadd.f32 0.0, %v3993
        %3995 = vmatmul.f32.gmra.mxu0 %v3801
        %v3996 = vpop.f32.mrf.mxu0
        %v3997 = vadd.f32 0.0, %v3996
        %3998 = vdwg.mxu0
        %3999 = vmatpush.msra.mxu0 %v3943
        %4000 = vmatpush.msra.mxu0 %v3941
        %4001 = vmatpush.msra.mxu0 %v3939
        %4002 = vmatpush.msra.mxu0 %v3937
        %4003 = vmatpush.msra.mxu0 %v3935
        %4004 = vmatpush.msra.mxu0 %v3933
        %4005 = vmatpush.msra.mxu0 %v3931
        %4006 = vmatpush.msra.mxu0 %v3929
        %4007 = vmatpush.msra.mxu0 %v3927
        %4008 = vmatpush.msra.mxu0 %v3925
        %4009 = vmatpush.msra.mxu0 %v3923
        %4010 = vmatpush.msra.mxu0 %v3921
        %4011 = vmatpush.msra.mxu0 %v3919
        %4012 = vmatpush.msra.mxu0 %v3917
        %4013 = vmatpush.msra.mxu0 %v3915
        %4014 = vmatpush.msra.mxu0 %v3913
        %4015 = vmatmul.f32.gmra.mxu0 %v3832
        %v4016 = vpop.f32.mrf.mxu0
        %v4017 = vadd.f32 %v3994, %v4016
        %4018 = vmatmul.f32.gmra.mxu0 %v3833
        %v4019 = vpop.f32.mrf.mxu0
        %v4020 = vadd.f32 %v3997, %v4019
        %4021 = vdwg.mxu0
        %s4022 = sld [smem:[#allocation2 + $0x3]]
        %v4023 = vstv %s4022
        %v4024 = vmul.f32 %v4017, %v4023
        %v4025 = vmul.f32 %v4020, %v4023
        %v4026 = vsel %vm889, %v4024, -inf
        %4027 = vmax.xlane.f32.xlu0 %v4026
        %v4028 = vpop.xlane.xlu0 %4027
        %v4029 = vsel %vm889, %v4025, -inf
        %4030 = vmax.xlane.f32.xlu0 %v4029
        %v4031 = vpop.xlane.xlu0 %4030
        %v4032 = vsub.f32 %v4024, %v4028
        %v4033 = vsub.f32 %v4025, %v4031
        %v4034 = vmul.f32 %v4032, 1.442695
        %v4035 = vpow.pop %v4034
        %v4036 = vmul.f32 %v4033, 1.442695
        %v4037 = vpow.pop %v4036
        %v4038 = vsel %vm889, %v4035, 0.0
        %4039 = vadd.xlane.f32.xlu0 %v4038
        %v4040 = vpop.xlane.xlu0 %4039
        %v4041 = vsel %vm889, %v4037, 0.0
        %4042 = vadd.xlane.f32.xlu0 %v4041
        %v4043 = vpop.xlane.xlu0 %4042
        %v4044 = vrcp.pop %v4040
        %v4045 = vmul.f32 %v4040, %v4044
        %v4046 = vsub.f32 1.0, %v4045
        %v4047 = vmul.f32 %v4044, %v4046
        %v4048 = vadd.f32 %v4044, %v4047
        %vm4049 = vweird.f32 %v4040
        %vm4050 = vweird.f32 %v4044
        %vm4051 = vmor %vm4049, %vm4050
        %v4052 = vsel %vm4051, %v4044, %v4048
        %v4053 = vand.u32 2147483647, %v4040
        %vm4054 = vcmp.eq.f32.partialorder %v4053, 8.507059e+37
        %v4055 = vand.u32 %v4040, 2147483648
        %v4056 = vor.u32 1.1754944e-38, %v4055
        %v4057 = vsel %vm4054, %v4056, %v4052
        %v4058 = vmul.f32 %v4035, %v4057
        %v4059 = vrcp.pop %v4043
        %v4060 = vmul.f32 %v4043, %v4059
        %v4061 = vsub.f32 1.0, %v4060
        %v4062 = vmul.f32 %v4059, %v4061
        %v4063 = vadd.f32 %v4059, %v4062
        %vm4064 = vweird.f32 %v4043
        %vm4065 = vweird.f32 %v4059
        %vm4066 = vmor %vm4064, %vm4065
        %v4067 = vsel %vm4066, %v4059, %v4063
        %v4068 = vand.u32 2147483647, %v4043
        %vm4069 = vcmp.eq.f32.partialorder %v4068, 8.507059e+37
        %v4070 = vand.u32 %v4043, 2147483648
        %v4071 = vor.u32 1.1754944e-38, %v4070
        %v4072 = vsel %vm4069, %v4071, %v4067
        %v4073 = vmul.f32 %v4037, %v4072
        %4074 = vrot.lane.b32.xlu0 %v730, 80
        %v4075 = vpop.permute.xlu0 %4074
        %4076 = vrot.lane.b32.xlu0 %v733, 80
        %v4077 = vpop.permute.xlu0 %4076
        %4078 = vrot.lane.b32.xlu0 %v736, 80
        %v4079 = vpop.permute.xlu0 %4078
        %4080 = vrot.lane.b32.xlu0 %v739, 80
        %v4081 = vpop.permute.xlu0 %4080
        %4082 = vrot.lane.b32.xlu0 %v742, 80
        %v4083 = vpop.permute.xlu0 %4082
        %4084 = vrot.lane.b32.xlu0 %v745, 80
        %v4085 = vpop.permute.xlu0 %4084
        %4086 = vrot.lane.b32.xlu0 %v748, 80
        %v4087 = vpop.permute.xlu0 %4086
        %4088 = vrot.lane.b32.xlu0 %v751, 80
        %v4089 = vpop.permute.xlu0 %4088
        %4090 = vrot.lane.b32.xlu0 %v754, 80
        %v4091 = vpop.permute.xlu0 %4090
        %4092 = vrot.lane.b32.xlu0 %v757, 80
        %v4093 = vpop.permute.xlu0 %4092
        %4094 = vrot.lane.b32.xlu0 %v760, 80
        %v4095 = vpop.permute.xlu0 %4094
        %4096 = vrot.lane.b32.xlu0 %v763, 80
        %v4097 = vpop.permute.xlu0 %4096
        %4098 = vrot.lane.b32.xlu0 %v766, 80
        %v4099 = vpop.permute.xlu0 %4098
        %4100 = vrot.lane.b32.xlu0 %v769, 80
        %v4101 = vpop.permute.xlu0 %4100
        %4102 = vrot.lane.b32.xlu0 %v772, 80
        %v4103 = vpop.permute.xlu0 %4102
        %4104 = vrot.lane.b32.xlu0 %v775, 80
        %v4105 = vpop.permute.xlu0 %4104
        %4106 = vrot.lane.b32.xlu0 %v778, 80
        %v4107 = vpop.permute.xlu0 %4106
        %4108 = vrot.lane.b32.xlu0 %v781, 80
        %v4109 = vpop.permute.xlu0 %4108
        %4110 = vrot.lane.b32.xlu0 %v784, 80
        %v4111 = vpop.permute.xlu0 %4110
        %4112 = vrot.lane.b32.xlu0 %v787, 80
        %v4113 = vpop.permute.xlu0 %4112
        %4114 = vrot.lane.b32.xlu0 %v790, 80
        %v4115 = vpop.permute.xlu0 %4114
        %4116 = vrot.lane.b32.xlu0 %v793, 80
        %v4117 = vpop.permute.xlu0 %4116
        %4118 = vrot.lane.b32.xlu0 %v796, 80
        %v4119 = vpop.permute.xlu0 %4118
        %4120 = vrot.lane.b32.xlu0 %v799, 80
        %v4121 = vpop.permute.xlu0 %4120
        %4122 = vrot.lane.b32.xlu0 %v802, 80
        %v4123 = vpop.permute.xlu0 %4122
        %4124 = vrot.lane.b32.xlu0 %v805, 80
        %v4125 = vpop.permute.xlu0 %4124
        %4126 = vrot.lane.b32.xlu0 %v808, 80
        %v4127 = vpop.permute.xlu0 %4126
        %4128 = vrot.lane.b32.xlu0 %v811, 80
        %v4129 = vpop.permute.xlu0 %4128
        %4130 = vrot.lane.b32.xlu0 %v814, 80
        %v4131 = vpop.permute.xlu0 %4130
        %4132 = vrot.lane.b32.xlu0 %v817, 80
        %v4133 = vpop.permute.xlu0 %4132
        %4134 = vrot.lane.b32.xlu0 %v820, 80
        %v4135 = vpop.permute.xlu0 %4134
        %4136 = vrot.lane.b32.xlu0 %v823, 80
        %v4137 = vpop.permute.xlu0 %4136
        %v4138 = vsel %vm889, %v4075, 0
        %v4140 = vsel %vm889, %v4077, 0
        %v4142 = vsel %vm889, %v4079, 0
        %v4144 = vsel %vm889, %v4081, 0
        %v4146 = vsel %vm889, %v4083, 0
        %v4148 = vsel %vm889, %v4085, 0
        %v4150 = vsel %vm889, %v4087, 0
        %v4152 = vsel %vm889, %v4089, 0
        %v4154 = vsel %vm889, %v4091, 0
        %v4156 = vsel %vm889, %v4093, 0
        %v4158 = vsel %vm889, %v4095, 0
        %v4160 = vsel %vm889, %v4097, 0
        %v4162 = vsel %vm889, %v4099, 0
        %v4164 = vsel %vm889, %v4101, 0
        %v4166 = vsel %vm889, %v4103, 0
        %v4168 = vsel %vm889, %v4105, 0
        %v4170 = vsel %vm889, %v4107, 0
        %v4172 = vsel %vm889, %v4109, 0
        %v4174 = vsel %vm889, %v4111, 0
        %v4176 = vsel %vm889, %v4113, 0
        %v4178 = vsel %vm889, %v4115, 0
        %v4180 = vsel %vm889, %v4117, 0
        %v4182 = vsel %vm889, %v4119, 0
        %v4184 = vsel %vm889, %v4121, 0
        %v4186 = vsel %vm889, %v4123, 0
        %v4188 = vsel %vm889, %v4125, 0
        %v4190 = vsel %vm889, %v4127, 0
        %v4192 = vsel %vm889, %v4129, 0
        %v4194 = vsel %vm889, %v4131, 0
        %v4196 = vsel %vm889, %v4133, 0
        %v4198 = vsel %vm889, %v4135, 0
        %v4200 = vsel %vm889, %v4137, 0
        %v4203 = vsel %vm889, %v4058, 0
        %v4206 = vsel %vm889, %v4073, 0
        %4208 = vmatpush.xpose.msra.mxu0 0.0
        %4209 = vmatpush.xpose.msra.mxu0 0.0
        %4210 = vmatpush.xpose.msra.mxu0 0.0
        %4211 = vmatpush.xpose.msra.mxu0 0.0
        %4212 = vmatpush.xpose.msra.mxu0 0.0
        %4213 = vmatpush.xpose.msra.mxu0 0.0
        %4214 = vmatpush.xpose.msra.mxu0 0.0
        %4215 = vmatpush.xpose.msra.mxu0 0.0
        %4216 = vmatpush.xpose.msra.mxu0 0.0
        %4217 = vmatpush.xpose.msra.mxu0 0.0
        %4218 = vmatpush.xpose.msra.mxu0 0.0
        %4219 = vmatpush.xpose.msra.mxu0 0.0
        %4220 = vmatpush.xpose.msra.mxu0 0.0
        %4221 = vmatpush.xpose.msra.mxu0 0.0
        %4222 = vmatpush.xpose.msra.mxu0 %v4206
        %4223 = vmatpush.xpose.msra.mxu0 %v4203
        %4224 = vmatmul.f32.gmra.mxu0 %v4138
        %v4225 = vpop.f32.mrf.mxu0
        %v4226 = vadd.f32 0.0, %v4225
        %4227 = vmatmul.f32.gmra.mxu0 %v4140
        %v4228 = vpop.f32.mrf.mxu0
        %v4229 = vadd.f32 0.0, %v4228
        %4230 = vmatmul.f32.gmra.mxu0 %v4142
        %v4231 = vpop.f32.mrf.mxu0
        %v4232 = vadd.f32 0.0, %v4231
        %4233 = vmatmul.f32.gmra.mxu0 %v4144
        %v4234 = vpop.f32.mrf.mxu0
        %v4235 = vadd.f32 0.0, %v4234
        %4236 = vmatmul.f32.gmra.mxu0 %v4146
        %v4237 = vpop.f32.mrf.mxu0
        %v4238 = vadd.f32 0.0, %v4237
        %4239 = vmatmul.f32.gmra.mxu0 %v4148
        %v4240 = vpop.f32.mrf.mxu0
        %v4241 = vadd.f32 0.0, %v4240
        %4242 = vmatmul.f32.gmra.mxu0 %v4150
        %v4243 = vpop.f32.mrf.mxu0
        %v4244 = vadd.f32 0.0, %v4243
        %4245 = vmatmul.f32.gmra.mxu0 %v4152
        %v4246 = vpop.f32.mrf.mxu0
        %v4247 = vadd.f32 0.0, %v4246
        %4248 = vmatmul.f32.gmra.mxu0 %v4154
        %v4249 = vpop.f32.mrf.mxu0
        %v4250 = vadd.f32 0.0, %v4249
        %4251 = vmatmul.f32.gmra.mxu0 %v4156
        %v4252 = vpop.f32.mrf.mxu0
        %v4253 = vadd.f32 0.0, %v4252
        %4254 = vmatmul.f32.gmra.mxu0 %v4158
        %v4255 = vpop.f32.mrf.mxu0
        %v4256 = vadd.f32 0.0, %v4255
        %4257 = vmatmul.f32.gmra.mxu0 %v4160
        %v4258 = vpop.f32.mrf.mxu0
        %v4259 = vadd.f32 0.0, %v4258
        %4260 = vmatmul.f32.gmra.mxu0 %v4162
        %v4261 = vpop.f32.mrf.mxu0
        %v4262 = vadd.f32 0.0, %v4261
        %4263 = vmatmul.f32.gmra.mxu0 %v4164
        %v4264 = vpop.f32.mrf.mxu0
        %v4265 = vadd.f32 0.0, %v4264
        %4266 = vmatmul.f32.gmra.mxu0 %v4166
        %v4267 = vpop.f32.mrf.mxu0
        %v4268 = vadd.f32 0.0, %v4267
        %4269 = vmatmul.f32.gmra.mxu0 %v4168
        %v4270 = vpop.f32.mrf.mxu0
        %v4271 = vadd.f32 0.0, %v4270
        %4272 = vmatmul.f32.gmra.mxu0 %v4170
        %v4273 = vpop.f32.mrf.mxu0
        %v4274 = vadd.f32 0.0, %v4273
        %4275 = vmatmul.f32.gmra.mxu0 %v4172
        %v4276 = vpop.f32.mrf.mxu0
        %v4277 = vadd.f32 0.0, %v4276
        %4278 = vmatmul.f32.gmra.mxu0 %v4174
        %v4279 = vpop.f32.mrf.mxu0
        %v4280 = vadd.f32 0.0, %v4279
        %4281 = vmatmul.f32.gmra.mxu0 %v4176
        %v4282 = vpop.f32.mrf.mxu0
        %v4283 = vadd.f32 0.0, %v4282
        %4284 = vmatmul.f32.gmra.mxu0 %v4178
        %v4285 = vpop.f32.mrf.mxu0
        %v4286 = vadd.f32 0.0, %v4285
        %4287 = vmatmul.f32.gmra.mxu0 %v4180
        %v4288 = vpop.f32.mrf.mxu0
        %v4289 = vadd.f32 0.0, %v4288
        %4290 = vmatmul.f32.gmra.mxu0 %v4182
        %v4291 = vpop.f32.mrf.mxu0
        %v4292 = vadd.f32 0.0, %v4291
        %4293 = vmatmul.f32.gmra.mxu0 %v4184
        %v4294 = vpop.f32.mrf.mxu0
        %v4295 = vadd.f32 0.0, %v4294
        %4296 = vmatmul.f32.gmra.mxu0 %v4186
        %v4297 = vpop.f32.mrf.mxu0
        %v4298 = vadd.f32 0.0, %v4297
        %4299 = vmatmul.f32.gmra.mxu0 %v4188
        %v4300 = vpop.f32.mrf.mxu0
        %v4301 = vadd.f32 0.0, %v4300
        %4302 = vmatmul.f32.gmra.mxu0 %v4190
        %v4303 = vpop.f32.mrf.mxu0
        %v4304 = vadd.f32 0.0, %v4303
        %4305 = vmatmul.f32.gmra.mxu0 %v4192
        %v4306 = vpop.f32.mrf.mxu0
        %v4307 = vadd.f32 0.0, %v4306
        %4308 = vmatmul.f32.gmra.mxu0 %v4194
        %v4309 = vpop.f32.mrf.mxu0
        %v4310 = vadd.f32 0.0, %v4309
        %4311 = vmatmul.f32.gmra.mxu0 %v4196
        %v4312 = vpop.f32.mrf.mxu0
        %v4313 = vadd.f32 0.0, %v4312
        %4314 = vmatmul.f32.gmra.mxu0 %v4198
        %v4315 = vpop.f32.mrf.mxu0
        %v4316 = vadd.f32 0.0, %v4315
        %4317 = vmatmul.f32.gmra.mxu0 %v4200
        %v4318 = vpop.f32.mrf.mxu0
        %v4319 = vadd.f32 0.0, %v4318
        %4320 = vdwg.mxu0
        %4353 = vrot.lane.b32.xlu0 %v2382, 16
        %v4354 = vpop.permute.xlu0 %4353
        %4355 = vrot.lane.b32.xlu0 %v2385, 16
        %v4356 = vpop.permute.xlu0 %4355
        %4357 = vrot.lane.b32.xlu0 %v2388, 16
        %v4358 = vpop.permute.xlu0 %4357
        %4359 = vrot.lane.b32.xlu0 %v2391, 16
        %v4360 = vpop.permute.xlu0 %4359
        %4361 = vrot.lane.b32.xlu0 %v2394, 16
        %v4362 = vpop.permute.xlu0 %4361
        %4363 = vrot.lane.b32.xlu0 %v2397, 16
        %v4364 = vpop.permute.xlu0 %4363
        %4365 = vrot.lane.b32.xlu0 %v2400, 16
        %v4366 = vpop.permute.xlu0 %4365
        %4367 = vrot.lane.b32.xlu0 %v2403, 16
        %v4368 = vpop.permute.xlu0 %4367
        %4369 = vrot.lane.b32.xlu0 %v2406, 16
        %v4370 = vpop.permute.xlu0 %4369
        %4371 = vrot.lane.b32.xlu0 %v2409, 16
        %v4372 = vpop.permute.xlu0 %4371
        %4373 = vrot.lane.b32.xlu0 %v2412, 16
        %v4374 = vpop.permute.xlu0 %4373
        %4375 = vrot.lane.b32.xlu0 %v2415, 16
        %v4376 = vpop.permute.xlu0 %4375
        %4377 = vrot.lane.b32.xlu0 %v2418, 16
        %v4378 = vpop.permute.xlu0 %4377
        %4379 = vrot.lane.b32.xlu0 %v2421, 16
        %v4380 = vpop.permute.xlu0 %4379
        %4381 = vrot.lane.b32.xlu0 %v2424, 16
        %v4382 = vpop.permute.xlu0 %4381
        %4383 = vrot.lane.b32.xlu0 %v2427, 16
        %v4384 = vpop.permute.xlu0 %4383
        %4385 = vrot.lane.b32.xlu0 %v2430, 16
        %v4386 = vpop.permute.xlu0 %4385
        %4387 = vrot.lane.b32.xlu0 %v2433, 16
        %v4388 = vpop.permute.xlu0 %4387
        %4389 = vrot.lane.b32.xlu0 %v2436, 16
        %v4390 = vpop.permute.xlu0 %4389
        %4391 = vrot.lane.b32.xlu0 %v2439, 16
        %v4392 = vpop.permute.xlu0 %4391
        %4393 = vrot.lane.b32.xlu0 %v2442, 16
        %v4394 = vpop.permute.xlu0 %4393
        %4395 = vrot.lane.b32.xlu0 %v2445, 16
        %v4396 = vpop.permute.xlu0 %4395
        %4397 = vrot.lane.b32.xlu0 %v2448, 16
        %v4398 = vpop.permute.xlu0 %4397
        %4399 = vrot.lane.b32.xlu0 %v2451, 16
        %v4400 = vpop.permute.xlu0 %4399
        %4401 = vrot.lane.b32.xlu0 %v2454, 16
        %v4402 = vpop.permute.xlu0 %4401
        %4403 = vrot.lane.b32.xlu0 %v2457, 16
        %v4404 = vpop.permute.xlu0 %4403
        %4405 = vrot.lane.b32.xlu0 %v2460, 16
        %v4406 = vpop.permute.xlu0 %4405
        %4407 = vrot.lane.b32.xlu0 %v2463, 16
        %v4408 = vpop.permute.xlu0 %4407
        %4409 = vrot.lane.b32.xlu0 %v2466, 16
        %v4410 = vpop.permute.xlu0 %4409
        %4411 = vrot.lane.b32.xlu0 %v2469, 16
        %v4412 = vpop.permute.xlu0 %4411
        %4413 = vrot.lane.b32.xlu0 %v2472, 16
        %v4414 = vpop.permute.xlu0 %4413
        %4415 = vrot.lane.b32.xlu0 %v2475, 16
        %v4416 = vpop.permute.xlu0 %4415
        %4481 = vrot.lane.b32.xlu0 %v3304, 32
        %v4482 = vpop.permute.xlu0 %4481
        %4483 = vrot.lane.b32.xlu0 %v3307, 32
        %v4484 = vpop.permute.xlu0 %4483
        %4485 = vrot.lane.b32.xlu0 %v3310, 32
        %v4486 = vpop.permute.xlu0 %4485
        %4487 = vrot.lane.b32.xlu0 %v3313, 32
        %v4488 = vpop.permute.xlu0 %4487
        %4489 = vrot.lane.b32.xlu0 %v3316, 32
        %v4490 = vpop.permute.xlu0 %4489
        %4491 = vrot.lane.b32.xlu0 %v3319, 32
        %v4492 = vpop.permute.xlu0 %4491
        %4493 = vrot.lane.b32.xlu0 %v3322, 32
        %v4494 = vpop.permute.xlu0 %4493
        %4495 = vrot.lane.b32.xlu0 %v3325, 32
        %v4496 = vpop.permute.xlu0 %4495
        %4497 = vrot.lane.b32.xlu0 %v3328, 32
        %v4498 = vpop.permute.xlu0 %4497
        %4499 = vrot.lane.b32.xlu0 %v3331, 32
        %v4500 = vpop.permute.xlu0 %4499
        %4501 = vrot.lane.b32.xlu0 %v3334, 32
        %v4502 = vpop.permute.xlu0 %4501
        %4503 = vrot.lane.b32.xlu0 %v3337, 32
        %v4504 = vpop.permute.xlu0 %4503
        %4505 = vrot.lane.b32.xlu0 %v3340, 32
        %v4506 = vpop.permute.xlu0 %4505
        %4507 = vrot.lane.b32.xlu0 %v3343, 32
        %v4508 = vpop.permute.xlu0 %4507
        %4509 = vrot.lane.b32.xlu0 %v3346, 32
        %v4510 = vpop.permute.xlu0 %4509
        %4511 = vrot.lane.b32.xlu0 %v3349, 32
        %v4512 = vpop.permute.xlu0 %4511
        %4513 = vrot.lane.b32.xlu0 %v3352, 32
        %v4514 = vpop.permute.xlu0 %4513
        %4515 = vrot.lane.b32.xlu0 %v3355, 32
        %v4516 = vpop.permute.xlu0 %4515
        %4517 = vrot.lane.b32.xlu0 %v3358, 32
        %v4518 = vpop.permute.xlu0 %4517
        %4519 = vrot.lane.b32.xlu0 %v3361, 32
        %v4520 = vpop.permute.xlu0 %4519
        %4521 = vrot.lane.b32.xlu0 %v3364, 32
        %v4522 = vpop.permute.xlu0 %4521
        %4523 = vrot.lane.b32.xlu0 %v3367, 32
        %v4524 = vpop.permute.xlu0 %4523
        %4525 = vrot.lane.b32.xlu0 %v3370, 32
        %v4526 = vpop.permute.xlu0 %4525
        %4527 = vrot.lane.b32.xlu0 %v3373, 32
        %v4528 = vpop.permute.xlu0 %4527
        %4529 = vrot.lane.b32.xlu0 %v3376, 32
        %v4530 = vpop.permute.xlu0 %4529
        %4531 = vrot.lane.b32.xlu0 %v3379, 32
        %v4532 = vpop.permute.xlu0 %4531
        %4533 = vrot.lane.b32.xlu0 %v3382, 32
        %v4534 = vpop.permute.xlu0 %4533
        %4535 = vrot.lane.b32.xlu0 %v3385, 32
        %v4536 = vpop.permute.xlu0 %4535
        %4537 = vrot.lane.b32.xlu0 %v3388, 32
        %v4538 = vpop.permute.xlu0 %4537
        %4539 = vrot.lane.b32.xlu0 %v3391, 32
        %v4540 = vpop.permute.xlu0 %4539
        %4541 = vrot.lane.b32.xlu0 %v3394, 32
        %v4542 = vpop.permute.xlu0 %4541
        %4543 = vrot.lane.b32.xlu0 %v3397, 32
        %v4544 = vpop.permute.xlu0 %4543
        %4609 = vrot.lane.b32.xlu0 %v4226, 48
        %v4610 = vpop.permute.xlu0 %4609
        %4611 = vrot.lane.b32.xlu0 %v4229, 48
        %v4612 = vpop.permute.xlu0 %4611
        %4613 = vrot.lane.b32.xlu0 %v4232, 48
        %v4614 = vpop.permute.xlu0 %4613
        %4615 = vrot.lane.b32.xlu0 %v4235, 48
        %v4616 = vpop.permute.xlu0 %4615
        %4617 = vrot.lane.b32.xlu0 %v4238, 48
        %v4618 = vpop.permute.xlu0 %4617
        %4619 = vrot.lane.b32.xlu0 %v4241, 48
        %v4620 = vpop.permute.xlu0 %4619
        %4621 = vrot.lane.b32.xlu0 %v4244, 48
        %v4622 = vpop.permute.xlu0 %4621
        %4623 = vrot.lane.b32.xlu0 %v4247, 48
        %v4624 = vpop.permute.xlu0 %4623
        %4625 = vrot.lane.b32.xlu0 %v4250, 48
        %v4626 = vpop.permute.xlu0 %4625
        %4627 = vrot.lane.b32.xlu0 %v4253, 48
        %v4628 = vpop.permute.xlu0 %4627
        %4629 = vrot.lane.b32.xlu0 %v4256, 48
        %v4630 = vpop.permute.xlu0 %4629
        %4631 = vrot.lane.b32.xlu0 %v4259, 48
        %v4632 = vpop.permute.xlu0 %4631
        %4633 = vrot.lane.b32.xlu0 %v4262, 48
        %v4634 = vpop.permute.xlu0 %4633
        %4635 = vrot.lane.b32.xlu0 %v4265, 48
        %v4636 = vpop.permute.xlu0 %4635
        %4637 = vrot.lane.b32.xlu0 %v4268, 48
        %v4638 = vpop.permute.xlu0 %4637
        %4639 = vrot.lane.b32.xlu0 %v4271, 48
        %v4640 = vpop.permute.xlu0 %4639
        %4641 = vrot.lane.b32.xlu0 %v4274, 48
        %v4642 = vpop.permute.xlu0 %4641
        %4643 = vrot.lane.b32.xlu0 %v4277, 48
        %v4644 = vpop.permute.xlu0 %4643
        %4645 = vrot.lane.b32.xlu0 %v4280, 48
        %v4646 = vpop.permute.xlu0 %4645
        %4647 = vrot.lane.b32.xlu0 %v4283, 48
        %v4648 = vpop.permute.xlu0 %4647
        %4649 = vrot.lane.b32.xlu0 %v4286, 48
        %v4650 = vpop.permute.xlu0 %4649
        %4651 = vrot.lane.b32.xlu0 %v4289, 48
        %v4652 = vpop.permute.xlu0 %4651
        %4653 = vrot.lane.b32.xlu0 %v4292, 48
        %v4654 = vpop.permute.xlu0 %4653
        %4655 = vrot.lane.b32.xlu0 %v4295, 48
        %v4656 = vpop.permute.xlu0 %4655
        %4657 = vrot.lane.b32.xlu0 %v4298, 48
        %v4658 = vpop.permute.xlu0 %4657
        %4659 = vrot.lane.b32.xlu0 %v4301, 48
        %v4660 = vpop.permute.xlu0 %4659
        %4661 = vrot.lane.b32.xlu0 %v4304, 48
        %v4662 = vpop.permute.xlu0 %4661
        %4663 = vrot.lane.b32.xlu0 %v4307, 48
        %v4664 = vpop.permute.xlu0 %4663
        %4665 = vrot.lane.b32.xlu0 %v4310, 48
        %v4666 = vpop.permute.xlu0 %4665
        %4667 = vrot.lane.b32.xlu0 %v4313, 48
        %v4668 = vpop.permute.xlu0 %4667
        %4669 = vrot.lane.b32.xlu0 %v4316, 48
        %v4670 = vpop.permute.xlu0 %4669
        %4671 = vrot.lane.b32.xlu0 %v4319, 48
        %v4672 = vpop.permute.xlu0 %4671
        %v4705 = vsel %vm889, %v1460, %v4354
        %v4706 = vsel %vm889, %v1463, %v4356
        %v4707 = vsel %vm889, %v1466, %v4358
        %v4708 = vsel %vm889, %v1469, %v4360
        %v4709 = vsel %vm889, %v1472, %v4362
        %v4710 = vsel %vm889, %v1475, %v4364
        %v4711 = vsel %vm889, %v1478, %v4366
        %v4712 = vsel %vm889, %v1481, %v4368
        %v4713 = vsel %vm889, %v1484, %v4370
        %v4714 = vsel %vm889, %v1487, %v4372
        %v4715 = vsel %vm889, %v1490, %v4374
        %v4716 = vsel %vm889, %v1493, %v4376
        %v4717 = vsel %vm889, %v1496, %v4378
        %v4718 = vsel %vm889, %v1499, %v4380
        %v4719 = vsel %vm889, %v1502, %v4382
        %v4720 = vsel %vm889, %v1505, %v4384
        %v4721 = vsel %vm889, %v1508, %v4386
        %v4722 = vsel %vm889, %v1511, %v4388
        %v4723 = vsel %vm889, %v1514, %v4390
        %v4724 = vsel %vm889, %v1517, %v4392
        %v4725 = vsel %vm889, %v1520, %v4394
        %v4726 = vsel %vm889, %v1523, %v4396
        %v4727 = vsel %vm889, %v1526, %v4398
        %v4728 = vsel %vm889, %v1529, %v4400
        %v4729 = vsel %vm889, %v1532, %v4402
        %v4730 = vsel %vm889, %v1535, %v4404
        %v4731 = vsel %vm889, %v1538, %v4406
        %v4732 = vsel %vm889, %v1541, %v4408
        %v4733 = vsel %vm889, %v1544, %v4410
        %v4734 = vsel %vm889, %v1547, %v4412
        %v4735 = vsel %vm889, %v1550, %v4414
        %v4736 = vsel %vm889, %v1553, %v4416
        %vm4737 = vcmask 261120
        %v4738 = vsel %vm4737, %v4705, %v4482
        %v4739 = vsel %vm4737, %v4706, %v4484
        %v4740 = vsel %vm4737, %v4707, %v4486
        %v4741 = vsel %vm4737, %v4708, %v4488
        %v4742 = vsel %vm4737, %v4709, %v4490
        %v4743 = vsel %vm4737, %v4710, %v4492
        %v4744 = vsel %vm4737, %v4711, %v4494
        %v4745 = vsel %vm4737, %v4712, %v4496
        %v4746 = vsel %vm4737, %v4713, %v4498
        %v4747 = vsel %vm4737, %v4714, %v4500
        %v4748 = vsel %vm4737, %v4715, %v4502
        %v4749 = vsel %vm4737, %v4716, %v4504
        %v4750 = vsel %vm4737, %v4717, %v4506
        %v4751 = vsel %vm4737, %v4718, %v4508
        %v4752 = vsel %vm4737, %v4719, %v4510
        %v4753 = vsel %vm4737, %v4720, %v4512
        %v4754 = vsel %vm4737, %v4721, %v4514
        %v4755 = vsel %vm4737, %v4722, %v4516
        %v4756 = vsel %vm4737, %v4723, %v4518
        %v4757 = vsel %vm4737, %v4724, %v4520
        %v4758 = vsel %vm4737, %v4725, %v4522
        %v4759 = vsel %vm4737, %v4726, %v4524
        %v4760 = vsel %vm4737, %v4727, %v4526
        %v4761 = vsel %vm4737, %v4728, %v4528
        %v4762 = vsel %vm4737, %v4729, %v4530
        %v4763 = vsel %vm4737, %v4730, %v4532
        %v4764 = vsel %vm4737, %v4731, %v4534
        %v4765 = vsel %vm4737, %v4732, %v4536
        %v4766 = vsel %vm4737, %v4733, %v4538
        %v4767 = vsel %vm4737, %v4734, %v4540
        %v4768 = vsel %vm4737, %v4735, %v4542
        %v4769 = vsel %vm4737, %v4736, %v4544
        %vm4770 = vcmask 392192
        %v4771 = vsel %vm4770, %v4738, %v4610
        %v4772 = vsel %vm4770, %v4739, %v4612
        %v4773 = vsel %vm4770, %v4740, %v4614
        %v4774 = vsel %vm4770, %v4741, %v4616
        %v4775 = vsel %vm4770, %v4742, %v4618
        %v4776 = vsel %vm4770, %v4743, %v4620
        %v4777 = vsel %vm4770, %v4744, %v4622
        %v4778 = vsel %vm4770, %v4745, %v4624
        %v4779 = vsel %vm4770, %v4746, %v4626
        %v4780 = vsel %vm4770, %v4747, %v4628
        %v4781 = vsel %vm4770, %v4748, %v4630
        %v4782 = vsel %vm4770, %v4749, %v4632
        %v4783 = vsel %vm4770, %v4750, %v4634
        %v4784 = vsel %vm4770, %v4751, %v4636
        %v4785 = vsel %vm4770, %v4752, %v4638
        %v4786 = vsel %vm4770, %v4753, %v4640
        %v4787 = vsel %vm4770, %v4754, %v4642
        %v4788 = vsel %vm4770, %v4755, %v4644
        %v4789 = vsel %vm4770, %v4756, %v4646
        %v4790 = vsel %vm4770, %v4757, %v4648
        %v4791 = vsel %vm4770, %v4758, %v4650
        %v4792 = vsel %vm4770, %v4759, %v4652
        %v4793 = vsel %vm4770, %v4760, %v4654
        %v4794 = vsel %vm4770, %v4761, %v4656
        %v4795 = vsel %vm4770, %v4762, %v4658
        %v4796 = vsel %vm4770, %v4763, %v4660
        %v4797 = vsel %vm4770, %v4764, %v4662
        %v4798 = vsel %vm4770, %v4765, %v4664
        %v4799 = vsel %vm4770, %v4766, %v4666
        %v4800 = vsel %vm4770, %v4767, %v4668
        %v4801 = vsel %vm4770, %v4768, %v4670
        %v4802 = vsel %vm4770, %v4769, %v4672
        %v4803 = vld [vmem:[%s5] sm:$0xff]
        %v4804 = vld [vmem:[%s5 + $0x8] sm:$0xff]
        %v4805 = vld [vmem:[%s5 + $0x10] sm:$0xff]
        %v4806 = vld [vmem:[%s5 + $0x18] sm:$0xff]
        %v4807 = vld [vmem:[%s5 + $0x20] sm:$0xff]
        %v4808 = vld [vmem:[%s5 + $0x28] sm:$0xff]
        %v4809 = vld [vmem:[%s5 + $0x30] sm:$0xff]
        %v4810 = vld [vmem:[%s5 + $0x38] sm:$0xff]
        %v4811 = vld [vmem:[%s6] sm:$0x1]
        %v4813 = vperm.slane %v4811, 0
        %v4816 = vsel %vm373, %v4771, 0
        %v4819 = vsel %vm373, %v4772, 0
        %v4822 = vsel %vm373, %v4773, 0
        %v4825 = vsel %vm373, %v4774, 0
        %v4828 = vsel %vm373, %v4775, 0
        %v4831 = vsel %vm373, %v4776, 0
        %v4834 = vsel %vm373, %v4777, 0
        %v4837 = vsel %vm373, %v4778, 0
        %v4840 = vsel %vm373, %v4779, 0
        %v4843 = vsel %vm373, %v4780, 0
        %v4846 = vsel %vm373, %v4781, 0
        %v4849 = vsel %vm373, %v4782, 0
        %v4852 = vsel %vm373, %v4783, 0
        %v4855 = vsel %vm373, %v4784, 0
        %v4858 = vsel %vm373, %v4785, 0
        %v4861 = vsel %vm373, %v4786, 0
        %v4864 = vsel %vm373, %v4787, 0
        %v4867 = vsel %vm373, %v4788, 0
        %v4870 = vsel %vm373, %v4789, 0
        %v4873 = vsel %vm373, %v4790, 0
        %v4876 = vsel %vm373, %v4791, 0
        %v4879 = vsel %vm373, %v4792, 0
        %v4882 = vsel %vm373, %v4793, 0
        %v4885 = vsel %vm373, %v4794, 0
        %v4888 = vsel %vm373, %v4795, 0
        %v4891 = vsel %vm373, %v4796, 0
        %v4894 = vsel %vm373, %v4797, 0
        %v4897 = vsel %vm373, %v4798, 0
        %v4900 = vsel %vm373, %v4799, 0
        %v4903 = vsel %vm373, %v4800, 0
        %v4906 = vsel %vm373, %v4801, 0
        %v4909 = vsel %vm373, %v4802, 0
        %4911 = vmatpush.msra.mxu0 0.0
        %4912 = vmatpush.msra.mxu0 0.0
        %4913 = vmatpush.msra.mxu0 0.0
        %4914 = vmatpush.msra.mxu0 0.0
        %4915 = vmatpush.msra.mxu0 0.0
        %4916 = vmatpush.msra.mxu0 0.0
        %4917 = vmatpush.msra.mxu0 0.0
        %4918 = vmatpush.msra.mxu0 0.0
        %4919 = vmatpush.msra.mxu0 %v4810
        %4920 = vmatpush.msra.mxu0 %v4809
        %4921 = vmatpush.msra.mxu0 %v4808
        %4922 = vmatpush.msra.mxu0 %v4807
        %4923 = vmatpush.msra.mxu0 %v4806
        %4924 = vmatpush.msra.mxu0 %v4805
        %4925 = vmatpush.msra.mxu0 %v4804
        %4926 = vmatpush.msra.mxu0 %v4803
        %4927 = vmatmul.f32.gmra.mxu0 %v4816
        %v4928 = vpop.f32.mrf.mxu0
        %v4929 = vadd.f32 %v4813, %v4928
        %4930 = vmatmul.f32.gmra.mxu0 %v4819
        %v4931 = vpop.f32.mrf.mxu0
        %v4932 = vadd.f32 %v4813, %v4931
        %4933 = vmatmul.f32.gmra.mxu0 %v4822
        %v4934 = vpop.f32.mrf.mxu0
        %v4935 = vadd.f32 %v4813, %v4934
        %4936 = vmatmul.f32.gmra.mxu0 %v4825
        %v4937 = vpop.f32.mrf.mxu0
        %v4938 = vadd.f32 %v4813, %v4937
        %4939 = vmatmul.f32.gmra.mxu0 %v4828
        %v4940 = vpop.f32.mrf.mxu0
        %v4941 = vadd.f32 %v4813, %v4940
        %4942 = vmatmul.f32.gmra.mxu0 %v4831
        %v4943 = vpop.f32.mrf.mxu0
        %v4944 = vadd.f32 %v4813, %v4943
        %4945 = vmatmul.f32.gmra.mxu0 %v4834
        %v4946 = vpop.f32.mrf.mxu0
        %v4947 = vadd.f32 %v4813, %v4946
        %4948 = vmatmul.f32.gmra.mxu0 %v4837
        %v4949 = vpop.f32.mrf.mxu0
        %v4950 = vadd.f32 %v4813, %v4949
        %4951 = vmatmul.f32.gmra.mxu0 %v4840
        %v4952 = vpop.f32.mrf.mxu0
        %v4953 = vadd.f32 %v4813, %v4952
        %4954 = vmatmul.f32.gmra.mxu0 %v4843
        %v4955 = vpop.f32.mrf.mxu0
        %v4956 = vadd.f32 %v4813, %v4955
        %4957 = vmatmul.f32.gmra.mxu0 %v4846
        %v4958 = vpop.f32.mrf.mxu0
        %v4959 = vadd.f32 %v4813, %v4958
        %4960 = vmatmul.f32.gmra.mxu0 %v4849
        %v4961 = vpop.f32.mrf.mxu0
        %v4962 = vadd.f32 %v4813, %v4961
        %4963 = vmatmul.f32.gmra.mxu0 %v4852
        %v4964 = vpop.f32.mrf.mxu0
        %v4965 = vadd.f32 %v4813, %v4964
        %4966 = vmatmul.f32.gmra.mxu0 %v4855
        %v4967 = vpop.f32.mrf.mxu0
        %v4968 = vadd.f32 %v4813, %v4967
        %4969 = vmatmul.f32.gmra.mxu0 %v4858
        %v4970 = vpop.f32.mrf.mxu0
        %v4971 = vadd.f32 %v4813, %v4970
        %4972 = vmatmul.f32.gmra.mxu0 %v4861
        %v4973 = vpop.f32.mrf.mxu0
        %v4974 = vadd.f32 %v4813, %v4973
        %4975 = vmatmul.f32.gmra.mxu0 %v4864
        %v4976 = vpop.f32.mrf.mxu0
        %v4977 = vadd.f32 %v4813, %v4976
        %4978 = vmatmul.f32.gmra.mxu0 %v4867
        %v4979 = vpop.f32.mrf.mxu0
        %v4980 = vadd.f32 %v4813, %v4979
        %4981 = vmatmul.f32.gmra.mxu0 %v4870
        %v4982 = vpop.f32.mrf.mxu0
        %v4983 = vadd.f32 %v4813, %v4982
        %4984 = vmatmul.f32.gmra.mxu0 %v4873
        %v4985 = vpop.f32.mrf.mxu0
        %v4986 = vadd.f32 %v4813, %v4985
        %4987 = vmatmul.f32.gmra.mxu0 %v4876
        %v4988 = vpop.f32.mrf.mxu0
        %v4989 = vadd.f32 %v4813, %v4988
        %4990 = vmatmul.f32.gmra.mxu0 %v4879
        %v4991 = vpop.f32.mrf.mxu0
        %v4992 = vadd.f32 %v4813, %v4991
        %4993 = vmatmul.f32.gmra.mxu0 %v4882
        %v4994 = vpop.f32.mrf.mxu0
        %v4995 = vadd.f32 %v4813, %v4994
        %4996 = vmatmul.f32.gmra.mxu0 %v4885
        %v4997 = vpop.f32.mrf.mxu0
        %v4998 = vadd.f32 %v4813, %v4997
        %4999 = vmatmul.f32.gmra.mxu0 %v4888
        %v5000 = vpop.f32.mrf.mxu0
        %v5001 = vadd.f32 %v4813, %v5000
        %5002 = vmatmul.f32.gmra.mxu0 %v4891
        %v5003 = vpop.f32.mrf.mxu0
        %v5004 = vadd.f32 %v4813, %v5003
        %5005 = vmatmul.f32.gmra.mxu0 %v4894
        %v5006 = vpop.f32.mrf.mxu0
        %v5007 = vadd.f32 %v4813, %v5006
        %5008 = vmatmul.f32.gmra.mxu0 %v4897
        %v5009 = vpop.f32.mrf.mxu0
        %v5010 = vadd.f32 %v4813, %v5009
        %5011 = vmatmul.f32.gmra.mxu0 %v4900
        %v5012 = vpop.f32.mrf.mxu0
        %v5013 = vadd.f32 %v4813, %v5012
        %5014 = vmatmul.f32.gmra.mxu0 %v4903
        %v5015 = vpop.f32.mrf.mxu0
        %v5016 = vadd.f32 %v4813, %v5015
        %5017 = vmatmul.f32.gmra.mxu0 %v4906
        %v5018 = vpop.f32.mrf.mxu0
        %v5019 = vadd.f32 %v4813, %v5018
        %5020 = vmatmul.f32.gmra.mxu0 %v4909
        %v5021 = vpop.f32.mrf.mxu0
        %v5022 = vadd.f32 %v4813, %v5021
        %5023 = vdwg.mxu0
        %5024 = vst.msk [vmem:[%s327] sm:$0xff] %vm373, %v4929
        %5025 = vst.msk [vmem:[%s327 + $0x8] sm:$0xff] %vm373, %v4932
        %5026 = vst.msk [vmem:[%s327 + $0x10] sm:$0xff] %vm373, %v4935
        %5027 = vst.msk [vmem:[%s327 + $0x18] sm:$0xff] %vm373, %v4938
        %5028 = vst.msk [vmem:[%s327 + $0x20] sm:$0xff] %vm373, %v4941
        %5029 = vst.msk [vmem:[%s327 + $0x28] sm:$0xff] %vm373, %v4944
        %5030 = vst.msk [vmem:[%s327 + $0x30] sm:$0xff] %vm373, %v4947
        %5031 = vst.msk [vmem:[%s327 + $0x38] sm:$0xff] %vm373, %v4950
        %5032 = vst.msk [vmem:[%s327 + $0x40] sm:$0xff] %vm373, %v4953
        %5033 = vst.msk [vmem:[%s327 + $0x48] sm:$0xff] %vm373, %v4956
        %5034 = vst.msk [vmem:[%s327 + $0x50] sm:$0xff] %vm373, %v4959
        %5035 = vst.msk [vmem:[%s327 + $0x58] sm:$0xff] %vm373, %v4962
        %5036 = vst.msk [vmem:[%s327 + $0x60] sm:$0xff] %vm373, %v4965
        %5037 = vst.msk [vmem:[%s327 + $0x68] sm:$0xff] %vm373, %v4968
        %5038 = vst.msk [vmem:[%s327 + $0x70] sm:$0xff] %vm373, %v4971
        %5039 = vst.msk [vmem:[%s327 + $0x78] sm:$0xff] %vm373, %v4974
        %5040 = vst.msk [vmem:[%s327 + $0x80] sm:$0xff] %vm373, %v4977
        %5041 = vst.msk [vmem:[%s327 + $0x88] sm:$0xff] %vm373, %v4980
        %5042 = vst.msk [vmem:[%s327 + $0x90] sm:$0xff] %vm373, %v4983
        %5043 = vst.msk [vmem:[%s327 + $0x98] sm:$0xff] %vm373, %v4986
        %5044 = vst.msk [vmem:[%s327 + $0xa0] sm:$0xff] %vm373, %v4989
        %5045 = vst.msk [vmem:[%s327 + $0xa8] sm:$0xff] %vm373, %v4992
        %5046 = vst.msk [vmem:[%s327 + $0xb0] sm:$0xff] %vm373, %v4995
        %5047 = vst.msk [vmem:[%s327 + $0xb8] sm:$0xff] %vm373, %v4998
        %5048 = vst.msk [vmem:[%s327 + $0xc0] sm:$0xff] %vm373, %v5001
        %5049 = vst.msk [vmem:[%s327 + $0xc8] sm:$0xff] %vm373, %v5004
        %5050 = vst.msk [vmem:[%s327 + $0xd0] sm:$0xff] %vm373, %v5007
        %5051 = vst.msk [vmem:[%s327 + $0xd8] sm:$0xff] %vm373, %v5010
        %5052 = vst.msk [vmem:[%s327 + $0xe0] sm:$0xff] %vm373, %v5013
        %5053 = vst.msk [vmem:[%s327 + $0xe8] sm:$0xff] %vm373, %v5016
        %5054 = vst.msk [vmem:[%s327 + $0xf0] sm:$0xff] %vm373, %v5019
        %5055 = vst.msk [vmem:[%s327 + $0xf8] sm:$0xff] %vm373, %v5022
        %p5056 = scmp.lt.s32.totalorder %s21, 1
        %s5057 = scalar_select %p5056, %s21, 1
        %s5058 = smul.addr %s5057, 32
        %s5059 = smul.addr %s5058, 8
        %s5060 = scalar_lea.vmem %s7, %s5059
        %p5061 = scmp.lt.s32.totalorder %s21, 1
        %s5062 = scalar_select %p5061, %s21, 1
        %s5063 = smul.addr %s5062, 32
        %s5064 = smul.addr %s5063, 8
        %s5065 = scalar_lea.vmem %s8, %s5064
        // Predicated region
        $region53: #{tpu_custom_call.1} parent=47 // pred_check
          %p5066 = pneg %p191
        $region54: #{tpu_custom_call.1} parent=47 // pred_check_branch
          %5068 = sbr.rel (%p5066) target = $region56
        $region55: #{tpu_custom_call.1} parent=47 // pred_region
          _
        $region56: #{tpu_custom_call.1} parent=47 // pred_fallthru
          _
        // Predicated region
        $region57: #{tpu_custom_call.1} parent=47 // pred_check
          %p5069 = pneg %p217
        $region58: #{tpu_custom_call.1} parent=47 // pred_check_branch
          %5071 = sbr.rel (%p5069) target = $region60
        $region59: #{tpu_custom_call.1} parent=47 // pred_region
          _
        $region60: #{tpu_custom_call.1} parent=47 // pred_fallthru
          _
      $region48: #{tpu_custom_call.1} parent=5 // pred_fallthru
        _
      %p5072 = scmp.le.s32.totalorder 2, %s16
      // Predicated region
      $region61: #{tpu_custom_call.1} parent=5 // pred_check
        %p5073 = pneg %p5072
      $region62: #{tpu_custom_call.1} parent=5 // pred_check_branch
        %5075 = sbr.rel (%p5073) target = $region64
      $region63: #{tpu_custom_call.1} parent=5 // pred_region
        %s5076 = ssub.s32 %s16, 2
        // Predicated region
        $region65: #{tpu_custom_call.1} parent=63 // pred_check
          %p5077 = pneg %p197
        $region66: #{tpu_custom_call.1} parent=63 // pred_check_branch
          %5079 = sbr.rel (%p5077) target = $region68
        $region67: #{tpu_custom_call.1} parent=63 // pred_region
          %p5080 = scmp.lt.s32.totalorder %s22, 1
          %s5081 = scalar_select %p5080, %s22, 1
          %s5082 = smul.addr %s5081, 32
          %s5083 = smul.addr %s5082, 8
          %s5084 = scalar_lea.vmem %s7, %s5083
        $region68: #{tpu_custom_call.1} parent=63 // pred_fallthru
          _
        // Predicated region
        $region69: #{tpu_custom_call.1} parent=63 // pred_check
          %p5085 = pneg %p223
        $region70: #{tpu_custom_call.1} parent=63 // pred_check_branch
          %5087 = sbr.rel (%p5085) target = $region72
        $region71: #{tpu_custom_call.1} parent=63 // pred_region
          %p5088 = scmp.lt.s32.totalorder %s22, 1
          %s5089 = scalar_select %p5088, %s22, 1
          %s5090 = smul.addr %s5089, 32
          %s5091 = smul.addr %s5090, 8
          %s5092 = scalar_lea.vmem %s8, %s5091
        $region72: #{tpu_custom_call.1} parent=63 // pred_fallthru
          _
      $region64: #{tpu_custom_call.1} parent=5 // pred_fallthru
        _
    $region6: #{tpu_custom_call.1} parent=1 // loop_footer
      %s20 = sadd.s32 1, %s16
    $region7: #{tpu_custom_call.1} parent=1 // loop_footer_branch
      %15 = sbr.rel target = $region3
    $region8: #{tpu_custom_call.1} parent=1 // loop_exit
      _
    %5093 = vsyncpa [#allocation3], 1
    %s5094 = scalar_lea.sflag [#allocation3], 1
    %5095 = vsyncpa %s5094, 1

</llo_original>
